<compile_context>
chip_gen: v7x
topology: tpu7x:2x2x1
jax: 0.10.0
libtpu: 0.0.40
codegen_flags: <defaults>
</compile_context>

<pallas_src>
import functools
import math

import jax
import jax.numpy as jnp
from jax import lax
from jax.experimental import pallas as pl
from jax.experimental.pallas import tpu as pltpu


def _round_up(n, m):
    return (n + m - 1) // m * m


# PyTorch gate order [i, f, g, o] -> kernel gate order [i, f, o, g]
_GATE_SLOT = (0, 1, 3, 2)


def _lstm_fc_kernel(xproj_ref,          # (T, Bt, 4Hp) f32: precomputed x@W_ih_l0 + b0
                    whh0_ref,           # (Hp, 4Hp)   bf16: layer-0 recurrent weight
                    w1_ref,             # (2Hp, 4Hp)  bf16: layer-1 fused [W_ih ; W_hh]
                    b1_ref,             # (1, 4Hp)    f32
                    wfc_ref,            # (Hp, Cp)    bf16: final Linear weight
                    bfc_ref,            # (1, Cp)     f32
                    out_ref,            # (Bt, Cp)    f32
                    *, unroll):
    T, B, G4 = xproj_ref.shape
    Hp = G4 // 4

    # Hoist weight loads / bias broadcast out of the recurrence
    # (JAX does not CSE broadcast_in_dim inside the loop).
    whh0 = whh0_ref[...]
    w1 = w1_ref[...]
    wfc = wfc_ref[...]
    b1 = jnp.broadcast_to(b1_ref[...], (B, G4))

    def activate(gates, c):
        # Gate layout [i | f | o | g]: one sigmoid over 3Hp lanes, one tanh over Hp.
        sg = jax.nn.sigmoid(gates[:, :3 * Hp])
        g = jnp.tanh(gates[:, 3 * Hp:])
        i = sg[:, :Hp]
        f = sg[:, Hp:2 * Hp]
        o = sg[:, 2 * Hp:3 * Hp]
        c_new = f * c + i * g
        h_new = o * jnp.tanh(c_new)
        return h_new, c_new

    def step(t, carry):
        h1, c1, h2, c2 = carry
        # Layer 0: input projection precomputed; only the recurrent matmul is serial.
        g0 = xproj_ref[t] + jnp.dot(h1.astype(jnp.bfloat16), whh0,
                                    preferred_element_type=jnp.float32)
        h1, c1 = activate(g0, c1)
        # TODO(synk): nn.LSTM inter-layer dropout applies only in training; identity here.
        # Layer 1: fused [h1 | h2] @ [W_ih ; W_hh] (single K=2Hp MXU push).
        xh = jnp.concatenate([h1.astype(jnp.bfloat16), h2.astype(jnp.bfloat16)], axis=-1)
        g1 = jnp.dot(xh, w1, preferred_element_type=jnp.float32) + b1
        h2, c2 = activate(g1, c2)
        return (h1, c1, h2, c2)

    z = jnp.zeros((B, Hp), jnp.float32)
    _, _, h2, _ = lax.fori_loop(0, T, step, (z, z, z, z), unroll=unroll)

    out_ref[...] = (jnp.dot(h2.astype(jnp.bfloat16), wfc,
                            preferred_element_type=jnp.float32)
                    + bfc_ref[...]).astype(out_ref.dtype)


def lstm_model_forward(x, packed, *, hidden_size, num_classes, unroll=None):
    """x: (B, T, num_features) batch-first float32. Returns (B, num_classes)."""
    B, T, F = x.shape
    C = num_classes
    w_in0, b0, whh0, w1, b1, wfc, bfc = packed
    Hp, Cp = wfc.shape
    Bp = _round_up(B, 8)

    # --- Layer-0 input projection for ALL timesteps as one big (MXU-efficient)
    # XLA matmul; removes half of layer-0's contraction and the per-step bias
    # add from the serial recurrence, and avoids padding F up to 128.
    x_tm = jnp.transpose(x.astype(jnp.float32), (1, 0, 2))            # (T, B, F)
    xproj = jnp.einsum('tbf,fg->tbg', x_tm, w_in0) + b0               # (T, B, 4Hp) f32
    xproj_p = jnp.zeros((T, Bp, 4 * Hp), jnp.float32).at[:, :B, :].set(xproj)

    # --- Batch tiling: 2 tiles when possible so v7x shards across its 2 TCs.
    if Bp >= 16 and Bp % 16 == 0:
        num_tiles = 2
    else:
        num_tiles = 1
    tile_b = Bp // num_tiles

    if unroll is None:
        unroll = True if T <= 16 else 8

    # --- VMEM budget: actual need (per-block slabs double-buffered + resident
    # weights), capped at ~75% of physical VMEM (48 MiB v7x / 96 MiB v5e-v6e).
    try:
        phys_vmem = pltpu.get_tpu_info().vmem_capacity_bytes
    except Exception:
        phys_vmem = 128 * 1024 * 1024
    cap = int(phys_vmem * 3 // 4)
    blk_bytes = T * tile_b * 4 * Hp * 4 + tile_b * Cp * 4             # f32 xproj block + out block
    w_bytes = 2 * (whh0.size + w1.size + wfc.size) + 4 * (b1.size + bfc.size)
    vmem_need = 2 * (blk_bytes + w_bytes)
    vmem_limit = int(min(max(vmem_need + (4 << 20), 16 << 20), cap))
    # TODO(synk): no streamed fallback yet — sequences whose projection slab exceeds the
    # cap should keep xproj in HBM (pl.ANY) and double-buffer time chunks with make_async_copy.

    grid_spec = pltpu.PrefetchScalarGridSpec(
        num_scalar_prefetch=0,
        grid=(num_tiles,),
        in_specs=[
            pl.BlockSpec((T, tile_b, 4 * Hp), lambda b: (0, b, 0)),
            pl.BlockSpec((Hp, 4 * Hp), lambda b: (0, 0)),
            pl.BlockSpec((2 * Hp, 4 * Hp), lambda b: (0, 0)),
            pl.BlockSpec((1, 4 * Hp), lambda b: (0, 0)),
            pl.BlockSpec((Hp, Cp), lambda b: (0, 0)),
            pl.BlockSpec((1, Cp), lambda b: (0, 0)),
        ],
        out_specs=pl.BlockSpec((tile_b, Cp), lambda b: (b, 0)),
    )

    out_p = pl.pallas_call(
        functools.partial(_lstm_fc_kernel, unroll=unroll),
        out_shape=jax.ShapeDtypeStruct((Bp, Cp), jnp.float32),
        grid_spec=grid_spec,
        compiler_params=pltpu.CompilerParams(
            dimension_semantics=("parallel",),
            vmem_limit_bytes=vmem_limit),
    )(xproj_p, whh0, w1, b1, wfc, bfc)

    return out_p[:B, :C]


def init_params(key, num_features, num_classes, hidden_size):
    """PyTorch-layout LSTM + Linear params, uniform(-1/sqrt(H), 1/sqrt(H))."""
    H, F, C = hidden_size, num_features, num_classes
    k = jax.random.split(key, 10)
    s = 1.0 / math.sqrt(H)
    u = lambda kk, shape: jax.random.uniform(kk, shape, jnp.float32, -s, s)
    return dict(
        w_ih_l0=u(k[0], (4 * H, F)), w_hh_l0=u(k[1], (4 * H, H)),
        b_ih_l0=u(k[2], (4 * H,)),   b_hh_l0=u(k[3], (4 * H,)),
        w_ih_l1=u(k[4], (4 * H, H)), w_hh_l1=u(k[5], (4 * H, H)),
        b_ih_l1=u(k[6], (4 * H,)),   b_hh_l1=u(k[7], (4 * H,)),
        w_fc=u(k[8], (C, H)),        b_fc=u(k[9], (C,)),
    )


def _gate_pack(w, H, Hp):
    """(rows, 4H) PyTorch [i,f,g,o] -> (rows, 4Hp) kernel order [i,f,o,g], per-gate lane pad."""
    out = jnp.zeros((w.shape[0], 4 * Hp), jnp.float32)
    for src, dst in enumerate(_GATE_SLOT):
        out = out.at[:, dst * Hp:dst * Hp + H].set(w[:, src * H:(src + 1) * H])
    return out


def pack_params(p, num_features, num_classes, hidden_size):
    """Fuse + pad PyTorch-layout weights into the kernel layout.

    Each gate is padded to Hp = round_up(H, 128) lanes so gate slices are
    full-vreg.  All padding is zero, which keeps the recurrence exact: padded
    i/f/o lanes give sigmoid(0)=0.5 but padded g lanes give tanh(0)=0, so
    padded c/h lanes stay 0 and their zero weight rows never feed back.
    Matmul weights are pre-cast to bf16 (f32 accumulation in-kernel).
    """
    H, F, C = hidden_size, num_features, num_classes
    Hp = _round_up(H, 128)
    Cp = _round_up(C, 128)

    # Layer 0: input weight kept unpadded on the F axis (used in one big XLA
    # matmul over all timesteps); both biases folded in once.
    w_in0 = _gate_pack(p["w_ih_l0"].T, H, Hp)                            # (F, 4Hp) f32
    b0 = _gate_pack((p["b_ih_l0"] + p["b_hh_l0"])[None, :], H, Hp)       # (1, 4Hp) f32
    whh0 = (jnp.zeros((Hp, 4 * Hp), jnp.float32)
            .at[:H, :].set(_gate_pack(p["w_hh_l0"].T, H, Hp))
            .astype(jnp.bfloat16))                                        # (Hp, 4Hp) bf16

    # Layer 1: fused [W_ih ; W_hh] on the contraction axis -> [h1 | h2] @ w1.
    w1 = jnp.zeros((2 * Hp, 4 * Hp), jnp.float32)
    w1 = w1.at[:H, :].set(_gate_pack(p["w_ih_l1"].T, H, Hp))
    w1 = w1.at[Hp:Hp + H, :].set(_gate_pack(p["w_hh_l1"].T, H, Hp))
    w1 = w1.astype(jnp.bfloat16)                                          # (2Hp, 4Hp) bf16
    b1 = _gate_pack((p["b_ih_l1"] + p["b_hh_l1"])[None, :], H, Hp)        # (1, 4Hp) f32

    wfc = (jnp.zeros((Hp, Cp), jnp.float32)
           .at[:H, :C].set(p["w_fc"].T).astype(jnp.bfloat16))             # (Hp, Cp) bf16
    bfc = jnp.zeros((1, Cp), jnp.float32).at[0, :C].set(p["b_fc"])        # (1, Cp) f32
    return (w_in0, b0, whh0, w1, b1, wfc, bfc)


def reference_forward(x, p):
    """Pure-JAX f32 reference with PyTorch nn.LSTM eval semantics, for validation."""
    B = x.shape[0]
    H = p["w_hh_l0"].shape[1]

    def cell(xt, h, c, w_ih, w_hh, b_ih, b_hh):
        gates = xt @ w_ih.T + h @ w_hh.T + b_ih + b_hh
        i, f, g, o = jnp.split(gates, 4, axis=-1)
        c_new = jax.nn.sigmoid(f) * c + jax.nn.sigmoid(i) * jnp.tanh(g)
        h_new = jax.nn.sigmoid(o) * jnp.tanh(c_new)
        return h_new, c_new

    def step(carry, xt):
        h1, c1, h2, c2 = carry
        h1, c1 = cell(xt, h1, c1, p["w_ih_l0"], p["w_hh_l0"], p["b_ih_l0"], p["b_hh_l0"])
        h2, c2 = cell(h1, h2, c2, p["w_ih_l1"], p["w_hh_l1"], p["b_ih_l1"], p["b_hh_l1"])
        return (h1, c1, h2, c2), None

    z = jnp.zeros((B, H), jnp.float32)
    (_, _, h2, _), _ = lax.scan(step, (z, z, z, z), jnp.transpose(x, (1, 0, 2)))
    return h2 @ p["w_fc"].T + p["b_fc"]


if __name__ == "__main__":
    # Shapes consistent with the module's forward: x is (B, T, num_features);
    # hidden_size=128 is the module default (and lane-aligned).
    num_features, num_classes, hidden_size = 16, 8, 128
    T = 12

    key = jax.random.PRNGKey(0)
    kx, kp, kx2 = jax.random.split(key, 3)

    params = init_params(kp, num_features, num_classes, hidden_size)
    packed = pack_params(params, num_features, num_classes, hidden_size)

    fwd = jax.jit(functools.partial(lstm_model_forward,
                                    hidden_size=hidden_size,
                                    num_classes=num_classes))

    # Path 1: small batch (single batch tile).
    x = jax.random.normal(kx, (8, T, num_features), jnp.float32)
    out = fwd(x, packed)
    jax.block_until_ready(out)
    ref = reference_forward(x, params)
    assert out.shape == (8, num_classes)
    err = float(jnp.max(jnp.abs(out - ref)))
    # bf16 MXU operands over a T-step recurrence -> looser tolerance than pure f32.
    assert jnp.allclose(out, ref, atol=2e-2, rtol=2e-2), f"max err {err}"

    # Path 2: larger batch exercising the 2-tile batch grid (megacore on v7x).
    x2 = jax.random.normal(kx2, (32, T, num_features), jnp.float32)
    out2 = fwd(x2, packed)
    jax.block_until_ready(out2)
    ref2 = reference_forward(x2, params)
    assert out2.shape == (32, num_classes)
    err2 = float(jnp.max(jnp.abs(out2 - ref2)))
    assert jnp.allclose(out2, ref2, atol=2e-2, rtol=2e-2), f"max err {err2}"

    print("KERNEL_OK")
</pallas_src>

<mosaic_0001>
module attributes {stable_mosaic.version = 11 : i64} {
  func.func @_lstm_fc_kernel(%arg0: i32, %arg1: memref<12x8x512xf32, #tpu.memory_space<vmem>>, %arg2: memref<128x512xbf16, #tpu.memory_space<vmem>>, %arg3: memref<256x512xbf16, #tpu.memory_space<vmem>>, %arg4: memref<1x512xf32, #tpu.memory_space<vmem>>, %arg5: memref<128x128xbf16, #tpu.memory_space<vmem>>, %arg6: memref<1x128xf32, #tpu.memory_space<vmem>>, %arg7: memref<8x128xf32, #tpu.memory_space<vmem>>) attributes {dimension_semantics = [#tpu.dimension_semantics<parallel>], iteration_bounds = array<i64: 1>, scalar_prefetch = 0 : i64, scratch_operands = 0 : i64, tpu.core_type = #tpu.core_type<tc>, window_params = [{transform_indices = @transform_0, window_bounds = array<i64: 12, 8, 512>}, {pipeline_mode = #tpu.pipeline_mode<synchronous>, transform_indices = @transform_1, window_bounds = array<i64: 128, 512>}, {pipeline_mode = #tpu.pipeline_mode<synchronous>, transform_indices = @transform_2, window_bounds = array<i64: 256, 512>}, {pipeline_mode = #tpu.pipeline_mode<synchronous>, transform_indices = @transform_3, window_bounds = array<i64: 1, 512>}, {pipeline_mode = #tpu.pipeline_mode<synchronous>, transform_indices = @transform_4, window_bounds = array<i64: 128, 128>}, {pipeline_mode = #tpu.pipeline_mode<synchronous>, transform_indices = @transform_5, window_bounds = array<i64: 1, 128>}, {transform_indices = @transform_6, window_bounds = array<i64: 8, 128>}]} {
    %c0 = arith.constant 0 : index
    %c0_0 = arith.constant 0 : index
    %0 = vector.load %arg2[%c0, %c0_0] : memref<128x512xbf16, #tpu.memory_space<vmem>>, vector<128x512xbf16>
    %c0_1 = arith.constant 0 : index
    %c0_2 = arith.constant 0 : index
    %1 = vector.load %arg3[%c0_1, %c0_2] : memref<256x512xbf16, #tpu.memory_space<vmem>>, vector<256x512xbf16>
    %c0_3 = arith.constant 0 : index
    %c0_4 = arith.constant 0 : index
    %2 = vector.load %arg5[%c0_3, %c0_4] : memref<128x128xbf16, #tpu.memory_space<vmem>>, vector<128x128xbf16>
    %c0_5 = arith.constant 0 : index
    %c0_6 = arith.constant 0 : index
    %3 = vector.load %arg4[%c0_5, %c0_6] : memref<1x512xf32, #tpu.memory_space<vmem>>, vector<1x512xf32>
    %4 = vector.shape_cast %3 : vector<1x512xf32> to vector<1x512xf32>
    %5 = vector.broadcast %4 : vector<1x512xf32> to vector<8x512xf32>
    %cst = arith.constant 0.000000e+00 : f32
    %6 = vector.broadcast %cst : f32 to vector<8x128xf32>
    %c0_i32 = arith.constant 0 : i32
    %7 = arith.index_cast %c0_i32 : i32 to index
    %c0_7 = arith.constant 0 : index
    %c0_8 = arith.constant 0 : index
    %8 = vector.load %arg1[%7, %c0_7, %c0_8] : memref<12x8x512xf32, #tpu.memory_space<vmem>>, vector<1x8x512xf32>
    %9 = vector.shape_cast %8 : vector<1x8x512xf32> to vector<8x512xf32>
    %10 = arith.truncf %6 : vector<8x128xf32> to vector<8x128xbf16>
    %cst_9 = arith.constant dense<0.000000e+00> : vector<8x512xf32>
    %11 = tpu.matmul %10, %0, %cst_9 {dimension_numbers = #tpu.dot_dimension_numbers<[1], [0], [0], [1], [0, 0, 1, 1], [], []>} : vector<8x128xbf16>, vector<128x512xbf16>, vector<8x512xf32> -> vector<8x512xf32>
    %12 = arith.addf %9, %11 : vector<8x512xf32>
    %13 = vector.extract_strided_slice %12 {offsets = [0, 0], sizes = [8, 384], strides = [1, 1]} : vector<8x512xf32> to vector<8x384xf32>
    %14 = arith.negf %13 : vector<8x384xf32>
    %15 = math.exp %14 : vector<8x384xf32>
    %cst_10 = arith.constant 1.000000e+00 : f32
    %16 = vector.broadcast %cst_10 : f32 to vector<8x384xf32>
    %17 = arith.addf %16, %15 : vector<8x384xf32>
    %18 = arith.divf %16, %17 : vector<8x384xf32>
    %19 = vector.extract_strided_slice %12 {offsets = [0, 384], sizes = [8, 128], strides = [1, 1]} : vector<8x512xf32> to vector<8x128xf32>
    %20 = math.tanh %19 : vector<8x128xf32>
    %21 = vector.extract_strided_slice %18 {offsets = [0, 0], sizes = [8, 128], strides = [1, 1]} : vector<8x384xf32> to vector<8x128xf32>
    %22 = vector.extract_strided_slice %18 {offsets = [0, 128], sizes = [8, 128], strides = [1, 1]} : vector<8x384xf32> to vector<8x128xf32>
    %23 = vector.extract_strided_slice %18 {offsets = [0, 256], sizes = [8, 128], strides = [1, 1]} : vector<8x384xf32> to vector<8x128xf32>
    %24 = arith.mulf %22, %6 : vector<8x128xf32>
    %25 = arith.mulf %21, %20 : vector<8x128xf32>
    %26 = arith.addf %24, %25 : vector<8x128xf32>
    %27 = math.tanh %26 : vector<8x128xf32>
    %28 = arith.mulf %23, %27 : vector<8x128xf32>
    %29 = arith.truncf %28 : vector<8x128xf32> to vector<8x128xbf16>
    %30 = arith.truncf %6 : vector<8x128xf32> to vector<8x128xbf16>
    %31 = tpu.concatenate %29, %30 in 1 : vector<8x128xbf16>, vector<8x128xbf16> -> vector<8x256xbf16>
    %cst_11 = arith.constant dense<0.000000e+00> : vector<8x512xf32>
    %32 = tpu.matmul %31, %1, %cst_11 {dimension_numbers = #tpu.dot_dimension_numbers<[1], [0], [0], [1], [0, 0, 1, 1], [], []>} : vector<8x256xbf16>, vector<256x512xbf16>, vector<8x512xf32> -> vector<8x512xf32>
    %33 = arith.addf %32, %5 : vector<8x512xf32>
    %34 = vector.extract_strided_slice %33 {offsets = [0, 0], sizes = [8, 384], strides = [1, 1]} : vector<8x512xf32> to vector<8x384xf32>
    %35 = arith.negf %34 : vector<8x384xf32>
    %36 = math.exp %35 : vector<8x384xf32>
    %cst_12 = arith.constant 1.000000e+00 : f32
    %37 = vector.broadcast %cst_12 : f32 to vector<8x384xf32>
    %38 = arith.addf %37, %36 : vector<8x384xf32>
    %39 = arith.divf %37, %38 : vector<8x384xf32>
    %40 = vector.extract_strided_slice %33 {offsets = [0, 384], sizes = [8, 128], strides = [1, 1]} : vector<8x512xf32> to vector<8x128xf32>
    %41 = math.tanh %40 : vector<8x128xf32>
    %42 = vector.extract_strided_slice %39 {offsets = [0, 0], sizes = [8, 128], strides = [1, 1]} : vector<8x384xf32> to vector<8x128xf32>
    %43 = vector.extract_strided_slice %39 {offsets = [0, 128], sizes = [8, 128], strides = [1, 1]} : vector<8x384xf32> to vector<8x128xf32>
    %44 = vector.extract_strided_slice %39 {offsets = [0, 256], sizes = [8, 128], strides = [1, 1]} : vector<8x384xf32> to vector<8x128xf32>
    %45 = arith.mulf %43, %6 : vector<8x128xf32>
    %46 = arith.mulf %42, %41 : vector<8x128xf32>
    %47 = arith.addf %45, %46 : vector<8x128xf32>
    %48 = math.tanh %47 : vector<8x128xf32>
    %49 = arith.mulf %44, %48 : vector<8x128xf32>
    %c1_i32 = arith.constant 1 : i32
    %50 = arith.index_cast %c1_i32 : i32 to index
    %c0_13 = arith.constant 0 : index
    %c0_14 = arith.constant 0 : index
    %51 = vector.load %arg1[%50, %c0_13, %c0_14] : memref<12x8x512xf32, #tpu.memory_space<vmem>>, vector<1x8x512xf32>
    %52 = vector.shape_cast %51 : vector<1x8x512xf32> to vector<8x512xf32>
    %53 = arith.truncf %28 : vector<8x128xf32> to vector<8x128xbf16>
    %cst_15 = arith.constant dense<0.000000e+00> : vector<8x512xf32>
    %54 = tpu.matmul %53, %0, %cst_15 {dimension_numbers = #tpu.dot_dimension_numbers<[1], [0], [0], [1], [0, 0, 1, 1], [], []>} : vector<8x128xbf16>, vector<128x512xbf16>, vector<8x512xf32> -> vector<8x512xf32>
    %55 = arith.addf %52, %54 : vector<8x512xf32>
    %56 = vector.extract_strided_slice %55 {offsets = [0, 0], sizes = [8, 384], strides = [1, 1]} : vector<8x512xf32> to vector<8x384xf32>
    %57 = arith.negf %56 : vector<8x384xf32>
    %58 = math.exp %57 : vector<8x384xf32>
    %cst_16 = arith.constant 1.000000e+00 : f32
    %59 = vector.broadcast %cst_16 : f32 to vector<8x384xf32>
    %60 = arith.addf %59, %58 : vector<8x384xf32>
    %61 = arith.divf %59, %60 : vector<8x384xf32>
    %62 = vector.extract_strided_slice %55 {offsets = [0, 384], sizes = [8, 128], strides = [1, 1]} : vector<8x512xf32> to vector<8x128xf32>
    %63 = math.tanh %62 : vector<8x128xf32>
    %64 = vector.extract_strided_slice %61 {offsets = [0, 0], sizes = [8, 128], strides = [1, 1]} : vector<8x384xf32> to vector<8x128xf32>
    %65 = vector.extract_strided_slice %61 {offsets = [0, 128], sizes = [8, 128], strides = [1, 1]} : vector<8x384xf32> to vector<8x128xf32>
    %66 = vector.extract_strided_slice %61 {offsets = [0, 256], sizes = [8, 128], strides = [1, 1]} : vector<8x384xf32> to vector<8x128xf32>
    %67 = arith.mulf %65, %26 : vector<8x128xf32>
    %68 = arith.mulf %64, %63 : vector<8x128xf32>
    %69 = arith.addf %67, %68 : vector<8x128xf32>
    %70 = math.tanh %69 : vector<8x128xf32>
    %71 = arith.mulf %66, %70 : vector<8x128xf32>
    %72 = arith.truncf %71 : vector<8x128xf32> to vector<8x128xbf16>
    %73 = arith.truncf %49 : vector<8x128xf32> to vector<8x128xbf16>
    %74 = tpu.concatenate %72, %73 in 1 : vector<8x128xbf16>, vector<8x128xbf16> -> vector<8x256xbf16>
    %cst_17 = arith.constant dense<0.000000e+00> : vector<8x512xf32>
    %75 = tpu.matmul %74, %1, %cst_17 {dimension_numbers = #tpu.dot_dimension_numbers<[1], [0], [0], [1], [0, 0, 1, 1], [], []>} : vector<8x256xbf16>, vector<256x512xbf16>, vector<8x512xf32> -> vector<8x512xf32>
    %76 = arith.addf %75, %5 : vector<8x512xf32>
    %77 = vector.extract_strided_slice %76 {offsets = [0, 0], sizes = [8, 384], strides = [1, 1]} : vector<8x512xf32> to vector<8x384xf32>
    %78 = arith.negf %77 : vector<8x384xf32>
    %79 = math.exp %78 : vector<8x384xf32>
    %cst_18 = arith.constant 1.000000e+00 : f32
    %80 = vector.broadcast %cst_18 : f32 to vector<8x384xf32>
    %81 = arith.addf %80, %79 : vector<8x384xf32>
    %82 = arith.divf %80, %81 : vector<8x384xf32>
    %83 = vector.extract_strided_slice %76 {offsets = [0, 384], sizes = [8, 128], strides = [1, 1]} : vector<8x512xf32> to vector<8x128xf32>
    %84 = math.tanh %83 : vector<8x128xf32>
    %85 = vector.extract_strided_slice %82 {offsets = [0, 0], sizes = [8, 128], strides = [1, 1]} : vector<8x384xf32> to vector<8x128xf32>
    %86 = vector.extract_strided_slice %82 {offsets = [0, 128], sizes = [8, 128], strides = [1, 1]} : vector<8x384xf32> to vector<8x128xf32>
    %87 = vector.extract_strided_slice %82 {offsets = [0, 256], sizes = [8, 128], strides = [1, 1]} : vector<8x384xf32> to vector<8x128xf32>
    %88 = arith.mulf %86, %47 : vector<8x128xf32>
    %89 = arith.mulf %85, %84 : vector<8x128xf32>
    %90 = arith.addf %88, %89 : vector<8x128xf32>
    %91 = math.tanh %90 : vector<8x128xf32>
    %92 = arith.mulf %87, %91 : vector<8x128xf32>
    %c2_i32 = arith.constant 2 : i32
    %93 = arith.index_cast %c2_i32 : i32 to index
    %c0_19 = arith.constant 0 : index
    %c0_20 = arith.constant 0 : index
    %94 = vector.load %arg1[%93, %c0_19, %c0_20] : memref<12x8x512xf32, #tpu.memory_space<vmem>>, vector<1x8x512xf32>
    %95 = vector.shape_cast %94 : vector<1x8x512xf32> to vector<8x512xf32>
    %96 = arith.truncf %71 : vector<8x128xf32> to vector<8x128xbf16>
    %cst_21 = arith.constant dense<0.000000e+00> : vector<8x512xf32>
    %97 = tpu.matmul %96, %0, %cst_21 {dimension_numbers = #tpu.dot_dimension_numbers<[1], [0], [0], [1], [0, 0, 1, 1], [], []>} : vector<8x128xbf16>, vector<128x512xbf16>, vector<8x512xf32> -> vector<8x512xf32>
    %98 = arith.addf %95, %97 : vector<8x512xf32>
    %99 = vector.extract_strided_slice %98 {offsets = [0, 0], sizes = [8, 384], strides = [1, 1]} : vector<8x512xf32> to vector<8x384xf32>
    %100 = arith.negf %99 : vector<8x384xf32>
    %101 = math.exp %100 : vector<8x384xf32>
    %cst_22 = arith.constant 1.000000e+00 : f32
    %102 = vector.broadcast %cst_22 : f32 to vector<8x384xf32>
    %103 = arith.addf %102, %101 : vector<8x384xf32>
    %104 = arith.divf %102, %103 : vector<8x384xf32>
    %105 = vector.extract_strided_slice %98 {offsets = [0, 384], sizes = [8, 128], strides = [1, 1]} : vector<8x512xf32> to vector<8x128xf32>
    %106 = math.tanh %105 : vector<8x128xf32>
    %107 = vector.extract_strided_slice %104 {offsets = [0, 0], sizes = [8, 128], strides = [1, 1]} : vector<8x384xf32> to vector<8x128xf32>
    %108 = vector.extract_strided_slice %104 {offsets = [0, 128], sizes = [8, 128], strides = [1, 1]} : vector<8x384xf32> to vector<8x128xf32>
    %109 = vector.extract_strided_slice %104 {offsets = [0, 256], sizes = [8, 128], strides = [1, 1]} : vector<8x384xf32> to vector<8x128xf32>
    %110 = arith.mulf %108, %69 : vector<8x128xf32>
    %111 = arith.mulf %107, %106 : vector<8x128xf32>
    %112 = arith.addf %110, %111 : vector<8x128xf32>
    %113 = math.tanh %112 : vector<8x128xf32>
    %114 = arith.mulf %109, %113 : vector<8x128xf32>
    %115 = arith.truncf %114 : vector<8x128xf32> to vector<8x128xbf16>
    %116 = arith.truncf %92 : vector<8x128xf32> to vector<8x128xbf16>
    %117 = tpu.concatenate %115, %116 in 1 : vector<8x128xbf16>, vector<8x128xbf16> -> vector<8x256xbf16>
    %cst_23 = arith.constant dense<0.000000e+00> : vector<8x512xf32>
    %118 = tpu.matmul %117, %1, %cst_23 {dimension_numbers = #tpu.dot_dimension_numbers<[1], [0], [0], [1], [0, 0, 1, 1], [], []>} : vector<8x256xbf16>, vector<256x512xbf16>, vector<8x512xf32> -> vector<8x512xf32>
    %119 = arith.addf %118, %5 : vector<8x512xf32>
    %120 = vector.extract_strided_slice %119 {offsets = [0, 0], sizes = [8, 384], strides = [1, 1]} : vector<8x512xf32> to vector<8x384xf32>
    %121 = arith.negf %120 : vector<8x384xf32>
    %122 = math.exp %121 : vector<8x384xf32>
    %cst_24 = arith.constant 1.000000e+00 : f32
    %123 = vector.broadcast %cst_24 : f32 to vector<8x384xf32>
    %124 = arith.addf %123, %122 : vector<8x384xf32>
    %125 = arith.divf %123, %124 : vector<8x384xf32>
    %126 = vector.extract_strided_slice %119 {offsets = [0, 384], sizes = [8, 128], strides = [1, 1]} : vector<8x512xf32> to vector<8x128xf32>
    %127 = math.tanh %126 : vector<8x128xf32>
    %128 = vector.extract_strided_slice %125 {offsets = [0, 0], sizes = [8, 128], strides = [1, 1]} : vector<8x384xf32> to vector<8x128xf32>
    %129 = vector.extract_strided_slice %125 {offsets = [0, 128], sizes = [8, 128], strides = [1, 1]} : vector<8x384xf32> to vector<8x128xf32>
    %130 = vector.extract_strided_slice %125 {offsets = [0, 256], sizes = [8, 128], strides = [1, 1]} : vector<8x384xf32> to vector<8x128xf32>
    %131 = arith.mulf %129, %90 : vector<8x128xf32>
    %132 = arith.mulf %128, %127 : vector<8x128xf32>
    %133 = arith.addf %131, %132 : vector<8x128xf32>
    %134 = math.tanh %133 : vector<8x128xf32>
    %135 = arith.mulf %130, %134 : vector<8x128xf32>
    %c3_i32 = arith.constant 3 : i32
    %136 = arith.index_cast %c3_i32 : i32 to index
    %c0_25 = arith.constant 0 : index
    %c0_26 = arith.constant 0 : index
    %137 = vector.load %arg1[%136, %c0_25, %c0_26] : memref<12x8x512xf32, #tpu.memory_space<vmem>>, vector<1x8x512xf32>
    %138 = vector.shape_cast %137 : vector<1x8x512xf32> to vector<8x512xf32>
    %139 = arith.truncf %114 : vector<8x128xf32> to vector<8x128xbf16>
    %cst_27 = arith.constant dense<0.000000e+00> : vector<8x512xf32>
    %140 = tpu.matmul %139, %0, %cst_27 {dimension_numbers = #tpu.dot_dimension_numbers<[1], [0], [0], [1], [0, 0, 1, 1], [], []>} : vector<8x128xbf16>, vector<128x512xbf16>, vector<8x512xf32> -> vector<8x512xf32>
    %141 = arith.addf %138, %140 : vector<8x512xf32>
    %142 = vector.extract_strided_slice %141 {offsets = [0, 0], sizes = [8, 384], strides = [1, 1]} : vector<8x512xf32> to vector<8x384xf32>
    %143 = arith.negf %142 : vector<8x384xf32>
    %144 = math.exp %143 : vector<8x384xf32>
    %cst_28 = arith.constant 1.000000e+00 : f32
    %145 = vector.broadcast %cst_28 : f32 to vector<8x384xf32>
    %146 = arith.addf %145, %144 : vector<8x384xf32>
    %147 = arith.divf %145, %146 : vector<8x384xf32>
    %148 = vector.extract_strided_slice %141 {offsets = [0, 384], sizes = [8, 128], strides = [1, 1]} : vector<8x512xf32> to vector<8x128xf32>
    %149 = math.tanh %148 : vector<8x128xf32>
    %150 = vector.extract_strided_slice %147 {offsets = [0, 0], sizes = [8, 128], strides = [1, 1]} : vector<8x384xf32> to vector<8x128xf32>
    %151 = vector.extract_strided_slice %147 {offsets = [0, 128], sizes = [8, 128], strides = [1, 1]} : vector<8x384xf32> to vector<8x128xf32>
    %152 = vector.extract_strided_slice %147 {offsets = [0, 256], sizes = [8, 128], strides = [1, 1]} : vector<8x384xf32> to vector<8x128xf32>
    %153 = arith.mulf %151, %112 : vector<8x128xf32>
    %154 = arith.mulf %150, %149 : vector<8x128xf32>
    %155 = arith.addf %153, %154 : vector<8x128xf32>
    %156 = math.tanh %155 : vector<8x128xf32>
    %157 = arith.mulf %152, %156 : vector<8x128xf32>
    %158 = arith.truncf %157 : vector<8x128xf32> to vector<8x128xbf16>
    %159 = arith.truncf %135 : vector<8x128xf32> to vector<8x128xbf16>
    %160 = tpu.concatenate %158, %159 in 1 : vector<8x128xbf16>, vector<8x128xbf16> -> vector<8x256xbf16>
    %cst_29 = arith.constant dense<0.000000e+00> : vector<8x512xf32>
    %161 = tpu.matmul %160, %1, %cst_29 {dimension_numbers = #tpu.dot_dimension_numbers<[1], [0], [0], [1], [0, 0, 1, 1], [], []>} : vector<8x256xbf16>, vector<256x512xbf16>, vector<8x512xf32> -> vector<8x512xf32>
    %162 = arith.addf %161, %5 : vector<8x512xf32>
    %163 = vector.extract_strided_slice %162 {offsets = [0, 0], sizes = [8, 384], strides = [1, 1]} : vector<8x512xf32> to vector<8x384xf32>
    %164 = arith.negf %163 : vector<8x384xf32>
    %165 = math.exp %164 : vector<8x384xf32>
    %cst_30 = arith.constant 1.000000e+00 : f32
    %166 = vector.broadcast %cst_30 : f32 to vector<8x384xf32>
    %167 = arith.addf %166, %165 : vector<8x384xf32>
    %168 = arith.divf %166, %167 : vector<8x384xf32>
    %169 = vector.extract_strided_slice %162 {offsets = [0, 384], sizes = [8, 128], strides = [1, 1]} : vector<8x512xf32> to vector<8x128xf32>
    %170 = math.tanh %169 : vector<8x128xf32>
    %171 = vector.extract_strided_slice %168 {offsets = [0, 0], sizes = [8, 128], strides = [1, 1]} : vector<8x384xf32> to vector<8x128xf32>
    %172 = vector.extract_strided_slice %168 {offsets = [0, 128], sizes = [8, 128], strides = [1, 1]} : vector<8x384xf32> to vector<8x128xf32>
    %173 = vector.extract_strided_slice %168 {offsets = [0, 256], sizes = [8, 128], strides = [1, 1]} : vector<8x384xf32> to vector<8x128xf32>
    %174 = arith.mulf %172, %133 : vector<8x128xf32>
    %175 = arith.mulf %171, %170 : vector<8x128xf32>
    %176 = arith.addf %174, %175 : vector<8x128xf32>
    %177 = math.tanh %176 : vector<8x128xf32>
    %178 = arith.mulf %173, %177 : vector<8x128xf32>
    %c4_i32 = arith.constant 4 : i32
    %179 = arith.index_cast %c4_i32 : i32 to index
    %c0_31 = arith.constant 0 : index
    %c0_32 = arith.constant 0 : index
    %180 = vector.load %arg1[%179, %c0_31, %c0_32] : memref<12x8x512xf32, #tpu.memory_space<vmem>>, vector<1x8x512xf32>
    %181 = vector.shape_cast %180 : vector<1x8x512xf32> to vector<8x512xf32>
    %182 = arith.truncf %157 : vector<8x128xf32> to vector<8x128xbf16>
    %cst_33 = arith.constant dense<0.000000e+00> : vector<8x512xf32>
    %183 = tpu.matmul %182, %0, %cst_33 {dimension_numbers = #tpu.dot_dimension_numbers<[1], [0], [0], [1], [0, 0, 1, 1], [], []>} : vector<8x128xbf16>, vector<128x512xbf16>, vector<8x512xf32> -> vector<8x512xf32>
    %184 = arith.addf %181, %183 : vector<8x512xf32>
    %185 = vector.extract_strided_slice %184 {offsets = [0, 0], sizes = [8, 384], strides = [1, 1]} : vector<8x512xf32> to vector<8x384xf32>
    %186 = arith.negf %185 : vector<8x384xf32>
    %187 = math.exp %186 : vector<8x384xf32>
    %cst_34 = arith.constant 1.000000e+00 : f32
    %188 = vector.broadcast %cst_34 : f32 to vector<8x384xf32>
    %189 = arith.addf %188, %187 : vector<8x384xf32>
    %190 = arith.divf %188, %189 : vector<8x384xf32>
    %191 = vector.extract_strided_slice %184 {offsets = [0, 384], sizes = [8, 128], strides = [1, 1]} : vector<8x512xf32> to vector<8x128xf32>
    %192 = math.tanh %191 : vector<8x128xf32>
    %193 = vector.extract_strided_slice %190 {offsets = [0, 0], sizes = [8, 128], strides = [1, 1]} : vector<8x384xf32> to vector<8x128xf32>
    %194 = vector.extract_strided_slice %190 {offsets = [0, 128], sizes = [8, 128], strides = [1, 1]} : vector<8x384xf32> to vector<8x128xf32>
    %195 = vector.extract_strided_slice %190 {offsets = [0, 256], sizes = [8, 128], strides = [1, 1]} : vector<8x384xf32> to vector<8x128xf32>
    %196 = arith.mulf %194, %155 : vector<8x128xf32>
    %197 = arith.mulf %193, %192 : vector<8x128xf32>
    %198 = arith.addf %196, %197 : vector<8x128xf32>
    %199 = math.tanh %198 : vector<8x128xf32>
    %200 = arith.mulf %195, %199 : vector<8x128xf32>
    %201 = arith.truncf %200 : vector<8x128xf32> to vector<8x128xbf16>
    %202 = arith.truncf %178 : vector<8x128xf32> to vector<8x128xbf16>
    %203 = tpu.concatenate %201, %202 in 1 : vector<8x128xbf16>, vector<8x128xbf16> -> vector<8x256xbf16>
    %cst_35 = arith.constant dense<0.000000e+00> : vector<8x512xf32>
    %204 = tpu.matmul %203, %1, %cst_35 {dimension_numbers = #tpu.dot_dimension_numbers<[1], [0], [0], [1], [0, 0, 1, 1], [], []>} : vector<8x256xbf16>, vector<256x512xbf16>, vector<8x512xf32> -> vector<8x512xf32>
    %205 = arith.addf %204, %5 : vector<8x512xf32>
    %206 = vector.extract_strided_slice %205 {offsets = [0, 0], sizes = [8, 384], strides = [1, 1]} : vector<8x512xf32> to vector<8x384xf32>
    %207 = arith.negf %206 : vector<8x384xf32>
    %208 = math.exp %207 : vector<8x384xf32>
    %cst_36 = arith.constant 1.000000e+00 : f32
    %209 = vector.broadcast %cst_36 : f32 to vector<8x384xf32>
    %210 = arith.addf %209, %208 : vector<8x384xf32>
    %211 = arith.divf %209, %210 : vector<8x384xf32>
    %212 = vector.extract_strided_slice %205 {offsets = [0, 384], sizes = [8, 128], strides = [1, 1]} : vector<8x512xf32> to vector<8x128xf32>
    %213 = math.tanh %212 : vector<8x128xf32>
    %214 = vector.extract_strided_slice %211 {offsets = [0, 0], sizes = [8, 128], strides = [1, 1]} : vector<8x384xf32> to vector<8x128xf32>
    %215 = vector.extract_strided_slice %211 {offsets = [0, 128], sizes = [8, 128], strides = [1, 1]} : vector<8x384xf32> to vector<8x128xf32>
    %216 = vector.extract_strided_slice %211 {offsets = [0, 256], sizes = [8, 128], strides = [1, 1]} : vector<8x384xf32> to vector<8x128xf32>
    %217 = arith.mulf %215, %176 : vector<8x128xf32>
    %218 = arith.mulf %214, %213 : vector<8x128xf32>
    %219 = arith.addf %217, %218 : vector<8x128xf32>
    %220 = math.tanh %219 : vector<8x128xf32>
    %221 = arith.mulf %216, %220 : vector<8x128xf32>
    %c5_i32 = arith.constant 5 : i32
    %222 = arith.index_cast %c5_i32 : i32 to index
    %c0_37 = arith.constant 0 : index
    %c0_38 = arith.constant 0 : index
    %223 = vector.load %arg1[%222, %c0_37, %c0_38] : memref<12x8x512xf32, #tpu.memory_space<vmem>>, vector<1x8x512xf32>
    %224 = vector.shape_cast %223 : vector<1x8x512xf32> to vector<8x512xf32>
    %225 = arith.truncf %200 : vector<8x128xf32> to vector<8x128xbf16>
    %cst_39 = arith.constant dense<0.000000e+00> : vector<8x512xf32>
    %226 = tpu.matmul %225, %0, %cst_39 {dimension_numbers = #tpu.dot_dimension_numbers<[1], [0], [0], [1], [0, 0, 1, 1], [], []>} : vector<8x128xbf16>, vector<128x512xbf16>, vector<8x512xf32> -> vector<8x512xf32>
    %227 = arith.addf %224, %226 : vector<8x512xf32>
    %228 = vector.extract_strided_slice %227 {offsets = [0, 0], sizes = [8, 384], strides = [1, 1]} : vector<8x512xf32> to vector<8x384xf32>
    %229 = arith.negf %228 : vector<8x384xf32>
    %230 = math.exp %229 : vector<8x384xf32>
    %cst_40 = arith.constant 1.000000e+00 : f32
    %231 = vector.broadcast %cst_40 : f32 to vector<8x384xf32>
    %232 = arith.addf %231, %230 : vector<8x384xf32>
    %233 = arith.divf %231, %232 : vector<8x384xf32>
    %234 = vector.extract_strided_slice %227 {offsets = [0, 384], sizes = [8, 128], strides = [1, 1]} : vector<8x512xf32> to vector<8x128xf32>
    %235 = math.tanh %234 : vector<8x128xf32>
    %236 = vector.extract_strided_slice %233 {offsets = [0, 0], sizes = [8, 128], strides = [1, 1]} : vector<8x384xf32> to vector<8x128xf32>
    %237 = vector.extract_strided_slice %233 {offsets = [0, 128], sizes = [8, 128], strides = [1, 1]} : vector<8x384xf32> to vector<8x128xf32>
    %238 = vector.extract_strided_slice %233 {offsets = [0, 256], sizes = [8, 128], strides = [1, 1]} : vector<8x384xf32> to vector<8x128xf32>
    %239 = arith.mulf %237, %198 : vector<8x128xf32>
    %240 = arith.mulf %236, %235 : vector<8x128xf32>
    %241 = arith.addf %239, %240 : vector<8x128xf32>
    %242 = math.tanh %241 : vector<8x128xf32>
    %243 = arith.mulf %238, %242 : vector<8x128xf32>
    %244 = arith.truncf %243 : vector<8x128xf32> to vector<8x128xbf16>
    %245 = arith.truncf %221 : vector<8x128xf32> to vector<8x128xbf16>
    %246 = tpu.concatenate %244, %245 in 1 : vector<8x128xbf16>, vector<8x128xbf16> -> vector<8x256xbf16>
    %cst_41 = arith.constant dense<0.000000e+00> : vector<8x512xf32>
    %247 = tpu.matmul %246, %1, %cst_41 {dimension_numbers = #tpu.dot_dimension_numbers<[1], [0], [0], [1], [0, 0, 1, 1], [], []>} : vector<8x256xbf16>, vector<256x512xbf16>, vector<8x512xf32> -> vector<8x512xf32>
    %248 = arith.addf %247, %5 : vector<8x512xf32>
    %249 = vector.extract_strided_slice %248 {offsets = [0, 0], sizes = [8, 384], strides = [1, 1]} : vector<8x512xf32> to vector<8x384xf32>
    %250 = arith.negf %249 : vector<8x384xf32>
    %251 = math.exp %250 : vector<8x384xf32>
    %cst_42 = arith.constant 1.000000e+00 : f32
    %252 = vector.broadcast %cst_42 : f32 to vector<8x384xf32>
    %253 = arith.addf %252, %251 : vector<8x384xf32>
    %254 = arith.divf %252, %253 : vector<8x384xf32>
    %255 = vector.extract_strided_slice %248 {offsets = [0, 384], sizes = [8, 128], strides = [1, 1]} : vector<8x512xf32> to vector<8x128xf32>
    %256 = math.tanh %255 : vector<8x128xf32>
    %257 = vector.extract_strided_slice %254 {offsets = [0, 0], sizes = [8, 128], strides = [1, 1]} : vector<8x384xf32> to vector<8x128xf32>
    %258 = vector.extract_strided_slice %254 {offsets = [0, 128], sizes = [8, 128], strides = [1, 1]} : vector<8x384xf32> to vector<8x128xf32>
    %259 = vector.extract_strided_slice %254 {offsets = [0, 256], sizes = [8, 128], strides = [1, 1]} : vector<8x384xf32> to vector<8x128xf32>
    %260 = arith.mulf %258, %219 : vector<8x128xf32>
    %261 = arith.mulf %257, %256 : vector<8x128xf32>
    %262 = arith.addf %260, %261 : vector<8x128xf32>
    %263 = math.tanh %262 : vector<8x128xf32>
    %264 = arith.mulf %259, %263 : vector<8x128xf32>
    %c6_i32 = arith.constant 6 : i32
    %265 = arith.index_cast %c6_i32 : i32 to index
    %c0_43 = arith.constant 0 : index
    %c0_44 = arith.constant 0 : index
    %266 = vector.load %arg1[%265, %c0_43, %c0_44] : memref<12x8x512xf32, #tpu.memory_space<vmem>>, vector<1x8x512xf32>
    %267 = vector.shape_cast %266 : vector<1x8x512xf32> to vector<8x512xf32>
    %268 = arith.truncf %243 : vector<8x128xf32> to vector<8x128xbf16>
    %cst_45 = arith.constant dense<0.000000e+00> : vector<8x512xf32>
    %269 = tpu.matmul %268, %0, %cst_45 {dimension_numbers = #tpu.dot_dimension_numbers<[1], [0], [0], [1], [0, 0, 1, 1], [], []>} : vector<8x128xbf16>, vector<128x512xbf16>, vector<8x512xf32> -> vector<8x512xf32>
    %270 = arith.addf %267, %269 : vector<8x512xf32>
    %271 = vector.extract_strided_slice %270 {offsets = [0, 0], sizes = [8, 384], strides = [1, 1]} : vector<8x512xf32> to vector<8x384xf32>
    %272 = arith.negf %271 : vector<8x384xf32>
    %273 = math.exp %272 : vector<8x384xf32>
    %cst_46 = arith.constant 1.000000e+00 : f32
    %274 = vector.broadcast %cst_46 : f32 to vector<8x384xf32>
    %275 = arith.addf %274, %273 : vector<8x384xf32>
    %276 = arith.divf %274, %275 : vector<8x384xf32>
    %277 = vector.extract_strided_slice %270 {offsets = [0, 384], sizes = [8, 128], strides = [1, 1]} : vector<8x512xf32> to vector<8x128xf32>
    %278 = math.tanh %277 : vector<8x128xf32>
    %279 = vector.extract_strided_slice %276 {offsets = [0, 0], sizes = [8, 128], strides = [1, 1]} : vector<8x384xf32> to vector<8x128xf32>
    %280 = vector.extract_strided_slice %276 {offsets = [0, 128], sizes = [8, 128], strides = [1, 1]} : vector<8x384xf32> to vector<8x128xf32>
    %281 = vector.extract_strided_slice %276 {offsets = [0, 256], sizes = [8, 128], strides = [1, 1]} : vector<8x384xf32> to vector<8x128xf32>
    %282 = arith.mulf %280, %241 : vector<8x128xf32>
    %283 = arith.mulf %279, %278 : vector<8x128xf32>
    %284 = arith.addf %282, %283 : vector<8x128xf32>
    %285 = math.tanh %284 : vector<8x128xf32>
    %286 = arith.mulf %281, %285 : vector<8x128xf32>
    %287 = arith.truncf %286 : vector<8x128xf32> to vector<8x128xbf16>
    %288 = arith.truncf %264 : vector<8x128xf32> to vector<8x128xbf16>
    %289 = tpu.concatenate %287, %288 in 1 : vector<8x128xbf16>, vector<8x128xbf16> -> vector<8x256xbf16>
    %cst_47 = arith.constant dense<0.000000e+00> : vector<8x512xf32>
    %290 = tpu.matmul %289, %1, %cst_47 {dimension_numbers = #tpu.dot_dimension_numbers<[1], [0], [0], [1], [0, 0, 1, 1], [], []>} : vector<8x256xbf16>, vector<256x512xbf16>, vector<8x512xf32> -> vector<8x512xf32>
    %291 = arith.addf %290, %5 : vector<8x512xf32>
    %292 = vector.extract_strided_slice %291 {offsets = [0, 0], sizes = [8, 384], strides = [1, 1]} : vector<8x512xf32> to vector<8x384xf32>
    %293 = arith.negf %292 : vector<8x384xf32>
    %294 = math.exp %293 : vector<8x384xf32>
    %cst_48 = arith.constant 1.000000e+00 : f32
    %295 = vector.broadcast %cst_48 : f32 to vector<8x384xf32>
    %296 = arith.addf %295, %294 : vector<8x384xf32>
    %297 = arith.divf %295, %296 : vector<8x384xf32>
    %298 = vector.extract_strided_slice %291 {offsets = [0, 384], sizes = [8, 128], strides = [1, 1]} : vector<8x512xf32> to vector<8x128xf32>
    %299 = math.tanh %298 : vector<8x128xf32>
    %300 = vector.extract_strided_slice %297 {offsets = [0, 0], sizes = [8, 128], strides = [1, 1]} : vector<8x384xf32> to vector<8x128xf32>
    %301 = vector.extract_strided_slice %297 {offsets = [0, 128], sizes = [8, 128], strides = [1, 1]} : vector<8x384xf32> to vector<8x128xf32>
    %302 = vector.extract_strided_slice %297 {offsets = [0, 256], sizes = [8, 128], strides = [1, 1]} : vector<8x384xf32> to vector<8x128xf32>
    %303 = arith.mulf %301, %262 : vector<8x128xf32>
    %304 = arith.mulf %300, %299 : vector<8x128xf32>
    %305 = arith.addf %303, %304 : vector<8x128xf32>
    %306 = math.tanh %305 : vector<8x128xf32>
    %307 = arith.mulf %302, %306 : vector<8x128xf32>
    %c7_i32 = arith.constant 7 : i32
    %308 = arith.index_cast %c7_i32 : i32 to index
    %c0_49 = arith.constant 0 : index
    %c0_50 = arith.constant 0 : index
    %309 = vector.load %arg1[%308, %c0_49, %c0_50] : memref<12x8x512xf32, #tpu.memory_space<vmem>>, vector<1x8x512xf32>
    %310 = vector.shape_cast %309 : vector<1x8x512xf32> to vector<8x512xf32>
    %311 = arith.truncf %286 : vector<8x128xf32> to vector<8x128xbf16>
    %cst_51 = arith.constant dense<0.000000e+00> : vector<8x512xf32>
    %312 = tpu.matmul %311, %0, %cst_51 {dimension_numbers = #tpu.dot_dimension_numbers<[1], [0], [0], [1], [0, 0, 1, 1], [], []>} : vector<8x128xbf16>, vector<128x512xbf16>, vector<8x512xf32> -> vector<8x512xf32>
    %313 = arith.addf %310, %312 : vector<8x512xf32>
    %314 = vector.extract_strided_slice %313 {offsets = [0, 0], sizes = [8, 384], strides = [1, 1]} : vector<8x512xf32> to vector<8x384xf32>
    %315 = arith.negf %314 : vector<8x384xf32>
    %316 = math.exp %315 : vector<8x384xf32>
    %cst_52 = arith.constant 1.000000e+00 : f32
    %317 = vector.broadcast %cst_52 : f32 to vector<8x384xf32>
    %318 = arith.addf %317, %316 : vector<8x384xf32>
    %319 = arith.divf %317, %318 : vector<8x384xf32>
    %320 = vector.extract_strided_slice %313 {offsets = [0, 384], sizes = [8, 128], strides = [1, 1]} : vector<8x512xf32> to vector<8x128xf32>
    %321 = math.tanh %320 : vector<8x128xf32>
    %322 = vector.extract_strided_slice %319 {offsets = [0, 0], sizes = [8, 128], strides = [1, 1]} : vector<8x384xf32> to vector<8x128xf32>
    %323 = vector.extract_strided_slice %319 {offsets = [0, 128], sizes = [8, 128], strides = [1, 1]} : vector<8x384xf32> to vector<8x128xf32>
    %324 = vector.extract_strided_slice %319 {offsets = [0, 256], sizes = [8, 128], strides = [1, 1]} : vector<8x384xf32> to vector<8x128xf32>
    %325 = arith.mulf %323, %284 : vector<8x128xf32>
    %326 = arith.mulf %322, %321 : vector<8x128xf32>
    %327 = arith.addf %325, %326 : vector<8x128xf32>
    %328 = math.tanh %327 : vector<8x128xf32>
    %329 = arith.mulf %324, %328 : vector<8x128xf32>
    %330 = arith.truncf %329 : vector<8x128xf32> to vector<8x128xbf16>
    %331 = arith.truncf %307 : vector<8x128xf32> to vector<8x128xbf16>
    %332 = tpu.concatenate %330, %331 in 1 : vector<8x128xbf16>, vector<8x128xbf16> -> vector<8x256xbf16>
    %cst_53 = arith.constant dense<0.000000e+00> : vector<8x512xf32>
    %333 = tpu.matmul %332, %1, %cst_53 {dimension_numbers = #tpu.dot_dimension_numbers<[1], [0], [0], [1], [0, 0, 1, 1], [], []>} : vector<8x256xbf16>, vector<256x512xbf16>, vector<8x512xf32> -> vector<8x512xf32>
    %334 = arith.addf %333, %5 : vector<8x512xf32>
    %335 = vector.extract_strided_slice %334 {offsets = [0, 0], sizes = [8, 384], strides = [1, 1]} : vector<8x512xf32> to vector<8x384xf32>
    %336 = arith.negf %335 : vector<8x384xf32>
    %337 = math.exp %336 : vector<8x384xf32>
    %cst_54 = arith.constant 1.000000e+00 : f32
    %338 = vector.broadcast %cst_54 : f32 to vector<8x384xf32>
    %339 = arith.addf %338, %337 : vector<8x384xf32>
    %340 = arith.divf %338, %339 : vector<8x384xf32>
    %341 = vector.extract_strided_slice %334 {offsets = [0, 384], sizes = [8, 128], strides = [1, 1]} : vector<8x512xf32> to vector<8x128xf32>
    %342 = math.tanh %341 : vector<8x128xf32>
    %343 = vector.extract_strided_slice %340 {offsets = [0, 0], sizes = [8, 128], strides = [1, 1]} : vector<8x384xf32> to vector<8x128xf32>
    %344 = vector.extract_strided_slice %340 {offsets = [0, 128], sizes = [8, 128], strides = [1, 1]} : vector<8x384xf32> to vector<8x128xf32>
    %345 = vector.extract_strided_slice %340 {offsets = [0, 256], sizes = [8, 128], strides = [1, 1]} : vector<8x384xf32> to vector<8x128xf32>
    %346 = arith.mulf %344, %305 : vector<8x128xf32>
    %347 = arith.mulf %343, %342 : vector<8x128xf32>
    %348 = arith.addf %346, %347 : vector<8x128xf32>
    %349 = math.tanh %348 : vector<8x128xf32>
    %350 = arith.mulf %345, %349 : vector<8x128xf32>
    %c8_i32 = arith.constant 8 : i32
    %351 = arith.index_cast %c8_i32 : i32 to index
    %c0_55 = arith.constant 0 : index
    %c0_56 = arith.constant 0 : index
    %352 = vector.load %arg1[%351, %c0_55, %c0_56] : memref<12x8x512xf32, #tpu.memory_space<vmem>>, vector<1x8x512xf32>
    %353 = vector.shape_cast %352 : vector<1x8x512xf32> to vector<8x512xf32>
    %354 = arith.truncf %329 : vector<8x128xf32> to vector<8x128xbf16>
    %cst_57 = arith.constant dense<0.000000e+00> : vector<8x512xf32>
    %355 = tpu.matmul %354, %0, %cst_57 {dimension_numbers = #tpu.dot_dimension_numbers<[1], [0], [0], [1], [0, 0, 1, 1], [], []>} : vector<8x128xbf16>, vector<128x512xbf16>, vector<8x512xf32> -> vector<8x512xf32>
    %356 = arith.addf %353, %355 : vector<8x512xf32>
    %357 = vector.extract_strided_slice %356 {offsets = [0, 0], sizes = [8, 384], strides = [1, 1]} : vector<8x512xf32> to vector<8x384xf32>
    %358 = arith.negf %357 : vector<8x384xf32>
    %359 = math.exp %358 : vector<8x384xf32>
    %cst_58 = arith.constant 1.000000e+00 : f32
    %360 = vector.broadcast %cst_58 : f32 to vector<8x384xf32>
    %361 = arith.addf %360, %359 : vector<8x384xf32>
    %362 = arith.divf %360, %361 : vector<8x384xf32>
    %363 = vector.extract_strided_slice %356 {offsets = [0, 384], sizes = [8, 128], strides = [1, 1]} : vector<8x512xf32> to vector<8x128xf32>
    %364 = math.tanh %363 : vector<8x128xf32>
    %365 = vector.extract_strided_slice %362 {offsets = [0, 0], sizes = [8, 128], strides = [1, 1]} : vector<8x384xf32> to vector<8x128xf32>
    %366 = vector.extract_strided_slice %362 {offsets = [0, 128], sizes = [8, 128], strides = [1, 1]} : vector<8x384xf32> to vector<8x128xf32>
    %367 = vector.extract_strided_slice %362 {offsets = [0, 256], sizes = [8, 128], strides = [1, 1]} : vector<8x384xf32> to vector<8x128xf32>
    %368 = arith.mulf %366, %327 : vector<8x128xf32>
    %369 = arith.mulf %365, %364 : vector<8x128xf32>
    %370 = arith.addf %368, %369 : vector<8x128xf32>
    %371 = math.tanh %370 : vector<8x128xf32>
    %372 = arith.mulf %367, %371 : vector<8x128xf32>
    %373 = arith.truncf %372 : vector<8x128xf32> to vector<8x128xbf16>
    %374 = arith.truncf %350 : vector<8x128xf32> to vector<8x128xbf16>
    %375 = tpu.concatenate %373, %374 in 1 : vector<8x128xbf16>, vector<8x128xbf16> -> vector<8x256xbf16>
    %cst_59 = arith.constant dense<0.000000e+00> : vector<8x512xf32>
    %376 = tpu.matmul %375, %1, %cst_59 {dimension_numbers = #tpu.dot_dimension_numbers<[1], [0], [0], [1], [0, 0, 1, 1], [], []>} : vector<8x256xbf16>, vector<256x512xbf16>, vector<8x512xf32> -> vector<8x512xf32>
    %377 = arith.addf %376, %5 : vector<8x512xf32>
    %378 = vector.extract_strided_slice %377 {offsets = [0, 0], sizes = [8, 384], strides = [1, 1]} : vector<8x512xf32> to vector<8x384xf32>
    %379 = arith.negf %378 : vector<8x384xf32>
    %380 = math.exp %379 : vector<8x384xf32>
    %cst_60 = arith.constant 1.000000e+00 : f32
    %381 = vector.broadcast %cst_60 : f32 to vector<8x384xf32>
    %382 = arith.addf %381, %380 : vector<8x384xf32>
    %383 = arith.divf %381, %382 : vector<8x384xf32>
    %384 = vector.extract_strided_slice %377 {offsets = [0, 384], sizes = [8, 128], strides = [1, 1]} : vector<8x512xf32> to vector<8x128xf32>
    %385 = math.tanh %384 : vector<8x128xf32>
    %386 = vector.extract_strided_slice %383 {offsets = [0, 0], sizes = [8, 128], strides = [1, 1]} : vector<8x384xf32> to vector<8x128xf32>
    %387 = vector.extract_strided_slice %383 {offsets = [0, 128], sizes = [8, 128], strides = [1, 1]} : vector<8x384xf32> to vector<8x128xf32>
    %388 = vector.extract_strided_slice %383 {offsets = [0, 256], sizes = [8, 128], strides = [1, 1]} : vector<8x384xf32> to vector<8x128xf32>
    %389 = arith.mulf %387, %348 : vector<8x128xf32>
    %390 = arith.mulf %386, %385 : vector<8x128xf32>
    %391 = arith.addf %389, %390 : vector<8x128xf32>
    %392 = math.tanh %391 : vector<8x128xf32>
    %393 = arith.mulf %388, %392 : vector<8x128xf32>
    %c9_i32 = arith.constant 9 : i32
    %394 = arith.index_cast %c9_i32 : i32 to index
    %c0_61 = arith.constant 0 : index
    %c0_62 = arith.constant 0 : index
    %395 = vector.load %arg1[%394, %c0_61, %c0_62] : memref<12x8x512xf32, #tpu.memory_space<vmem>>, vector<1x8x512xf32>
    %396 = vector.shape_cast %395 : vector<1x8x512xf32> to vector<8x512xf32>
    %397 = arith.truncf %372 : vector<8x128xf32> to vector<8x128xbf16>
    %cst_63 = arith.constant dense<0.000000e+00> : vector<8x512xf32>
    %398 = tpu.matmul %397, %0, %cst_63 {dimension_numbers = #tpu.dot_dimension_numbers<[1], [0], [0], [1], [0, 0, 1, 1], [], []>} : vector<8x128xbf16>, vector<128x512xbf16>, vector<8x512xf32> -> vector<8x512xf32>
    %399 = arith.addf %396, %398 : vector<8x512xf32>
    %400 = vector.extract_strided_slice %399 {offsets = [0, 0], sizes = [8, 384], strides = [1, 1]} : vector<8x512xf32> to vector<8x384xf32>
    %401 = arith.negf %400 : vector<8x384xf32>
    %402 = math.exp %401 : vector<8x384xf32>
    %cst_64 = arith.constant 1.000000e+00 : f32
    %403 = vector.broadcast %cst_64 : f32 to vector<8x384xf32>
    %404 = arith.addf %403, %402 : vector<8x384xf32>
    %405 = arith.divf %403, %404 : vector<8x384xf32>
    %406 = vector.extract_strided_slice %399 {offsets = [0, 384], sizes = [8, 128], strides = [1, 1]} : vector<8x512xf32> to vector<8x128xf32>
    %407 = math.tanh %406 : vector<8x128xf32>
    %408 = vector.extract_strided_slice %405 {offsets = [0, 0], sizes = [8, 128], strides = [1, 1]} : vector<8x384xf32> to vector<8x128xf32>
    %409 = vector.extract_strided_slice %405 {offsets = [0, 128], sizes = [8, 128], strides = [1, 1]} : vector<8x384xf32> to vector<8x128xf32>
    %410 = vector.extract_strided_slice %405 {offsets = [0, 256], sizes = [8, 128], strides = [1, 1]} : vector<8x384xf32> to vector<8x128xf32>
    %411 = arith.mulf %409, %370 : vector<8x128xf32>
    %412 = arith.mulf %408, %407 : vector<8x128xf32>
    %413 = arith.addf %411, %412 : vector<8x128xf32>
    %414 = math.tanh %413 : vector<8x128xf32>
    %415 = arith.mulf %410, %414 : vector<8x128xf32>
    %416 = arith.truncf %415 : vector<8x128xf32> to vector<8x128xbf16>
    %417 = arith.truncf %393 : vector<8x128xf32> to vector<8x128xbf16>
    %418 = tpu.concatenate %416, %417 in 1 : vector<8x128xbf16>, vector<8x128xbf16> -> vector<8x256xbf16>
    %cst_65 = arith.constant dense<0.000000e+00> : vector<8x512xf32>
    %419 = tpu.matmul %418, %1, %cst_65 {dimension_numbers = #tpu.dot_dimension_numbers<[1], [0], [0], [1], [0, 0, 1, 1], [], []>} : vector<8x256xbf16>, vector<256x512xbf16>, vector<8x512xf32> -> vector<8x512xf32>
    %420 = arith.addf %419, %5 : vector<8x512xf32>
    %421 = vector.extract_strided_slice %420 {offsets = [0, 0], sizes = [8, 384], strides = [1, 1]} : vector<8x512xf32> to vector<8x384xf32>
    %422 = arith.negf %421 : vector<8x384xf32>
    %423 = math.exp %422 : vector<8x384xf32>
    %cst_66 = arith.constant 1.000000e+00 : f32
    %424 = vector.broadcast %cst_66 : f32 to vector<8x384xf32>
    %425 = arith.addf %424, %423 : vector<8x384xf32>
    %426 = arith.divf %424, %425 : vector<8x384xf32>
    %427 = vector.extract_strided_slice %420 {offsets = [0, 384], sizes = [8, 128], strides = [1, 1]} : vector<8x512xf32> to vector<8x128xf32>
    %428 = math.tanh %427 : vector<8x128xf32>
    %429 = vector.extract_strided_slice %426 {offsets = [0, 0], sizes = [8, 128], strides = [1, 1]} : vector<8x384xf32> to vector<8x128xf32>
    %430 = vector.extract_strided_slice %426 {offsets = [0, 128], sizes = [8, 128], strides = [1, 1]} : vector<8x384xf32> to vector<8x128xf32>
    %431 = vector.extract_strided_slice %426 {offsets = [0, 256], sizes = [8, 128], strides = [1, 1]} : vector<8x384xf32> to vector<8x128xf32>
    %432 = arith.mulf %430, %391 : vector<8x128xf32>
    %433 = arith.mulf %429, %428 : vector<8x128xf32>
    %434 = arith.addf %432, %433 : vector<8x128xf32>
    %435 = math.tanh %434 : vector<8x128xf32>
    %436 = arith.mulf %431, %435 : vector<8x128xf32>
    %c10_i32 = arith.constant 10 : i32
    %437 = arith.index_cast %c10_i32 : i32 to index
    %c0_67 = arith.constant 0 : index
    %c0_68 = arith.constant 0 : index
    %438 = vector.load %arg1[%437, %c0_67, %c0_68] : memref<12x8x512xf32, #tpu.memory_space<vmem>>, vector<1x8x512xf32>
    %439 = vector.shape_cast %438 : vector<1x8x512xf32> to vector<8x512xf32>
    %440 = arith.truncf %415 : vector<8x128xf32> to vector<8x128xbf16>
    %cst_69 = arith.constant dense<0.000000e+00> : vector<8x512xf32>
    %441 = tpu.matmul %440, %0, %cst_69 {dimension_numbers = #tpu.dot_dimension_numbers<[1], [0], [0], [1], [0, 0, 1, 1], [], []>} : vector<8x128xbf16>, vector<128x512xbf16>, vector<8x512xf32> -> vector<8x512xf32>
    %442 = arith.addf %439, %441 : vector<8x512xf32>
    %443 = vector.extract_strided_slice %442 {offsets = [0, 0], sizes = [8, 384], strides = [1, 1]} : vector<8x512xf32> to vector<8x384xf32>
    %444 = arith.negf %443 : vector<8x384xf32>
    %445 = math.exp %444 : vector<8x384xf32>
    %cst_70 = arith.constant 1.000000e+00 : f32
    %446 = vector.broadcast %cst_70 : f32 to vector<8x384xf32>
    %447 = arith.addf %446, %445 : vector<8x384xf32>
    %448 = arith.divf %446, %447 : vector<8x384xf32>
    %449 = vector.extract_strided_slice %442 {offsets = [0, 384], sizes = [8, 128], strides = [1, 1]} : vector<8x512xf32> to vector<8x128xf32>
    %450 = math.tanh %449 : vector<8x128xf32>
    %451 = vector.extract_strided_slice %448 {offsets = [0, 0], sizes = [8, 128], strides = [1, 1]} : vector<8x384xf32> to vector<8x128xf32>
    %452 = vector.extract_strided_slice %448 {offsets = [0, 128], sizes = [8, 128], strides = [1, 1]} : vector<8x384xf32> to vector<8x128xf32>
    %453 = vector.extract_strided_slice %448 {offsets = [0, 256], sizes = [8, 128], strides = [1, 1]} : vector<8x384xf32> to vector<8x128xf32>
    %454 = arith.mulf %452, %413 : vector<8x128xf32>
    %455 = arith.mulf %451, %450 : vector<8x128xf32>
    %456 = arith.addf %454, %455 : vector<8x128xf32>
    %457 = math.tanh %456 : vector<8x128xf32>
    %458 = arith.mulf %453, %457 : vector<8x128xf32>
    %459 = arith.truncf %458 : vector<8x128xf32> to vector<8x128xbf16>
    %460 = arith.truncf %436 : vector<8x128xf32> to vector<8x128xbf16>
    %461 = tpu.concatenate %459, %460 in 1 : vector<8x128xbf16>, vector<8x128xbf16> -> vector<8x256xbf16>
    %cst_71 = arith.constant dense<0.000000e+00> : vector<8x512xf32>
    %462 = tpu.matmul %461, %1, %cst_71 {dimension_numbers = #tpu.dot_dimension_numbers<[1], [0], [0], [1], [0, 0, 1, 1], [], []>} : vector<8x256xbf16>, vector<256x512xbf16>, vector<8x512xf32> -> vector<8x512xf32>
    %463 = arith.addf %462, %5 : vector<8x512xf32>
    %464 = vector.extract_strided_slice %463 {offsets = [0, 0], sizes = [8, 384], strides = [1, 1]} : vector<8x512xf32> to vector<8x384xf32>
    %465 = arith.negf %464 : vector<8x384xf32>
    %466 = math.exp %465 : vector<8x384xf32>
    %cst_72 = arith.constant 1.000000e+00 : f32
    %467 = vector.broadcast %cst_72 : f32 to vector<8x384xf32>
    %468 = arith.addf %467, %466 : vector<8x384xf32>
    %469 = arith.divf %467, %468 : vector<8x384xf32>
    %470 = vector.extract_strided_slice %463 {offsets = [0, 384], sizes = [8, 128], strides = [1, 1]} : vector<8x512xf32> to vector<8x128xf32>
    %471 = math.tanh %470 : vector<8x128xf32>
    %472 = vector.extract_strided_slice %469 {offsets = [0, 0], sizes = [8, 128], strides = [1, 1]} : vector<8x384xf32> to vector<8x128xf32>
    %473 = vector.extract_strided_slice %469 {offsets = [0, 128], sizes = [8, 128], strides = [1, 1]} : vector<8x384xf32> to vector<8x128xf32>
    %474 = vector.extract_strided_slice %469 {offsets = [0, 256], sizes = [8, 128], strides = [1, 1]} : vector<8x384xf32> to vector<8x128xf32>
    %475 = arith.mulf %473, %434 : vector<8x128xf32>
    %476 = arith.mulf %472, %471 : vector<8x128xf32>
    %477 = arith.addf %475, %476 : vector<8x128xf32>
    %478 = math.tanh %477 : vector<8x128xf32>
    %479 = arith.mulf %474, %478 : vector<8x128xf32>
    %c11_i32 = arith.constant 11 : i32
    %480 = arith.index_cast %c11_i32 : i32 to index
    %c0_73 = arith.constant 0 : index
    %c0_74 = arith.constant 0 : index
    %481 = vector.load %arg1[%480, %c0_73, %c0_74] : memref<12x8x512xf32, #tpu.memory_space<vmem>>, vector<1x8x512xf32>
    %482 = vector.shape_cast %481 : vector<1x8x512xf32> to vector<8x512xf32>
    %483 = arith.truncf %458 : vector<8x128xf32> to vector<8x128xbf16>
    %cst_75 = arith.constant dense<0.000000e+00> : vector<8x512xf32>
    %484 = tpu.matmul %483, %0, %cst_75 {dimension_numbers = #tpu.dot_dimension_numbers<[1], [0], [0], [1], [0, 0, 1, 1], [], []>} : vector<8x128xbf16>, vector<128x512xbf16>, vector<8x512xf32> -> vector<8x512xf32>
    %485 = arith.addf %482, %484 : vector<8x512xf32>
    %486 = vector.extract_strided_slice %485 {offsets = [0, 0], sizes = [8, 384], strides = [1, 1]} : vector<8x512xf32> to vector<8x384xf32>
    %487 = arith.negf %486 : vector<8x384xf32>
    %488 = math.exp %487 : vector<8x384xf32>
    %cst_76 = arith.constant 1.000000e+00 : f32
    %489 = vector.broadcast %cst_76 : f32 to vector<8x384xf32>
    %490 = arith.addf %489, %488 : vector<8x384xf32>
    %491 = arith.divf %489, %490 : vector<8x384xf32>
    %492 = vector.extract_strided_slice %485 {offsets = [0, 384], sizes = [8, 128], strides = [1, 1]} : vector<8x512xf32> to vector<8x128xf32>
    %493 = math.tanh %492 : vector<8x128xf32>
    %494 = vector.extract_strided_slice %491 {offsets = [0, 0], sizes = [8, 128], strides = [1, 1]} : vector<8x384xf32> to vector<8x128xf32>
    %495 = vector.extract_strided_slice %491 {offsets = [0, 128], sizes = [8, 128], strides = [1, 1]} : vector<8x384xf32> to vector<8x128xf32>
    %496 = vector.extract_strided_slice %491 {offsets = [0, 256], sizes = [8, 128], strides = [1, 1]} : vector<8x384xf32> to vector<8x128xf32>
    %497 = arith.mulf %495, %456 : vector<8x128xf32>
    %498 = arith.mulf %494, %493 : vector<8x128xf32>
    %499 = arith.addf %497, %498 : vector<8x128xf32>
    %500 = math.tanh %499 : vector<8x128xf32>
    %501 = arith.mulf %496, %500 : vector<8x128xf32>
    %502 = arith.truncf %501 : vector<8x128xf32> to vector<8x128xbf16>
    %503 = arith.truncf %479 : vector<8x128xf32> to vector<8x128xbf16>
    %504 = tpu.concatenate %502, %503 in 1 : vector<8x128xbf16>, vector<8x128xbf16> -> vector<8x256xbf16>
    %cst_77 = arith.constant dense<0.000000e+00> : vector<8x512xf32>
    %505 = tpu.matmul %504, %1, %cst_77 {dimension_numbers = #tpu.dot_dimension_numbers<[1], [0], [0], [1], [0, 0, 1, 1], [], []>} : vector<8x256xbf16>, vector<256x512xbf16>, vector<8x512xf32> -> vector<8x512xf32>
    %506 = arith.addf %505, %5 : vector<8x512xf32>
    %507 = vector.extract_strided_slice %506 {offsets = [0, 0], sizes = [8, 384], strides = [1, 1]} : vector<8x512xf32> to vector<8x384xf32>
    %508 = arith.negf %507 : vector<8x384xf32>
    %509 = math.exp %508 : vector<8x384xf32>
    %cst_78 = arith.constant 1.000000e+00 : f32
    %510 = vector.broadcast %cst_78 : f32 to vector<8x384xf32>
    %511 = arith.addf %510, %509 : vector<8x384xf32>
    %512 = arith.divf %510, %511 : vector<8x384xf32>
    %513 = vector.extract_strided_slice %506 {offsets = [0, 384], sizes = [8, 128], strides = [1, 1]} : vector<8x512xf32> to vector<8x128xf32>
    %514 = math.tanh %513 : vector<8x128xf32>
    %515 = vector.extract_strided_slice %512 {offsets = [0, 0], sizes = [8, 128], strides = [1, 1]} : vector<8x384xf32> to vector<8x128xf32>
    %516 = vector.extract_strided_slice %512 {offsets = [0, 128], sizes = [8, 128], strides = [1, 1]} : vector<8x384xf32> to vector<8x128xf32>
    %517 = vector.extract_strided_slice %512 {offsets = [0, 256], sizes = [8, 128], strides = [1, 1]} : vector<8x384xf32> to vector<8x128xf32>
    %518 = arith.mulf %516, %477 : vector<8x128xf32>
    %519 = arith.mulf %515, %514 : vector<8x128xf32>
    %520 = arith.addf %518, %519 : vector<8x128xf32>
    %521 = math.tanh %520 : vector<8x128xf32>
    %522 = arith.mulf %517, %521 : vector<8x128xf32>
    %c12_i32 = arith.constant 12 : i32
    %523 = arith.truncf %522 : vector<8x128xf32> to vector<8x128xbf16>
    %cst_79 = arith.constant dense<0.000000e+00> : vector<8x128xf32>
    %524 = tpu.matmul %523, %2, %cst_79 {dimension_numbers = #tpu.dot_dimension_numbers<[1], [0], [0], [1], [0, 0, 1, 1], [], []>} : vector<8x128xbf16>, vector<128x128xbf16>, vector<8x128xf32> -> vector<8x128xf32>
    %c0_80 = arith.constant 0 : index
    %c0_81 = arith.constant 0 : index
    %525 = vector.load %arg6[%c0_80, %c0_81] : memref<1x128xf32, #tpu.memory_space<vmem>>, vector<1x128xf32>
    %526 = vector.broadcast %525 : vector<1x128xf32> to vector<8x128xf32>
    %527 = arith.addf %524, %526 : vector<8x128xf32>
    %c0_82 = arith.constant 0 : index
    %c0_83 = arith.constant 0 : index
    %528 = vector.load %arg7[%c0_82, %c0_83] : memref<8x128xf32, #tpu.memory_space<vmem>>, vector<8x128xf32>
    tpu.vector_store %arg7[%c0_82, %c0_83], %527 {strides = array<i32>} : memref<8x128xf32, #tpu.memory_space<vmem>>, vector<8x128xf32>,
    return
  }
  func.func @transform_0(%arg0: i32) -> (i32, i32, i32) {
    %c0_i32 = arith.constant 0 : i32
    %c0_i32_0 = arith.constant 0 : i32
    %c0_i32_1 = arith.constant 0 : i32
    return %c0_i32, %arg0, %c0_i32_0 : i32, i32, i32
  }
  func.func @transform_1(%arg0: i32) -> (i32, i32) {
    %c0_i32 = arith.constant 0 : i32
    %c0_i32_0 = arith.constant 0 : i32
    %c0_i32_1 = arith.constant 0 : i32
    return %c0_i32, %c0_i32_0 : i32, i32
  }
  func.func @transform_2(%arg0: i32) -> (i32, i32) {
    %c0_i32 = arith.constant 0 : i32
    %c0_i32_0 = arith.constant 0 : i32
    %c0_i32_1 = arith.constant 0 : i32
    return %c0_i32, %c0_i32_0 : i32, i32
  }
  func.func @transform_3(%arg0: i32) -> (i32, i32) {
    %c0_i32 = arith.constant 0 : i32
    %c0_i32_0 = arith.constant 0 : i32
    %c0_i32_1 = arith.constant 0 : i32
    return %c0_i32, %c0_i32_0 : i32, i32
  }
  func.func @transform_4(%arg0: i32) -> (i32, i32) {
    %c0_i32 = arith.constant 0 : i32
    %c0_i32_0 = arith.constant 0 : i32
    %c0_i32_1 = arith.constant 0 : i32
    return %c0_i32, %c0_i32_0 : i32, i32
  }
  func.func @transform_5(%arg0: i32) -> (i32, i32) {
    %c0_i32 = arith.constant 0 : i32
    %c0_i32_0 = arith.constant 0 : i32
    %c0_i32_1 = arith.constant 0 : i32
    return %c0_i32, %c0_i32_0 : i32, i32
  }
  func.func @transform_6(%arg0: i32) -> (i32, i32) {
    %c0_i32 = arith.constant 0 : i32
    %c0_i32_0 = arith.constant 0 : i32
    return %arg0, %c0_i32 : i32, i32
  }
}

</mosaic_0001>

<llo_original>
// kernel: lstm_model_forward.1
$region0: #{lstm_model_forward.1}
  #allocation0 [shape = 'u32[]', space=smem, size = 0x4, offset = 0x4, fixed_abs, tag = 'smem constant byte address 0x4 - core index']
  #allocation1 [shape = 'u32[144,128]{1,0:T(1,128)}', space=vmem, size = 0x12000, scoped, tag = 'internal scratch']
  %s0 = inlined_call_operand.vmem [shape: f32[12,8,512], index: 0, kind: input, shape index: {}]
  %s1 = inlined_call_operand.hbm [shape: bf16[128,512], index: 1, kind: input, shape index: {}]
  %s2 = inlined_call_operand.vmem [shape: bf16[256,512], index: 2, kind: input, shape index: {}]
  %s3 = inlined_call_operand.vmem [shape: f32[1,512], index: 3, kind: input, shape index: {}]
  %s4 = inlined_call_operand.hbm [shape: bf16[128,128], index: 4, kind: input, shape index: {}]
  %s5 = inlined_call_operand.vmem [shape: f32[1,128], index: 5, kind: input, shape index: {}]
  %s6 = inlined_call_operand.hbm [shape: f32[8,128], index: 6, kind: output, shape index: {}]
  %s7 = sld [smem:[#allocation0]]
  $region42: #{lstm_model_forward.1} parent=0
    _
  %s9 = ssub.s32 1, %s7
  %s10 = scalar_select 0, %s9, %s7
  $region1: #{lstm_model_forward.1} parent=0
    #allocation2 [shape = 'u8[131072]{0}', space=vmem, size = 0x20000, scoped, tag = 'input window, operand 1, single buffered']
    #allocation3 [shape = 's32[1]{0}', space=sflag, size = 0x4, scoped, tag = 'scoped memory for lstm_model_forward.1']
    #allocation4 [shape = 's32[1]{0}', space=sflag, size = 0x4, scoped, tag = 'scoped memory for lstm_model_forward.1']
    #allocation5 [shape = 'u8[32768]{0}', space=vmem, size = 0x8000, scoped, tag = 'input window, operand 4, single buffered']
    #allocation6 [shape = 's32[1]{0}', space=sflag, size = 0x4, scoped, tag = 'scoped memory for lstm_model_forward.1']
    #allocation7 [shape = 'u8[4096]{0}', space=vmem, size = 0x1000, scoped, tag = 'output window, operand 0, single buffered']
    %11 = vsyncpa [#allocation3], 0
    %12 = vsyncpa [#allocation6], 0
    %13 = vsyncpa [#allocation4], 0
    // Predicated region
    $region2: #{lstm_model_forward.1} parent=1 // pred_check
      _
    $region3: #{lstm_model_forward.1} parent=1 // pred_check_branch
      %15 = sbr.rel (0) target = $region5
    $region4: #{lstm_model_forward.1} parent=1 // pred_region
      _
    $region5: #{lstm_model_forward.1} parent=1 // pred_fallthru
      _
    // Predicated region
    $region6: #{lstm_model_forward.1} parent=1 // pred_check
      _
    $region7: #{lstm_model_forward.1} parent=1 // pred_check_branch
      %17 = sbr.rel (0) target = $region9
    $region8: #{lstm_model_forward.1} parent=1 // pred_region
      %s19 = ssub.s32 4096, 4096
      %20 = vsyncadd [#allocation3], %s19
      %s21 = sshll.u32 [#allocation2], 4
      %s22 = int_to_ptr.vmem [resolvable:$true] %s21
      %27 = dma.hbm_to_vmem [thread:$0]  %s1, 4096, %s22, [#allocation3], 256, 256, 16
    $region9: #{lstm_model_forward.1} parent=1 // pred_fallthru
      _
    // Predicated region
    $region10: #{lstm_model_forward.1} parent=1 // pred_check
      _
    $region11: #{lstm_model_forward.1} parent=1 // pred_check_branch
      %29 = sbr.rel (0) target = $region13
    $region12: #{lstm_model_forward.1} parent=1 // pred_region
      _
    $region13: #{lstm_model_forward.1} parent=1 // pred_fallthru
      _
    // Predicated region
    $region14: #{lstm_model_forward.1} parent=1 // pred_check
      _
    $region15: #{lstm_model_forward.1} parent=1 // pred_check_branch
      %31 = sbr.rel (0) target = $region17
    $region16: #{lstm_model_forward.1} parent=1 // pred_region
      _
    $region17: #{lstm_model_forward.1} parent=1 // pred_fallthru
      _
    // Predicated region
    $region18: #{lstm_model_forward.1} parent=1 // pred_check
      _
    $region19: #{lstm_model_forward.1} parent=1 // pred_check_branch
      %33 = sbr.rel (0) target = $region21
    $region20: #{lstm_model_forward.1} parent=1 // pred_region
      %s35 = ssub.s32 1024, 1024
      %36 = vsyncadd [#allocation6], %s35
      %s37 = sshll.u32 [#allocation5], 4
      %s38 = int_to_ptr.vmem [resolvable:$true] %s37
      %43 = dma.hbm_to_vmem [thread:$0]  %s4, 1024, %s38, [#allocation6], 64, 64, 4
    $region21: #{lstm_model_forward.1} parent=1 // pred_fallthru
      _
    // Predicated region
    $region22: #{lstm_model_forward.1} parent=1 // pred_check
      _
    $region23: #{lstm_model_forward.1} parent=1 // pred_check_branch
      %45 = sbr.rel (0) target = $region25
    $region24: #{lstm_model_forward.1} parent=1 // pred_region
      _
    $region25: #{lstm_model_forward.1} parent=1 // pred_fallthru
      _
    // Predicated region
    $region26: #{lstm_model_forward.1} parent=1 // pred_check
      _
    $region27: #{lstm_model_forward.1} parent=1 // pred_check_branch
      %47 = sbr.rel (0) target = $region29
    $region28: #{lstm_model_forward.1} parent=1 // pred_region
      %48 = dma.done [#allocation3], 4096
    $region29: #{lstm_model_forward.1} parent=1 // pred_fallthru
      _
    // Predicated region
    $region30: #{lstm_model_forward.1} parent=1 // pred_check
      _
    $region31: #{lstm_model_forward.1} parent=1 // pred_check_branch
      %50 = sbr.rel (0) target = $region33
    $region32: #{lstm_model_forward.1} parent=1 // pred_region
      %51 = dma.done [#allocation6], 1024
    $region33: #{lstm_model_forward.1} parent=1 // pred_fallthru
      _
    %v53 = vld [vmem:[#allocation2] sm:$0xff]
    %v54 = vld [vmem:[#allocation2 + $0x8] sm:$0xff]
    %v55 = vld [vmem:[#allocation2 + $0x10] sm:$0xff]
    %v56 = vld [vmem:[#allocation2 + $0x18] sm:$0xff]
    %v57 = vld [vmem:[#allocation2 + $0x20] sm:$0xff]
    %v58 = vld [vmem:[#allocation2 + $0x28] sm:$0xff]
    %v59 = vld [vmem:[#allocation2 + $0x30] sm:$0xff]
    %v60 = vld [vmem:[#allocation2 + $0x38] sm:$0xff]
    %v61 = vld [vmem:[#allocation2 + $0x40] sm:$0xff]
    %v62 = vld [vmem:[#allocation2 + $0x48] sm:$0xff]
    %v63 = vld [vmem:[#allocation2 + $0x50] sm:$0xff]
    %v64 = vld [vmem:[#allocation2 + $0x58] sm:$0xff]
    %v65 = vld [vmem:[#allocation2 + $0x60] sm:$0xff]
    %v66 = vld [vmem:[#allocation2 + $0x68] sm:$0xff]
    %v67 = vld [vmem:[#allocation2 + $0x70] sm:$0xff]
    %v68 = vld [vmem:[#allocation2 + $0x78] sm:$0xff]
    %v69 = vld [vmem:[#allocation2 + $0x80] sm:$0xff]
    %v70 = vld [vmem:[#allocation2 + $0x88] sm:$0xff]
    %v71 = vld [vmem:[#allocation2 + $0x90] sm:$0xff]
    %v72 = vld [vmem:[#allocation2 + $0x98] sm:$0xff]
    %v73 = vld [vmem:[#allocation2 + $0xa0] sm:$0xff]
    %v74 = vld [vmem:[#allocation2 + $0xa8] sm:$0xff]
    %v75 = vld [vmem:[#allocation2 + $0xb0] sm:$0xff]
    %v76 = vld [vmem:[#allocation2 + $0xb8] sm:$0xff]
    %v77 = vld [vmem:[#allocation2 + $0xc0] sm:$0xff]
    %v78 = vld [vmem:[#allocation2 + $0xc8] sm:$0xff]
    %v79 = vld [vmem:[#allocation2 + $0xd0] sm:$0xff]
    %v80 = vld [vmem:[#allocation2 + $0xd8] sm:$0xff]
    %v81 = vld [vmem:[#allocation2 + $0xe0] sm:$0xff]
    %v82 = vld [vmem:[#allocation2 + $0xe8] sm:$0xff]
    %v83 = vld [vmem:[#allocation2 + $0xf0] sm:$0xff]
    %v84 = vld [vmem:[#allocation2 + $0xf8] sm:$0xff]
    %v85 = vld [vmem:[%s2] sm:$0xff]
    %v86 = vld [vmem:[%s2 + $0x8] sm:$0xff]
    %v87 = vld [vmem:[%s2 + $0x10] sm:$0xff]
    %v88 = vld [vmem:[%s2 + $0x18] sm:$0xff]
    %v89 = vld [vmem:[%s2 + $0x20] sm:$0xff]
    %v90 = vld [vmem:[%s2 + $0x28] sm:$0xff]
    %v91 = vld [vmem:[%s2 + $0x30] sm:$0xff]
    %v92 = vld [vmem:[%s2 + $0x38] sm:$0xff]
    %v93 = vld [vmem:[%s2 + $0x40] sm:$0xff]
    %v94 = vld [vmem:[%s2 + $0x48] sm:$0xff]
    %v95 = vld [vmem:[%s2 + $0x50] sm:$0xff]
    %v96 = vld [vmem:[%s2 + $0x58] sm:$0xff]
    %v97 = vld [vmem:[%s2 + $0x60] sm:$0xff]
    %v98 = vld [vmem:[%s2 + $0x68] sm:$0xff]
    %v99 = vld [vmem:[%s2 + $0x70] sm:$0xff]
    %v100 = vld [vmem:[%s2 + $0x78] sm:$0xff]
    %v101 = vld [vmem:[%s2 + $0x80] sm:$0xff]
    %v102 = vld [vmem:[%s2 + $0x88] sm:$0xff]
    %v103 = vld [vmem:[%s2 + $0x90] sm:$0xff]
    %v104 = vld [vmem:[%s2 + $0x98] sm:$0xff]
    %v105 = vld [vmem:[%s2 + $0xa0] sm:$0xff]
    %v106 = vld [vmem:[%s2 + $0xa8] sm:$0xff]
    %v107 = vld [vmem:[%s2 + $0xb0] sm:$0xff]
    %v108 = vld [vmem:[%s2 + $0xb8] sm:$0xff]
    %v109 = vld [vmem:[%s2 + $0xc0] sm:$0xff]
    %v110 = vld [vmem:[%s2 + $0xc8] sm:$0xff]
    %v111 = vld [vmem:[%s2 + $0xd0] sm:$0xff]
    %v112 = vld [vmem:[%s2 + $0xd8] sm:$0xff]
    %v113 = vld [vmem:[%s2 + $0xe0] sm:$0xff]
    %v114 = vld [vmem:[%s2 + $0xe8] sm:$0xff]
    %v115 = vld [vmem:[%s2 + $0xf0] sm:$0xff]
    %v116 = vld [vmem:[%s2 + $0xf8] sm:$0xff]
    %v117 = vld [vmem:[%s2 + $0x100] sm:$0xff]
    %v118 = vld [vmem:[%s2 + $0x108] sm:$0xff]
    %v119 = vld [vmem:[%s2 + $0x110] sm:$0xff]
    %v120 = vld [vmem:[%s2 + $0x118] sm:$0xff]
    %v121 = vld [vmem:[%s2 + $0x120] sm:$0xff]
    %v122 = vld [vmem:[%s2 + $0x128] sm:$0xff]
    %v123 = vld [vmem:[%s2 + $0x130] sm:$0xff]
    %v124 = vld [vmem:[%s2 + $0x138] sm:$0xff]
    %v125 = vld [vmem:[%s2 + $0x140] sm:$0xff]
    %v126 = vld [vmem:[%s2 + $0x148] sm:$0xff]
    %v127 = vld [vmem:[%s2 + $0x150] sm:$0xff]
    %v128 = vld [vmem:[%s2 + $0x158] sm:$0xff]
    %v129 = vld [vmem:[%s2 + $0x160] sm:$0xff]
    %v130 = vld [vmem:[%s2 + $0x168] sm:$0xff]
    %v131 = vld [vmem:[%s2 + $0x170] sm:$0xff]
    %v132 = vld [vmem:[%s2 + $0x178] sm:$0xff]
    %v133 = vld [vmem:[%s2 + $0x180] sm:$0xff]
    %v134 = vld [vmem:[%s2 + $0x188] sm:$0xff]
    %v135 = vld [vmem:[%s2 + $0x190] sm:$0xff]
    %v136 = vld [vmem:[%s2 + $0x198] sm:$0xff]
    %v137 = vld [vmem:[%s2 + $0x1a0] sm:$0xff]
    %v138 = vld [vmem:[%s2 + $0x1a8] sm:$0xff]
    %v139 = vld [vmem:[%s2 + $0x1b0] sm:$0xff]
    %v140 = vld [vmem:[%s2 + $0x1b8] sm:$0xff]
    %v141 = vld [vmem:[%s2 + $0x1c0] sm:$0xff]
    %v142 = vld [vmem:[%s2 + $0x1c8] sm:$0xff]
    %v143 = vld [vmem:[%s2 + $0x1d0] sm:$0xff]
    %v144 = vld [vmem:[%s2 + $0x1d8] sm:$0xff]
    %v145 = vld [vmem:[%s2 + $0x1e0] sm:$0xff]
    %v146 = vld [vmem:[%s2 + $0x1e8] sm:$0xff]
    %v147 = vld [vmem:[%s2 + $0x1f0] sm:$0xff]
    %v148 = vld [vmem:[%s2 + $0x1f8] sm:$0xff]
    %v149 = vld [vmem:[#allocation5] sm:$0xf]
    %v150 = vld [vmem:[#allocation5 + $0x4] sm:$0xf]
    %v151 = vld [vmem:[#allocation5 + $0x8] sm:$0xf]
    %v152 = vld [vmem:[#allocation5 + $0xc] sm:$0xf]
    %v153 = vld [vmem:[#allocation5 + $0x10] sm:$0xf]
    %v154 = vld [vmem:[#allocation5 + $0x14] sm:$0xf]
    %v155 = vld [vmem:[#allocation5 + $0x18] sm:$0xf]
    %v156 = vld [vmem:[#allocation5 + $0x1c] sm:$0xf]
    %v157 = vld [vmem:[#allocation5 + $0x20] sm:$0xf]
    %v158 = vld [vmem:[#allocation5 + $0x24] sm:$0xf]
    %v159 = vld [vmem:[#allocation5 + $0x28] sm:$0xf]
    %v160 = vld [vmem:[#allocation5 + $0x2c] sm:$0xf]
    %v161 = vld [vmem:[#allocation5 + $0x30] sm:$0xf]
    %v162 = vld [vmem:[#allocation5 + $0x34] sm:$0xf]
    %v163 = vld [vmem:[#allocation5 + $0x38] sm:$0xf]
    %v164 = vld [vmem:[#allocation5 + $0x3c] sm:$0xf]
    %v165 = vld [vmem:[%s3] sm:$0xf]
    %v167 = vlaneseq
    %v168 = vshrl.u32 %v167, 7
    %v169 = vsub.s32 0, %v168
    %v170 = vrot.slane %v165, %v169
    %v171 = vlaneseq
    %v172 = vshrl.u32 %v171, 7
    %v173 = vsub.s32 1, %v172
    %v174 = vrot.slane %v165, %v173
    %v175 = vlaneseq
    %v176 = vshrl.u32 %v175, 7
    %v177 = vsub.s32 2, %v176
    %v178 = vrot.slane %v165, %v177
    %v179 = vlaneseq
    %v180 = vshrl.u32 %v179, 7
    %v181 = vsub.s32 3, %v180
    %v182 = vrot.slane %v165, %v181
    %v187 = vld [vmem:[%s0] sm:$0xff]
    %v188 = vld [vmem:[%s0 + $0x8] sm:$0xff]
    %v189 = vld [vmem:[%s0 + $0x10] sm:$0xff]
    %v190 = vld [vmem:[%s0 + $0x18] sm:$0xff]
    %v223 = vunpack.c.l.b16 %v53
    %v224 = vunpack.c.h.b16 %v53
    %v225 = vunpack.c.l.b16 %v54
    %v226 = vunpack.c.h.b16 %v54
    %v227 = vunpack.c.l.b16 %v55
    %v228 = vunpack.c.h.b16 %v55
    %v229 = vunpack.c.l.b16 %v56
    %v230 = vunpack.c.h.b16 %v56
    %v231 = vunpack.c.l.b16 %v57
    %v232 = vunpack.c.h.b16 %v57
    %v233 = vunpack.c.l.b16 %v58
    %v234 = vunpack.c.h.b16 %v58
    %v235 = vunpack.c.l.b16 %v59
    %v236 = vunpack.c.h.b16 %v59
    %v237 = vunpack.c.l.b16 %v60
    %v238 = vunpack.c.h.b16 %v60
    %v239 = vunpack.c.l.b16 %v61
    %v240 = vunpack.c.h.b16 %v61
    %v241 = vunpack.c.l.b16 %v62
    %v242 = vunpack.c.h.b16 %v62
    %v243 = vunpack.c.l.b16 %v63
    %v244 = vunpack.c.h.b16 %v63
    %v245 = vunpack.c.l.b16 %v64
    %v246 = vunpack.c.h.b16 %v64
    %v247 = vunpack.c.l.b16 %v65
    %v248 = vunpack.c.h.b16 %v65
    %v249 = vunpack.c.l.b16 %v66
    %v250 = vunpack.c.h.b16 %v66
    %v251 = vunpack.c.l.b16 %v67
    %v252 = vunpack.c.h.b16 %v67
    %v253 = vunpack.c.l.b16 %v68
    %v254 = vunpack.c.h.b16 %v68
    %v255 = vunpack.c.l.b16 %v69
    %v256 = vunpack.c.h.b16 %v69
    %v257 = vunpack.c.l.b16 %v70
    %v258 = vunpack.c.h.b16 %v70
    %v259 = vunpack.c.l.b16 %v71
    %v260 = vunpack.c.h.b16 %v71
    %v261 = vunpack.c.l.b16 %v72
    %v262 = vunpack.c.h.b16 %v72
    %v263 = vunpack.c.l.b16 %v73
    %v264 = vunpack.c.h.b16 %v73
    %v265 = vunpack.c.l.b16 %v74
    %v266 = vunpack.c.h.b16 %v74
    %v267 = vunpack.c.l.b16 %v75
    %v268 = vunpack.c.h.b16 %v75
    %v269 = vunpack.c.l.b16 %v76
    %v270 = vunpack.c.h.b16 %v76
    %v271 = vunpack.c.l.b16 %v77
    %v272 = vunpack.c.h.b16 %v77
    %v273 = vunpack.c.l.b16 %v78
    %v274 = vunpack.c.h.b16 %v78
    %v275 = vunpack.c.l.b16 %v79
    %v276 = vunpack.c.h.b16 %v79
    %v277 = vunpack.c.l.b16 %v80
    %v278 = vunpack.c.h.b16 %v80
    %v279 = vunpack.c.l.b16 %v81
    %v280 = vunpack.c.h.b16 %v81
    %v281 = vunpack.c.l.b16 %v82
    %v282 = vunpack.c.h.b16 %v82
    %v283 = vunpack.c.l.b16 %v83
    %v284 = vunpack.c.h.b16 %v83
    %v285 = vunpack.c.l.b16 %v84
    %v286 = vunpack.c.h.b16 %v84
    %v287 = vpack.c.b16 %v227, %v223
    %v288 = vpack.c.b16 %v228, %v224
    %v289 = vpack.c.b16 %v229, %v225
    %v290 = vpack.c.b16 %v230, %v226
    %v291 = vpack.c.b16 %v235, %v231
    %v292 = vpack.c.b16 %v236, %v232
    %v293 = vpack.c.b16 %v237, %v233
    %v294 = vpack.c.b16 %v238, %v234
    %v295 = vpack.c.b16 %v243, %v239
    %v296 = vpack.c.b16 %v244, %v240
    %v297 = vpack.c.b16 %v245, %v241
    %v298 = vpack.c.b16 %v246, %v242
    %v299 = vpack.c.b16 %v251, %v247
    %v300 = vpack.c.b16 %v252, %v248
    %v301 = vpack.c.b16 %v253, %v249
    %v302 = vpack.c.b16 %v254, %v250
    %v303 = vpack.c.b16 %v259, %v255
    %v304 = vpack.c.b16 %v260, %v256
    %v305 = vpack.c.b16 %v261, %v257
    %v306 = vpack.c.b16 %v262, %v258
    %v307 = vpack.c.b16 %v267, %v263
    %v308 = vpack.c.b16 %v268, %v264
    %v309 = vpack.c.b16 %v269, %v265
    %v310 = vpack.c.b16 %v270, %v266
    %v311 = vpack.c.b16 %v275, %v271
    %v312 = vpack.c.b16 %v276, %v272
    %v313 = vpack.c.b16 %v277, %v273
    %v314 = vpack.c.b16 %v278, %v274
    %v315 = vpack.c.b16 %v283, %v279
    %v316 = vpack.c.b16 %v284, %v280
    %v317 = vpack.c.b16 %v285, %v281
    %v318 = vpack.c.b16 %v286, %v282
    %351 = vmatprep.subr.bf16.mxu0 %v288
    %352 = vmatpush1.bf16.msra.mxu0 %v287
    %353 = vmatprep.subr.bf16.mxu0 %v292
    %354 = vmatpush1.bf16.msra.mxu0 %v291
    %355 = vmatprep.subr.bf16.mxu0 %v296
    %356 = vmatpush1.bf16.msra.mxu0 %v295
    %357 = vmatprep.subr.bf16.mxu0 %v300
    %358 = vmatpush1.bf16.msra.mxu0 %v299
    %359 = vmatprep.subr.bf16.mxu0 %v304
    %360 = vmatpush1.bf16.msra.mxu0 %v303
    %361 = vmatprep.subr.bf16.mxu0 %v308
    %362 = vmatpush1.bf16.msra.mxu0 %v307
    %363 = vmatprep.subr.bf16.mxu0 %v312
    %364 = vmatpush1.bf16.msra.mxu0 %v311
    %365 = vmatprep.subr.bf16.mxu0 %v316
    %366 = vmatpush1.bf16.msra.mxu0 %v315
    %367 = vmatprep.subr.bf16.mxu0 0
    %368 = vmatpush1.bf16.msra.mxu0 0
    %369 = vmatprep.subr.bf16.mxu0 0
    %370 = vmatpush1.bf16.msra.mxu0 0
    %371 = vmatprep.subr.bf16.mxu0 0
    %372 = vmatpush1.bf16.msra.mxu0 0
    %373 = vmatprep.subr.bf16.mxu0 0
    %374 = vmatpush1.bf16.msra.mxu0 0
    %375 = vmatprep.subr.bf16.mxu0 0
    %376 = vmatpush1.bf16.msra.mxu0 0
    %377 = vmatprep.subr.bf16.mxu0 0
    %378 = vmatpush1.bf16.msra.mxu0 0
    %379 = vmatprep.subr.bf16.mxu0 0
    %380 = vmatpush1.bf16.msra.mxu0 0
    %381 = vmatprep.subr.bf16.mxu0 0
    %382 = vmatpush1.bf16.msra.mxu0 0
    %383 = vmatprep.mubr.bf16.mxu0 0
    %384 = vmatmul.mubr.bf16.gmra.mrb[0].mxu0 0
    %v385 = vpop.f32.mrb[0].mxu0
    %v386 = vadd.f32 0.0, %v385
    %v387 = vpop.f32.mrb[0].mxu0
    %v388 = vadd.f32 0.0, %v387
    %v389 = vpop.f32.mrb[0].mxu0
    %v390 = vpop.f32.mrb[0].mxu0
    %391 = vdwg.mxu0
    %392 = vmatprep.subr.bf16.mxu0 %v290
    %393 = vmatpush1.bf16.msra.mxu0 %v289
    %394 = vmatprep.subr.bf16.mxu0 %v294
    %395 = vmatpush1.bf16.msra.mxu0 %v293
    %396 = vmatprep.subr.bf16.mxu0 %v298
    %397 = vmatpush1.bf16.msra.mxu0 %v297
    %398 = vmatprep.subr.bf16.mxu0 %v302
    %399 = vmatpush1.bf16.msra.mxu0 %v301
    %400 = vmatprep.subr.bf16.mxu0 %v306
    %401 = vmatpush1.bf16.msra.mxu0 %v305
    %402 = vmatprep.subr.bf16.mxu0 %v310
    %403 = vmatpush1.bf16.msra.mxu0 %v309
    %404 = vmatprep.subr.bf16.mxu0 %v314
    %405 = vmatpush1.bf16.msra.mxu0 %v313
    %406 = vmatprep.subr.bf16.mxu0 %v318
    %407 = vmatpush1.bf16.msra.mxu0 %v317
    %408 = vmatprep.subr.bf16.mxu0 0
    %409 = vmatpush1.bf16.msra.mxu0 0
    %410 = vmatprep.subr.bf16.mxu0 0
    %411 = vmatpush1.bf16.msra.mxu0 0
    %412 = vmatprep.subr.bf16.mxu0 0
    %413 = vmatpush1.bf16.msra.mxu0 0
    %414 = vmatprep.subr.bf16.mxu0 0
    %415 = vmatpush1.bf16.msra.mxu0 0
    %416 = vmatprep.subr.bf16.mxu0 0
    %417 = vmatpush1.bf16.msra.mxu0 0
    %418 = vmatprep.subr.bf16.mxu0 0
    %419 = vmatpush1.bf16.msra.mxu0 0
    %420 = vmatprep.subr.bf16.mxu0 0
    %421 = vmatpush1.bf16.msra.mxu0 0
    %422 = vmatprep.subr.bf16.mxu0 0
    %423 = vmatpush1.bf16.msra.mxu0 0
    %424 = vmatprep.mubr.bf16.mxu0 0
    %425 = vmatmul.mubr.bf16.gmra.mrb[0].mxu0 0
    %v426 = vpop.f32.mrb[0].mxu0
    %v427 = vadd.f32 0.0, %v426
    %v428 = vpop.f32.mrb[0].mxu0
    %v429 = vadd.f32 0.0, %v428
    %v430 = vpop.f32.mrb[0].mxu0
    %v431 = vpop.f32.mrb[0].mxu0
    %432 = vdwg.mxu0
    %v433 = vadd.f32 %v187, %v386
    %v434 = vadd.f32 %v188, %v388
    %v435 = vadd.f32 %v189, %v427
    %v436 = vadd.f32 %v190, %v429
    %v437 = vxor.u32 %v433, 2147483648
    %v438 = vxor.u32 %v434, 2147483648
    %v439 = vxor.u32 %v435, 2147483648
    %v440 = vmul.f32 %v437, 1.442695
    %v441 = vpow.pop %v440
    %v442 = vmul.f32 %v438, 1.442695
    %v443 = vpow.pop %v442
    %v444 = vmul.f32 %v439, 1.442695
    %v445 = vpow.pop %v444
    %v446 = vadd.f32 %v441, 1.0
    %v447 = vadd.f32 %v443, 1.0
    %v448 = vadd.f32 %v445, 1.0
    %v449 = vrcp.pop %v446
    %v450 = vmul.f32 1.0, %v449
    %v451 = vrcp.pop %v447
    %v452 = vmul.f32 1.0, %v451
    %v453 = vrcp.pop %v448
    %v454 = vmul.f32 1.0, %v453
    %v455 = vtanh.pop %v436
    %v456 = vmul.f32 %v452, 0.0
    %v457 = vmul.f32 %v450, %v455
    %v458 = vadd.f32 %v456, %v457
    %v459 = vtanh.pop %v458
    %v460 = vmul.f32 %v454, %v459
    %v461 = vpack.c.bf16 %v460, %v460
    %v526 = vunpack.c.l.b16 %v85
    %v527 = vunpack.c.h.b16 %v85
    %v528 = vunpack.c.l.b16 %v86
    %v529 = vunpack.c.h.b16 %v86
    %v530 = vunpack.c.l.b16 %v87
    %v531 = vunpack.c.h.b16 %v87
    %v532 = vunpack.c.l.b16 %v88
    %v533 = vunpack.c.h.b16 %v88
    %v534 = vunpack.c.l.b16 %v89
    %v535 = vunpack.c.h.b16 %v89
    %v536 = vunpack.c.l.b16 %v90
    %v537 = vunpack.c.h.b16 %v90
    %v538 = vunpack.c.l.b16 %v91
    %v539 = vunpack.c.h.b16 %v91
    %v540 = vunpack.c.l.b16 %v92
    %v541 = vunpack.c.h.b16 %v92
    %v542 = vunpack.c.l.b16 %v93
    %v543 = vunpack.c.h.b16 %v93
    %v544 = vunpack.c.l.b16 %v94
    %v545 = vunpack.c.h.b16 %v94
    %v546 = vunpack.c.l.b16 %v95
    %v547 = vunpack.c.h.b16 %v95
    %v548 = vunpack.c.l.b16 %v96
    %v549 = vunpack.c.h.b16 %v96
    %v550 = vunpack.c.l.b16 %v97
    %v551 = vunpack.c.h.b16 %v97
    %v552 = vunpack.c.l.b16 %v98
    %v553 = vunpack.c.h.b16 %v98
    %v554 = vunpack.c.l.b16 %v99
    %v555 = vunpack.c.h.b16 %v99
    %v556 = vunpack.c.l.b16 %v100
    %v557 = vunpack.c.h.b16 %v100
    %v558 = vunpack.c.l.b16 %v101
    %v559 = vunpack.c.h.b16 %v101
    %v560 = vunpack.c.l.b16 %v102
    %v561 = vunpack.c.h.b16 %v102
    %v562 = vunpack.c.l.b16 %v103
    %v563 = vunpack.c.h.b16 %v103
    %v564 = vunpack.c.l.b16 %v104
    %v565 = vunpack.c.h.b16 %v104
    %v566 = vunpack.c.l.b16 %v105
    %v567 = vunpack.c.h.b16 %v105
    %v568 = vunpack.c.l.b16 %v106
    %v569 = vunpack.c.h.b16 %v106
    %v570 = vunpack.c.l.b16 %v107
    %v571 = vunpack.c.h.b16 %v107
    %v572 = vunpack.c.l.b16 %v108
    %v573 = vunpack.c.h.b16 %v108
    %v574 = vunpack.c.l.b16 %v109
    %v575 = vunpack.c.h.b16 %v109
    %v576 = vunpack.c.l.b16 %v110
    %v577 = vunpack.c.h.b16 %v110
    %v578 = vunpack.c.l.b16 %v111
    %v579 = vunpack.c.h.b16 %v111
    %v580 = vunpack.c.l.b16 %v112
    %v581 = vunpack.c.h.b16 %v112
    %v582 = vunpack.c.l.b16 %v113
    %v583 = vunpack.c.h.b16 %v113
    %v584 = vunpack.c.l.b16 %v114
    %v585 = vunpack.c.h.b16 %v114
    %v586 = vunpack.c.l.b16 %v115
    %v587 = vunpack.c.h.b16 %v115
    %v588 = vunpack.c.l.b16 %v116
    %v589 = vunpack.c.h.b16 %v116
    %v590 = vunpack.c.l.b16 %v117
    %v591 = vunpack.c.h.b16 %v117
    %v592 = vunpack.c.l.b16 %v118
    %v593 = vunpack.c.h.b16 %v118
    %v594 = vunpack.c.l.b16 %v119
    %v595 = vunpack.c.h.b16 %v119
    %v596 = vunpack.c.l.b16 %v120
    %v597 = vunpack.c.h.b16 %v120
    %v598 = vunpack.c.l.b16 %v121
    %v599 = vunpack.c.h.b16 %v121
    %v600 = vunpack.c.l.b16 %v122
    %v601 = vunpack.c.h.b16 %v122
    %v602 = vunpack.c.l.b16 %v123
    %v603 = vunpack.c.h.b16 %v123
    %v604 = vunpack.c.l.b16 %v124
    %v605 = vunpack.c.h.b16 %v124
    %v606 = vunpack.c.l.b16 %v125
    %v607 = vunpack.c.h.b16 %v125
    %v608 = vunpack.c.l.b16 %v126
    %v609 = vunpack.c.h.b16 %v126
    %v610 = vunpack.c.l.b16 %v127
    %v611 = vunpack.c.h.b16 %v127
    %v612 = vunpack.c.l.b16 %v128
    %v613 = vunpack.c.h.b16 %v128
    %v614 = vunpack.c.l.b16 %v129
    %v615 = vunpack.c.h.b16 %v129
    %v616 = vunpack.c.l.b16 %v130
    %v617 = vunpack.c.h.b16 %v130
    %v618 = vunpack.c.l.b16 %v131
    %v619 = vunpack.c.h.b16 %v131
    %v620 = vunpack.c.l.b16 %v132
    %v621 = vunpack.c.h.b16 %v132
    %v622 = vunpack.c.l.b16 %v133
    %v623 = vunpack.c.h.b16 %v133
    %v624 = vunpack.c.l.b16 %v134
    %v625 = vunpack.c.h.b16 %v134
    %v626 = vunpack.c.l.b16 %v135
    %v627 = vunpack.c.h.b16 %v135
    %v628 = vunpack.c.l.b16 %v136
    %v629 = vunpack.c.h.b16 %v136
    %v630 = vunpack.c.l.b16 %v137
    %v631 = vunpack.c.h.b16 %v137
    %v632 = vunpack.c.l.b16 %v138
    %v633 = vunpack.c.h.b16 %v138
    %v634 = vunpack.c.l.b16 %v139
    %v635 = vunpack.c.h.b16 %v139
    %v636 = vunpack.c.l.b16 %v140
    %v637 = vunpack.c.h.b16 %v140
    %v638 = vunpack.c.l.b16 %v141
    %v639 = vunpack.c.h.b16 %v141
    %v640 = vunpack.c.l.b16 %v142
    %v641 = vunpack.c.h.b16 %v142
    %v642 = vunpack.c.l.b16 %v143
    %v643 = vunpack.c.h.b16 %v143
    %v644 = vunpack.c.l.b16 %v144
    %v645 = vunpack.c.h.b16 %v144
    %v646 = vunpack.c.l.b16 %v145
    %v647 = vunpack.c.h.b16 %v145
    %v648 = vunpack.c.l.b16 %v146
    %v649 = vunpack.c.h.b16 %v146
    %v650 = vunpack.c.l.b16 %v147
    %v651 = vunpack.c.h.b16 %v147
    %v652 = vunpack.c.l.b16 %v148
    %v653 = vunpack.c.h.b16 %v148
    %v654 = vpack.c.b16 %v530, %v526
    %v655 = vpack.c.b16 %v531, %v527
    %v656 = vpack.c.b16 %v532, %v528
    %v657 = vpack.c.b16 %v533, %v529
    %v658 = vpack.c.b16 %v538, %v534
    %v659 = vpack.c.b16 %v539, %v535
    %v660 = vpack.c.b16 %v540, %v536
    %v661 = vpack.c.b16 %v541, %v537
    %v662 = vpack.c.b16 %v546, %v542
    %v663 = vpack.c.b16 %v547, %v543
    %v664 = vpack.c.b16 %v548, %v544
    %v665 = vpack.c.b16 %v549, %v545
    %v666 = vpack.c.b16 %v554, %v550
    %v667 = vpack.c.b16 %v555, %v551
    %v668 = vpack.c.b16 %v556, %v552
    %v669 = vpack.c.b16 %v557, %v553
    %v670 = vpack.c.b16 %v562, %v558
    %v671 = vpack.c.b16 %v563, %v559
    %v672 = vpack.c.b16 %v564, %v560
    %v673 = vpack.c.b16 %v565, %v561
    %v674 = vpack.c.b16 %v570, %v566
    %v675 = vpack.c.b16 %v571, %v567
    %v676 = vpack.c.b16 %v572, %v568
    %v677 = vpack.c.b16 %v573, %v569
    %v678 = vpack.c.b16 %v578, %v574
    %v679 = vpack.c.b16 %v579, %v575
    %v680 = vpack.c.b16 %v580, %v576
    %v681 = vpack.c.b16 %v581, %v577
    %v682 = vpack.c.b16 %v586, %v582
    %v683 = vpack.c.b16 %v587, %v583
    %v684 = vpack.c.b16 %v588, %v584
    %v685 = vpack.c.b16 %v589, %v585
    %v686 = vpack.c.b16 %v594, %v590
    %v687 = vpack.c.b16 %v595, %v591
    %v688 = vpack.c.b16 %v596, %v592
    %v689 = vpack.c.b16 %v597, %v593
    %v690 = vpack.c.b16 %v602, %v598
    %v691 = vpack.c.b16 %v603, %v599
    %v692 = vpack.c.b16 %v604, %v600
    %v693 = vpack.c.b16 %v605, %v601
    %v694 = vpack.c.b16 %v610, %v606
    %v695 = vpack.c.b16 %v611, %v607
    %v696 = vpack.c.b16 %v612, %v608
    %v697 = vpack.c.b16 %v613, %v609
    %v698 = vpack.c.b16 %v618, %v614
    %v699 = vpack.c.b16 %v619, %v615
    %v700 = vpack.c.b16 %v620, %v616
    %v701 = vpack.c.b16 %v621, %v617
    %v702 = vpack.c.b16 %v626, %v622
    %v703 = vpack.c.b16 %v627, %v623
    %v704 = vpack.c.b16 %v628, %v624
    %v705 = vpack.c.b16 %v629, %v625
    %v706 = vpack.c.b16 %v634, %v630
    %v707 = vpack.c.b16 %v635, %v631
    %v708 = vpack.c.b16 %v636, %v632
    %v709 = vpack.c.b16 %v637, %v633
    %v710 = vpack.c.b16 %v642, %v638
    %v711 = vpack.c.b16 %v643, %v639
    %v712 = vpack.c.b16 %v644, %v640
    %v713 = vpack.c.b16 %v645, %v641
    %v714 = vpack.c.b16 %v650, %v646
    %v715 = vpack.c.b16 %v651, %v647
    %v716 = vpack.c.b16 %v652, %v648
    %v717 = vpack.c.b16 %v653, %v649
    %782 = vmatprep.subr.bf16.mxu0 %v655
    %783 = vmatpush1.bf16.msra.mxu0 %v654
    %784 = vmatprep.subr.bf16.mxu0 %v659
    %785 = vmatpush1.bf16.msra.mxu0 %v658
    %786 = vmatprep.subr.bf16.mxu0 %v663
    %787 = vmatpush1.bf16.msra.mxu0 %v662
    %788 = vmatprep.subr.bf16.mxu0 %v667
    %789 = vmatpush1.bf16.msra.mxu0 %v666
    %790 = vmatprep.subr.bf16.mxu0 %v671
    %791 = vmatpush1.bf16.msra.mxu0 %v670
    %792 = vmatprep.subr.bf16.mxu0 %v675
    %793 = vmatpush1.bf16.msra.mxu0 %v674
    %794 = vmatprep.subr.bf16.mxu0 %v679
    %795 = vmatpush1.bf16.msra.mxu0 %v678
    %796 = vmatprep.subr.bf16.mxu0 %v683
    %797 = vmatpush1.bf16.msra.mxu0 %v682
    %798 = vmatprep.subr.bf16.mxu0 %v687
    %799 = vmatpush1.bf16.msra.mxu0 %v686
    %800 = vmatprep.subr.bf16.mxu0 %v691
    %801 = vmatpush1.bf16.msra.mxu0 %v690
    %802 = vmatprep.subr.bf16.mxu0 %v695
    %803 = vmatpush1.bf16.msra.mxu0 %v694
    %804 = vmatprep.subr.bf16.mxu0 %v699
    %805 = vmatpush1.bf16.msra.mxu0 %v698
    %806 = vmatprep.subr.bf16.mxu0 %v703
    %807 = vmatpush1.bf16.msra.mxu0 %v702
    %808 = vmatprep.subr.bf16.mxu0 %v707
    %809 = vmatpush1.bf16.msra.mxu0 %v706
    %810 = vmatprep.subr.bf16.mxu0 %v711
    %811 = vmatpush1.bf16.msra.mxu0 %v710
    %812 = vmatprep.subr.bf16.mxu0 %v715
    %813 = vmatpush1.bf16.msra.mxu0 %v714
    %814 = vmatprep.mubr.bf16.mxu0 0
    %815 = vmatmul.mubr.bf16.gmra.mrb[0].mxu0 %v461
    %v816 = vpop.f32.mrb[0].mxu0
    %v817 = vadd.f32 %v170, %v816
    %v818 = vpop.f32.mrb[0].mxu0
    %v819 = vadd.f32 %v174, %v818
    %v820 = vpop.f32.mrb[0].mxu0
    %v821 = vpop.f32.mrb[0].mxu0
    %822 = vdwg.mxu0
    %823 = vmatprep.subr.bf16.mxu0 %v657
    %824 = vmatpush1.bf16.msra.mxu0 %v656
    %825 = vmatprep.subr.bf16.mxu0 %v661
    %826 = vmatpush1.bf16.msra.mxu0 %v660
    %827 = vmatprep.subr.bf16.mxu0 %v665
    %828 = vmatpush1.bf16.msra.mxu0 %v664
    %829 = vmatprep.subr.bf16.mxu0 %v669
    %830 = vmatpush1.bf16.msra.mxu0 %v668
    %831 = vmatprep.subr.bf16.mxu0 %v673
    %832 = vmatpush1.bf16.msra.mxu0 %v672
    %833 = vmatprep.subr.bf16.mxu0 %v677
    %834 = vmatpush1.bf16.msra.mxu0 %v676
    %835 = vmatprep.subr.bf16.mxu0 %v681
    %836 = vmatpush1.bf16.msra.mxu0 %v680
    %837 = vmatprep.subr.bf16.mxu0 %v685
    %838 = vmatpush1.bf16.msra.mxu0 %v684
    %839 = vmatprep.subr.bf16.mxu0 %v689
    %840 = vmatpush1.bf16.msra.mxu0 %v688
    %841 = vmatprep.subr.bf16.mxu0 %v693
    %842 = vmatpush1.bf16.msra.mxu0 %v692
    %843 = vmatprep.subr.bf16.mxu0 %v697
    %844 = vmatpush1.bf16.msra.mxu0 %v696
    %845 = vmatprep.subr.bf16.mxu0 %v701
    %846 = vmatpush1.bf16.msra.mxu0 %v700
    %847 = vmatprep.subr.bf16.mxu0 %v705
    %848 = vmatpush1.bf16.msra.mxu0 %v704
    %849 = vmatprep.subr.bf16.mxu0 %v709
    %850 = vmatpush1.bf16.msra.mxu0 %v708
    %851 = vmatprep.subr.bf16.mxu0 %v713
    %852 = vmatpush1.bf16.msra.mxu0 %v712
    %853 = vmatprep.subr.bf16.mxu0 %v717
    %854 = vmatpush1.bf16.msra.mxu0 %v716
    %855 = vmatprep.mubr.bf16.mxu0 0
    %856 = vmatmul.mubr.bf16.gmra.mrb[0].mxu0 %v461
    %v857 = vpop.f32.mrb[0].mxu0
    %v858 = vadd.f32 %v178, %v857
    %v859 = vpop.f32.mrb[0].mxu0
    %v860 = vadd.f32 %v182, %v859
    %v861 = vpop.f32.mrb[0].mxu0
    %v862 = vpop.f32.mrb[0].mxu0
    %863 = vdwg.mxu0
    %v864 = vxor.u32 %v817, 2147483648
    %v865 = vxor.u32 %v819, 2147483648
    %v866 = vxor.u32 %v858, 2147483648
    %v867 = vmul.f32 %v864, 1.442695
    %v868 = vpow.pop %v867
    %v869 = vmul.f32 %v865, 1.442695
    %v870 = vpow.pop %v869
    %v871 = vmul.f32 %v866, 1.442695
    %v872 = vpow.pop %v871
    %v873 = vadd.f32 %v868, 1.0
    %v874 = vadd.f32 %v870, 1.0
    %v875 = vadd.f32 %v872, 1.0
    %v876 = vrcp.pop %v873
    %v877 = vmul.f32 1.0, %v876
    %v878 = vrcp.pop %v874
    %v879 = vmul.f32 1.0, %v878
    %v880 = vrcp.pop %v875
    %v881 = vmul.f32 1.0, %v880
    %v882 = vtanh.pop %v860
    %v883 = vmul.f32 %v879, 0.0
    %v884 = vmul.f32 %v877, %v882
    %v885 = vadd.f32 %v883, %v884
    %v886 = vtanh.pop %v885
    %v887 = vmul.f32 %v881, %v886
    %s888 = scalar_lea.vmem %s0, 32
    %v889 = vld [vmem:[%s888] sm:$0xff]
    %v890 = vld [vmem:[%s888 + $0x8] sm:$0xff]
    %v891 = vld [vmem:[%s888 + $0x10] sm:$0xff]
    %v892 = vld [vmem:[%s888 + $0x18] sm:$0xff]
    %893 = vmatprep.subr.bf16.mxu0 %v288
    %894 = vmatpush1.bf16.msra.mxu0 %v287
    %895 = vmatprep.subr.bf16.mxu0 %v292
    %896 = vmatpush1.bf16.msra.mxu0 %v291
    %897 = vmatprep.subr.bf16.mxu0 %v296
    %898 = vmatpush1.bf16.msra.mxu0 %v295
    %899 = vmatprep.subr.bf16.mxu0 %v300
    %900 = vmatpush1.bf16.msra.mxu0 %v299
    %901 = vmatprep.subr.bf16.mxu0 %v304
    %902 = vmatpush1.bf16.msra.mxu0 %v303
    %903 = vmatprep.subr.bf16.mxu0 %v308
    %904 = vmatpush1.bf16.msra.mxu0 %v307
    %905 = vmatprep.subr.bf16.mxu0 %v312
    %906 = vmatpush1.bf16.msra.mxu0 %v311
    %907 = vmatprep.subr.bf16.mxu0 %v316
    %908 = vmatpush1.bf16.msra.mxu0 %v315
    %909 = vmatprep.subr.bf16.mxu0 0
    %910 = vmatpush1.bf16.msra.mxu0 0
    %911 = vmatprep.subr.bf16.mxu0 0
    %912 = vmatpush1.bf16.msra.mxu0 0
    %913 = vmatprep.subr.bf16.mxu0 0
    %914 = vmatpush1.bf16.msra.mxu0 0
    %915 = vmatprep.subr.bf16.mxu0 0
    %916 = vmatpush1.bf16.msra.mxu0 0
    %917 = vmatprep.subr.bf16.mxu0 0
    %918 = vmatpush1.bf16.msra.mxu0 0
    %919 = vmatprep.subr.bf16.mxu0 0
    %920 = vmatpush1.bf16.msra.mxu0 0
    %921 = vmatprep.subr.bf16.mxu0 0
    %922 = vmatpush1.bf16.msra.mxu0 0
    %923 = vmatprep.subr.bf16.mxu0 0
    %924 = vmatpush1.bf16.msra.mxu0 0
    %925 = vmatprep.mubr.bf16.mxu0 0
    %926 = vmatmul.mubr.bf16.gmra.mrb[0].mxu0 %v461
    %v927 = vpop.f32.mrb[0].mxu0
    %v928 = vadd.f32 0.0, %v927
    %v929 = vpop.f32.mrb[0].mxu0
    %v930 = vadd.f32 0.0, %v929
    %v931 = vpop.f32.mrb[0].mxu0
    %v932 = vpop.f32.mrb[0].mxu0
    %933 = vdwg.mxu0
    %934 = vmatprep.subr.bf16.mxu0 %v290
    %935 = vmatpush1.bf16.msra.mxu0 %v289
    %936 = vmatprep.subr.bf16.mxu0 %v294
    %937 = vmatpush1.bf16.msra.mxu0 %v293
    %938 = vmatprep.subr.bf16.mxu0 %v298
    %939 = vmatpush1.bf16.msra.mxu0 %v297
    %940 = vmatprep.subr.bf16.mxu0 %v302
    %941 = vmatpush1.bf16.msra.mxu0 %v301
    %942 = vmatprep.subr.bf16.mxu0 %v306
    %943 = vmatpush1.bf16.msra.mxu0 %v305
    %944 = vmatprep.subr.bf16.mxu0 %v310
    %945 = vmatpush1.bf16.msra.mxu0 %v309
    %946 = vmatprep.subr.bf16.mxu0 %v314
    %947 = vmatpush1.bf16.msra.mxu0 %v313
    %948 = vmatprep.subr.bf16.mxu0 %v318
    %949 = vmatpush1.bf16.msra.mxu0 %v317
    %950 = vmatprep.subr.bf16.mxu0 0
    %951 = vmatpush1.bf16.msra.mxu0 0
    %952 = vmatprep.subr.bf16.mxu0 0
    %953 = vmatpush1.bf16.msra.mxu0 0
    %954 = vmatprep.subr.bf16.mxu0 0
    %955 = vmatpush1.bf16.msra.mxu0 0
    %956 = vmatprep.subr.bf16.mxu0 0
    %957 = vmatpush1.bf16.msra.mxu0 0
    %958 = vmatprep.subr.bf16.mxu0 0
    %959 = vmatpush1.bf16.msra.mxu0 0
    %960 = vmatprep.subr.bf16.mxu0 0
    %961 = vmatpush1.bf16.msra.mxu0 0
    %962 = vmatprep.subr.bf16.mxu0 0
    %963 = vmatpush1.bf16.msra.mxu0 0
    %964 = vmatprep.subr.bf16.mxu0 0
    %965 = vmatpush1.bf16.msra.mxu0 0
    %966 = vmatprep.mubr.bf16.mxu0 0
    %967 = vmatmul.mubr.bf16.gmra.mrb[0].mxu0 %v461
    %v968 = vpop.f32.mrb[0].mxu0
    %v969 = vadd.f32 0.0, %v968
    %v970 = vpop.f32.mrb[0].mxu0
    %v971 = vadd.f32 0.0, %v970
    %v972 = vpop.f32.mrb[0].mxu0
    %v973 = vpop.f32.mrb[0].mxu0
    %974 = vdwg.mxu0
    %v975 = vadd.f32 %v889, %v928
    %v976 = vadd.f32 %v890, %v930
    %v977 = vadd.f32 %v891, %v969
    %v978 = vadd.f32 %v892, %v971
    %v979 = vxor.u32 %v975, 2147483648
    %v980 = vxor.u32 %v976, 2147483648
    %v981 = vxor.u32 %v977, 2147483648
    %v982 = vmul.f32 %v979, 1.442695
    %v983 = vpow.pop %v982
    %v984 = vmul.f32 %v980, 1.442695
    %v985 = vpow.pop %v984
    %v986 = vmul.f32 %v981, 1.442695
    %v987 = vpow.pop %v986
    %v988 = vadd.f32 %v983, 1.0
    %v989 = vadd.f32 %v985, 1.0
    %v990 = vadd.f32 %v987, 1.0
    %v991 = vrcp.pop %v988
    %v992 = vmul.f32 1.0, %v991
    %v993 = vrcp.pop %v989
    %v994 = vmul.f32 1.0, %v993
    %v995 = vrcp.pop %v990
    %v996 = vmul.f32 1.0, %v995
    %v997 = vtanh.pop %v978
    %v998 = vmul.f32 %v994, %v458
    %v999 = vmul.f32 %v992, %v997
    %v1000 = vadd.f32 %v998, %v999
    %v1001 = vtanh.pop %v1000
    %v1002 = vmul.f32 %v996, %v1001
    %v1003 = vpack.c.bf16 %v1002, %v1002
    %v1004 = vpack.c.bf16 %v887, %v887
    %1005 = vmatprep.subr.bf16.mxu0 %v655
    %1006 = vmatpush1.bf16.msra.mxu0 %v654
    %1007 = vmatprep.subr.bf16.mxu0 %v659
    %1008 = vmatpush1.bf16.msra.mxu0 %v658
    %1009 = vmatprep.subr.bf16.mxu0 %v663
    %1010 = vmatpush1.bf16.msra.mxu0 %v662
    %1011 = vmatprep.subr.bf16.mxu0 %v667
    %1012 = vmatpush1.bf16.msra.mxu0 %v666
    %1013 = vmatprep.subr.bf16.mxu0 %v671
    %1014 = vmatpush1.bf16.msra.mxu0 %v670
    %1015 = vmatprep.subr.bf16.mxu0 %v675
    %1016 = vmatpush1.bf16.msra.mxu0 %v674
    %1017 = vmatprep.subr.bf16.mxu0 %v679
    %1018 = vmatpush1.bf16.msra.mxu0 %v678
    %1019 = vmatprep.subr.bf16.mxu0 %v683
    %1020 = vmatpush1.bf16.msra.mxu0 %v682
    %1021 = vmatprep.subr.bf16.mxu0 %v687
    %1022 = vmatpush1.bf16.msra.mxu0 %v686
    %1023 = vmatprep.subr.bf16.mxu0 %v691
    %1024 = vmatpush1.bf16.msra.mxu0 %v690
    %1025 = vmatprep.subr.bf16.mxu0 %v695
    %1026 = vmatpush1.bf16.msra.mxu0 %v694
    %1027 = vmatprep.subr.bf16.mxu0 %v699
    %1028 = vmatpush1.bf16.msra.mxu0 %v698
    %1029 = vmatprep.subr.bf16.mxu0 %v703
    %1030 = vmatpush1.bf16.msra.mxu0 %v702
    %1031 = vmatprep.subr.bf16.mxu0 %v707
    %1032 = vmatpush1.bf16.msra.mxu0 %v706
    %1033 = vmatprep.subr.bf16.mxu0 %v711
    %1034 = vmatpush1.bf16.msra.mxu0 %v710
    %1035 = vmatprep.subr.bf16.mxu0 %v715
    %1036 = vmatpush1.bf16.msra.mxu0 %v714
    %1037 = vmatprep.mubr.bf16.mxu0 %v1004
    %1038 = vmatmul.mubr.bf16.gmra.mrb[0].mxu0 %v1003
    %v1039 = vpop.f32.mrb[0].mxu0
    %v1040 = vadd.f32 %v170, %v1039
    %v1041 = vpop.f32.mrb[0].mxu0
    %v1042 = vadd.f32 %v174, %v1041
    %v1043 = vpop.f32.mrb[0].mxu0
    %v1044 = vpop.f32.mrb[0].mxu0
    %1045 = vdwg.mxu0
    %1046 = vmatprep.subr.bf16.mxu0 %v657
    %1047 = vmatpush1.bf16.msra.mxu0 %v656
    %1048 = vmatprep.subr.bf16.mxu0 %v661
    %1049 = vmatpush1.bf16.msra.mxu0 %v660
    %1050 = vmatprep.subr.bf16.mxu0 %v665
    %1051 = vmatpush1.bf16.msra.mxu0 %v664
    %1052 = vmatprep.subr.bf16.mxu0 %v669
    %1053 = vmatpush1.bf16.msra.mxu0 %v668
    %1054 = vmatprep.subr.bf16.mxu0 %v673
    %1055 = vmatpush1.bf16.msra.mxu0 %v672
    %1056 = vmatprep.subr.bf16.mxu0 %v677
    %1057 = vmatpush1.bf16.msra.mxu0 %v676
    %1058 = vmatprep.subr.bf16.mxu0 %v681
    %1059 = vmatpush1.bf16.msra.mxu0 %v680
    %1060 = vmatprep.subr.bf16.mxu0 %v685
    %1061 = vmatpush1.bf16.msra.mxu0 %v684
    %1062 = vmatprep.subr.bf16.mxu0 %v689
    %1063 = vmatpush1.bf16.msra.mxu0 %v688
    %1064 = vmatprep.subr.bf16.mxu0 %v693
    %1065 = vmatpush1.bf16.msra.mxu0 %v692
    %1066 = vmatprep.subr.bf16.mxu0 %v697
    %1067 = vmatpush1.bf16.msra.mxu0 %v696
    %1068 = vmatprep.subr.bf16.mxu0 %v701
    %1069 = vmatpush1.bf16.msra.mxu0 %v700
    %1070 = vmatprep.subr.bf16.mxu0 %v705
    %1071 = vmatpush1.bf16.msra.mxu0 %v704
    %1072 = vmatprep.subr.bf16.mxu0 %v709
    %1073 = vmatpush1.bf16.msra.mxu0 %v708
    %1074 = vmatprep.subr.bf16.mxu0 %v713
    %1075 = vmatpush1.bf16.msra.mxu0 %v712
    %1076 = vmatprep.subr.bf16.mxu0 %v717
    %1077 = vmatpush1.bf16.msra.mxu0 %v716
    %1078 = vmatprep.mubr.bf16.mxu0 %v1004
    %1079 = vmatmul.mubr.bf16.gmra.mrb[0].mxu0 %v1003
    %v1080 = vpop.f32.mrb[0].mxu0
    %v1081 = vadd.f32 %v178, %v1080
    %v1082 = vpop.f32.mrb[0].mxu0
    %v1083 = vadd.f32 %v182, %v1082
    %v1084 = vpop.f32.mrb[0].mxu0
    %v1085 = vpop.f32.mrb[0].mxu0
    %1086 = vdwg.mxu0
    %v1087 = vxor.u32 %v1040, 2147483648
    %v1088 = vxor.u32 %v1042, 2147483648
    %v1089 = vxor.u32 %v1081, 2147483648
    %v1090 = vmul.f32 %v1087, 1.442695
    %v1091 = vpow.pop %v1090
    %v1092 = vmul.f32 %v1088, 1.442695
    %v1093 = vpow.pop %v1092
    %v1094 = vmul.f32 %v1089, 1.442695
    %v1095 = vpow.pop %v1094
    %v1096 = vadd.f32 %v1091, 1.0
    %v1097 = vadd.f32 %v1093, 1.0
    %v1098 = vadd.f32 %v1095, 1.0
    %v1099 = vrcp.pop %v1096
    %v1100 = vmul.f32 1.0, %v1099
    %v1101 = vrcp.pop %v1097
    %v1102 = vmul.f32 1.0, %v1101
    %v1103 = vrcp.pop %v1098
    %v1104 = vmul.f32 1.0, %v1103
    %v1105 = vtanh.pop %v1083
    %v1106 = vmul.f32 %v1102, %v885
    %v1107 = vmul.f32 %v1100, %v1105
    %v1108 = vadd.f32 %v1106, %v1107
    %v1109 = vtanh.pop %v1108
    %v1110 = vmul.f32 %v1104, %v1109
    %s1111 = scalar_lea.vmem %s0, 64
    %v1112 = vld [vmem:[%s1111] sm:$0xff]
    %v1113 = vld [vmem:[%s1111 + $0x8] sm:$0xff]
    %v1114 = vld [vmem:[%s1111 + $0x10] sm:$0xff]
    %v1115 = vld [vmem:[%s1111 + $0x18] sm:$0xff]
    %1116 = vmatprep.subr.bf16.mxu0 %v288
    %1117 = vmatpush1.bf16.msra.mxu0 %v287
    %1118 = vmatprep.subr.bf16.mxu0 %v292
    %1119 = vmatpush1.bf16.msra.mxu0 %v291
    %1120 = vmatprep.subr.bf16.mxu0 %v296
    %1121 = vmatpush1.bf16.msra.mxu0 %v295
    %1122 = vmatprep.subr.bf16.mxu0 %v300
    %1123 = vmatpush1.bf16.msra.mxu0 %v299
    %1124 = vmatprep.subr.bf16.mxu0 %v304
    %1125 = vmatpush1.bf16.msra.mxu0 %v303
    %1126 = vmatprep.subr.bf16.mxu0 %v308
    %1127 = vmatpush1.bf16.msra.mxu0 %v307
    %1128 = vmatprep.subr.bf16.mxu0 %v312
    %1129 = vmatpush1.bf16.msra.mxu0 %v311
    %1130 = vmatprep.subr.bf16.mxu0 %v316
    %1131 = vmatpush1.bf16.msra.mxu0 %v315
    %1132 = vmatprep.subr.bf16.mxu0 0
    %1133 = vmatpush1.bf16.msra.mxu0 0
    %1134 = vmatprep.subr.bf16.mxu0 0
    %1135 = vmatpush1.bf16.msra.mxu0 0
    %1136 = vmatprep.subr.bf16.mxu0 0
    %1137 = vmatpush1.bf16.msra.mxu0 0
    %1138 = vmatprep.subr.bf16.mxu0 0
    %1139 = vmatpush1.bf16.msra.mxu0 0
    %1140 = vmatprep.subr.bf16.mxu0 0
    %1141 = vmatpush1.bf16.msra.mxu0 0
    %1142 = vmatprep.subr.bf16.mxu0 0
    %1143 = vmatpush1.bf16.msra.mxu0 0
    %1144 = vmatprep.subr.bf16.mxu0 0
    %1145 = vmatpush1.bf16.msra.mxu0 0
    %1146 = vmatprep.subr.bf16.mxu0 0
    %1147 = vmatpush1.bf16.msra.mxu0 0
    %1148 = vmatprep.mubr.bf16.mxu0 0
    %1149 = vmatmul.mubr.bf16.gmra.mrb[0].mxu0 %v1003
    %v1150 = vpop.f32.mrb[0].mxu0
    %v1151 = vadd.f32 0.0, %v1150
    %v1152 = vpop.f32.mrb[0].mxu0
    %v1153 = vadd.f32 0.0, %v1152
    %v1154 = vpop.f32.mrb[0].mxu0
    %v1155 = vpop.f32.mrb[0].mxu0
    %1156 = vdwg.mxu0
    %1157 = vmatprep.subr.bf16.mxu0 %v290
    %1158 = vmatpush1.bf16.msra.mxu0 %v289
    %1159 = vmatprep.subr.bf16.mxu0 %v294
    %1160 = vmatpush1.bf16.msra.mxu0 %v293
    %1161 = vmatprep.subr.bf16.mxu0 %v298
    %1162 = vmatpush1.bf16.msra.mxu0 %v297
    %1163 = vmatprep.subr.bf16.mxu0 %v302
    %1164 = vmatpush1.bf16.msra.mxu0 %v301
    %1165 = vmatprep.subr.bf16.mxu0 %v306
    %1166 = vmatpush1.bf16.msra.mxu0 %v305
    %1167 = vmatprep.subr.bf16.mxu0 %v310
    %1168 = vmatpush1.bf16.msra.mxu0 %v309
    %1169 = vmatprep.subr.bf16.mxu0 %v314
    %1170 = vmatpush1.bf16.msra.mxu0 %v313
    %1171 = vmatprep.subr.bf16.mxu0 %v318
    %1172 = vmatpush1.bf16.msra.mxu0 %v317
    %1173 = vmatprep.subr.bf16.mxu0 0
    %1174 = vmatpush1.bf16.msra.mxu0 0
    %1175 = vmatprep.subr.bf16.mxu0 0
    %1176 = vmatpush1.bf16.msra.mxu0 0
    %1177 = vmatprep.subr.bf16.mxu0 0
    %1178 = vmatpush1.bf16.msra.mxu0 0
    %1179 = vmatprep.subr.bf16.mxu0 0
    %1180 = vmatpush1.bf16.msra.mxu0 0
    %1181 = vmatprep.subr.bf16.mxu0 0
    %1182 = vmatpush1.bf16.msra.mxu0 0
    %1183 = vmatprep.subr.bf16.mxu0 0
    %1184 = vmatpush1.bf16.msra.mxu0 0
    %1185 = vmatprep.subr.bf16.mxu0 0
    %1186 = vmatpush1.bf16.msra.mxu0 0
    %1187 = vmatprep.subr.bf16.mxu0 0
    %1188 = vmatpush1.bf16.msra.mxu0 0
    %1189 = vmatprep.mubr.bf16.mxu0 0
    %1190 = vmatmul.mubr.bf16.gmra.mrb[0].mxu0 %v1003
    %v1191 = vpop.f32.mrb[0].mxu0
    %v1192 = vadd.f32 0.0, %v1191
    %v1193 = vpop.f32.mrb[0].mxu0
    %v1194 = vadd.f32 0.0, %v1193
    %v1195 = vpop.f32.mrb[0].mxu0
    %v1196 = vpop.f32.mrb[0].mxu0
    %1197 = vdwg.mxu0
    %v1198 = vadd.f32 %v1112, %v1151
    %v1199 = vadd.f32 %v1113, %v1153
    %v1200 = vadd.f32 %v1114, %v1192
    %v1201 = vadd.f32 %v1115, %v1194
    %v1202 = vxor.u32 %v1198, 2147483648
    %v1203 = vxor.u32 %v1199, 2147483648
    %v1204 = vxor.u32 %v1200, 2147483648
    %v1205 = vmul.f32 %v1202, 1.442695
    %v1206 = vpow.pop %v1205
    %v1207 = vmul.f32 %v1203, 1.442695
    %v1208 = vpow.pop %v1207
    %v1209 = vmul.f32 %v1204, 1.442695
    %v1210 = vpow.pop %v1209
    %v1211 = vadd.f32 %v1206, 1.0
    %v1212 = vadd.f32 %v1208, 1.0
    %v1213 = vadd.f32 %v1210, 1.0
    %v1214 = vrcp.pop %v1211
    %v1215 = vmul.f32 1.0, %v1214
    %v1216 = vrcp.pop %v1212
    %v1217 = vmul.f32 1.0, %v1216
    %v1218 = vrcp.pop %v1213
    %v1219 = vmul.f32 1.0, %v1218
    %v1220 = vtanh.pop %v1201
    %v1221 = vmul.f32 %v1217, %v1000
    %v1222 = vmul.f32 %v1215, %v1220
    %v1223 = vadd.f32 %v1221, %v1222
    %v1224 = vtanh.pop %v1223
    %v1225 = vmul.f32 %v1219, %v1224
    %v1226 = vpack.c.bf16 %v1225, %v1225
    %v1227 = vpack.c.bf16 %v1110, %v1110
    %1228 = vmatprep.subr.bf16.mxu0 %v655
    %1229 = vmatpush1.bf16.msra.mxu0 %v654
    %1230 = vmatprep.subr.bf16.mxu0 %v659
    %1231 = vmatpush1.bf16.msra.mxu0 %v658
    %1232 = vmatprep.subr.bf16.mxu0 %v663
    %1233 = vmatpush1.bf16.msra.mxu0 %v662
    %1234 = vmatprep.subr.bf16.mxu0 %v667
    %1235 = vmatpush1.bf16.msra.mxu0 %v666
    %1236 = vmatprep.subr.bf16.mxu0 %v671
    %1237 = vmatpush1.bf16.msra.mxu0 %v670
    %1238 = vmatprep.subr.bf16.mxu0 %v675
    %1239 = vmatpush1.bf16.msra.mxu0 %v674
    %1240 = vmatprep.subr.bf16.mxu0 %v679
    %1241 = vmatpush1.bf16.msra.mxu0 %v678
    %1242 = vmatprep.subr.bf16.mxu0 %v683
    %1243 = vmatpush1.bf16.msra.mxu0 %v682
    %1244 = vmatprep.subr.bf16.mxu0 %v687
    %1245 = vmatpush1.bf16.msra.mxu0 %v686
    %1246 = vmatprep.subr.bf16.mxu0 %v691
    %1247 = vmatpush1.bf16.msra.mxu0 %v690
    %1248 = vmatprep.subr.bf16.mxu0 %v695
    %1249 = vmatpush1.bf16.msra.mxu0 %v694
    %1250 = vmatprep.subr.bf16.mxu0 %v699
    %1251 = vmatpush1.bf16.msra.mxu0 %v698
    %1252 = vmatprep.subr.bf16.mxu0 %v703
    %1253 = vmatpush1.bf16.msra.mxu0 %v702
    %1254 = vmatprep.subr.bf16.mxu0 %v707
    %1255 = vmatpush1.bf16.msra.mxu0 %v706
    %1256 = vmatprep.subr.bf16.mxu0 %v711
    %1257 = vmatpush1.bf16.msra.mxu0 %v710
    %1258 = vmatprep.subr.bf16.mxu0 %v715
    %1259 = vmatpush1.bf16.msra.mxu0 %v714
    %1260 = vmatprep.mubr.bf16.mxu0 %v1227
    %1261 = vmatmul.mubr.bf16.gmra.mrb[0].mxu0 %v1226
    %v1262 = vpop.f32.mrb[0].mxu0
    %v1263 = vadd.f32 %v170, %v1262
    %v1264 = vpop.f32.mrb[0].mxu0
    %v1265 = vadd.f32 %v174, %v1264
    %v1266 = vpop.f32.mrb[0].mxu0
    %v1267 = vpop.f32.mrb[0].mxu0
    %1268 = vdwg.mxu0
    %1269 = vmatprep.subr.bf16.mxu0 %v657
    %1270 = vmatpush1.bf16.msra.mxu0 %v656
    %1271 = vmatprep.subr.bf16.mxu0 %v661
    %1272 = vmatpush1.bf16.msra.mxu0 %v660
    %1273 = vmatprep.subr.bf16.mxu0 %v665
    %1274 = vmatpush1.bf16.msra.mxu0 %v664
    %1275 = vmatprep.subr.bf16.mxu0 %v669
    %1276 = vmatpush1.bf16.msra.mxu0 %v668
    %1277 = vmatprep.subr.bf16.mxu0 %v673
    %1278 = vmatpush1.bf16.msra.mxu0 %v672
    %1279 = vmatprep.subr.bf16.mxu0 %v677
    %1280 = vmatpush1.bf16.msra.mxu0 %v676
    %1281 = vmatprep.subr.bf16.mxu0 %v681
    %1282 = vmatpush1.bf16.msra.mxu0 %v680
    %1283 = vmatprep.subr.bf16.mxu0 %v685
    %1284 = vmatpush1.bf16.msra.mxu0 %v684
    %1285 = vmatprep.subr.bf16.mxu0 %v689
    %1286 = vmatpush1.bf16.msra.mxu0 %v688
    %1287 = vmatprep.subr.bf16.mxu0 %v693
    %1288 = vmatpush1.bf16.msra.mxu0 %v692
    %1289 = vmatprep.subr.bf16.mxu0 %v697
    %1290 = vmatpush1.bf16.msra.mxu0 %v696
    %1291 = vmatprep.subr.bf16.mxu0 %v701
    %1292 = vmatpush1.bf16.msra.mxu0 %v700
    %1293 = vmatprep.subr.bf16.mxu0 %v705
    %1294 = vmatpush1.bf16.msra.mxu0 %v704
    %1295 = vmatprep.subr.bf16.mxu0 %v709
    %1296 = vmatpush1.bf16.msra.mxu0 %v708
    %1297 = vmatprep.subr.bf16.mxu0 %v713
    %1298 = vmatpush1.bf16.msra.mxu0 %v712
    %1299 = vmatprep.subr.bf16.mxu0 %v717
    %1300 = vmatpush1.bf16.msra.mxu0 %v716
    %1301 = vmatprep.mubr.bf16.mxu0 %v1227
    %1302 = vmatmul.mubr.bf16.gmra.mrb[0].mxu0 %v1226
    %v1303 = vpop.f32.mrb[0].mxu0
    %v1304 = vadd.f32 %v178, %v1303
    %v1305 = vpop.f32.mrb[0].mxu0
    %v1306 = vadd.f32 %v182, %v1305
    %v1307 = vpop.f32.mrb[0].mxu0
    %v1308 = vpop.f32.mrb[0].mxu0
    %1309 = vdwg.mxu0
    %v1310 = vxor.u32 %v1263, 2147483648
    %v1311 = vxor.u32 %v1265, 2147483648
    %v1312 = vxor.u32 %v1304, 2147483648
    %v1313 = vmul.f32 %v1310, 1.442695
    %v1314 = vpow.pop %v1313
    %v1315 = vmul.f32 %v1311, 1.442695
    %v1316 = vpow.pop %v1315
    %v1317 = vmul.f32 %v1312, 1.442695
    %v1318 = vpow.pop %v1317
    %v1319 = vadd.f32 %v1314, 1.0
    %v1320 = vadd.f32 %v1316, 1.0
    %v1321 = vadd.f32 %v1318, 1.0
    %v1322 = vrcp.pop %v1319
    %v1323 = vmul.f32 1.0, %v1322
    %v1324 = vrcp.pop %v1320
    %v1325 = vmul.f32 1.0, %v1324
    %v1326 = vrcp.pop %v1321
    %v1327 = vmul.f32 1.0, %v1326
    %v1328 = vtanh.pop %v1306
    %v1329 = vmul.f32 %v1325, %v1108
    %v1330 = vmul.f32 %v1323, %v1328
    %v1331 = vadd.f32 %v1329, %v1330
    %v1332 = vtanh.pop %v1331
    %v1333 = vmul.f32 %v1327, %v1332
    %s1334 = scalar_lea.vmem %s0, 96
    %v1335 = vld [vmem:[%s1334] sm:$0xff]
    %v1336 = vld [vmem:[%s1334 + $0x8] sm:$0xff]
    %v1337 = vld [vmem:[%s1334 + $0x10] sm:$0xff]
    %v1338 = vld [vmem:[%s1334 + $0x18] sm:$0xff]
    %1339 = vmatprep.subr.bf16.mxu0 %v288
    %1340 = vmatpush1.bf16.msra.mxu0 %v287
    %1341 = vmatprep.subr.bf16.mxu0 %v292
    %1342 = vmatpush1.bf16.msra.mxu0 %v291
    %1343 = vmatprep.subr.bf16.mxu0 %v296
    %1344 = vmatpush1.bf16.msra.mxu0 %v295
    %1345 = vmatprep.subr.bf16.mxu0 %v300
    %1346 = vmatpush1.bf16.msra.mxu0 %v299
    %1347 = vmatprep.subr.bf16.mxu0 %v304
    %1348 = vmatpush1.bf16.msra.mxu0 %v303
    %1349 = vmatprep.subr.bf16.mxu0 %v308
    %1350 = vmatpush1.bf16.msra.mxu0 %v307
    %1351 = vmatprep.subr.bf16.mxu0 %v312
    %1352 = vmatpush1.bf16.msra.mxu0 %v311
    %1353 = vmatprep.subr.bf16.mxu0 %v316
    %1354 = vmatpush1.bf16.msra.mxu0 %v315
    %1355 = vmatprep.subr.bf16.mxu0 0
    %1356 = vmatpush1.bf16.msra.mxu0 0
    %1357 = vmatprep.subr.bf16.mxu0 0
    %1358 = vmatpush1.bf16.msra.mxu0 0
    %1359 = vmatprep.subr.bf16.mxu0 0
    %1360 = vmatpush1.bf16.msra.mxu0 0
    %1361 = vmatprep.subr.bf16.mxu0 0
    %1362 = vmatpush1.bf16.msra.mxu0 0
    %1363 = vmatprep.subr.bf16.mxu0 0
    %1364 = vmatpush1.bf16.msra.mxu0 0
    %1365 = vmatprep.subr.bf16.mxu0 0
    %1366 = vmatpush1.bf16.msra.mxu0 0
    %1367 = vmatprep.subr.bf16.mxu0 0
    %1368 = vmatpush1.bf16.msra.mxu0 0
    %1369 = vmatprep.subr.bf16.mxu0 0
    %1370 = vmatpush1.bf16.msra.mxu0 0
    %1371 = vmatprep.mubr.bf16.mxu0 0
    %1372 = vmatmul.mubr.bf16.gmra.mrb[0].mxu0 %v1226
    %v1373 = vpop.f32.mrb[0].mxu0
    %v1374 = vadd.f32 0.0, %v1373
    %v1375 = vpop.f32.mrb[0].mxu0
    %v1376 = vadd.f32 0.0, %v1375
    %v1377 = vpop.f32.mrb[0].mxu0
    %v1378 = vpop.f32.mrb[0].mxu0
    %1379 = vdwg.mxu0
    %1380 = vmatprep.subr.bf16.mxu0 %v290
    %1381 = vmatpush1.bf16.msra.mxu0 %v289
    %1382 = vmatprep.subr.bf16.mxu0 %v294
    %1383 = vmatpush1.bf16.msra.mxu0 %v293
    %1384 = vmatprep.subr.bf16.mxu0 %v298
    %1385 = vmatpush1.bf16.msra.mxu0 %v297
    %1386 = vmatprep.subr.bf16.mxu0 %v302
    %1387 = vmatpush1.bf16.msra.mxu0 %v301
    %1388 = vmatprep.subr.bf16.mxu0 %v306
    %1389 = vmatpush1.bf16.msra.mxu0 %v305
    %1390 = vmatprep.subr.bf16.mxu0 %v310
    %1391 = vmatpush1.bf16.msra.mxu0 %v309
    %1392 = vmatprep.subr.bf16.mxu0 %v314
    %1393 = vmatpush1.bf16.msra.mxu0 %v313
    %1394 = vmatprep.subr.bf16.mxu0 %v318
    %1395 = vmatpush1.bf16.msra.mxu0 %v317
    %1396 = vmatprep.subr.bf16.mxu0 0
    %1397 = vmatpush1.bf16.msra.mxu0 0
    %1398 = vmatprep.subr.bf16.mxu0 0
    %1399 = vmatpush1.bf16.msra.mxu0 0
    %1400 = vmatprep.subr.bf16.mxu0 0
    %1401 = vmatpush1.bf16.msra.mxu0 0
    %1402 = vmatprep.subr.bf16.mxu0 0
    %1403 = vmatpush1.bf16.msra.mxu0 0
    %1404 = vmatprep.subr.bf16.mxu0 0
    %1405 = vmatpush1.bf16.msra.mxu0 0
    %1406 = vmatprep.subr.bf16.mxu0 0
    %1407 = vmatpush1.bf16.msra.mxu0 0
    %1408 = vmatprep.subr.bf16.mxu0 0
    %1409 = vmatpush1.bf16.msra.mxu0 0
    %1410 = vmatprep.subr.bf16.mxu0 0
    %1411 = vmatpush1.bf16.msra.mxu0 0
    %1412 = vmatprep.mubr.bf16.mxu0 0
    %1413 = vmatmul.mubr.bf16.gmra.mrb[0].mxu0 %v1226
    %v1414 = vpop.f32.mrb[0].mxu0
    %v1415 = vadd.f32 0.0, %v1414
    %v1416 = vpop.f32.mrb[0].mxu0
    %v1417 = vadd.f32 0.0, %v1416
    %v1418 = vpop.f32.mrb[0].mxu0
    %v1419 = vpop.f32.mrb[0].mxu0
    %1420 = vdwg.mxu0
    %v1421 = vadd.f32 %v1335, %v1374
    %v1422 = vadd.f32 %v1336, %v1376
    %v1423 = vadd.f32 %v1337, %v1415
    %v1424 = vadd.f32 %v1338, %v1417
    %v1425 = vxor.u32 %v1421, 2147483648
    %v1426 = vxor.u32 %v1422, 2147483648
    %v1427 = vxor.u32 %v1423, 2147483648
    %v1428 = vmul.f32 %v1425, 1.442695
    %v1429 = vpow.pop %v1428
    %v1430 = vmul.f32 %v1426, 1.442695
    %v1431 = vpow.pop %v1430
    %v1432 = vmul.f32 %v1427, 1.442695
    %v1433 = vpow.pop %v1432
    %v1434 = vadd.f32 %v1429, 1.0
    %v1435 = vadd.f32 %v1431, 1.0
    %v1436 = vadd.f32 %v1433, 1.0
    %v1437 = vrcp.pop %v1434
    %v1438 = vmul.f32 1.0, %v1437
    %v1439 = vrcp.pop %v1435
    %v1440 = vmul.f32 1.0, %v1439
    %v1441 = vrcp.pop %v1436
    %v1442 = vmul.f32 1.0, %v1441
    %v1443 = vtanh.pop %v1424
    %v1444 = vmul.f32 %v1440, %v1223
    %v1445 = vmul.f32 %v1438, %v1443
    %v1446 = vadd.f32 %v1444, %v1445
    %v1447 = vtanh.pop %v1446
    %v1448 = vmul.f32 %v1442, %v1447
    %v1449 = vpack.c.bf16 %v1448, %v1448
    %v1450 = vpack.c.bf16 %v1333, %v1333
    %1451 = vmatprep.subr.bf16.mxu0 %v655
    %1452 = vmatpush1.bf16.msra.mxu0 %v654
    %1453 = vmatprep.subr.bf16.mxu0 %v659
    %1454 = vmatpush1.bf16.msra.mxu0 %v658
    %1455 = vmatprep.subr.bf16.mxu0 %v663
    %1456 = vmatpush1.bf16.msra.mxu0 %v662
    %1457 = vmatprep.subr.bf16.mxu0 %v667
    %1458 = vmatpush1.bf16.msra.mxu0 %v666
    %1459 = vmatprep.subr.bf16.mxu0 %v671
    %1460 = vmatpush1.bf16.msra.mxu0 %v670
    %1461 = vmatprep.subr.bf16.mxu0 %v675
    %1462 = vmatpush1.bf16.msra.mxu0 %v674
    %1463 = vmatprep.subr.bf16.mxu0 %v679
    %1464 = vmatpush1.bf16.msra.mxu0 %v678
    %1465 = vmatprep.subr.bf16.mxu0 %v683
    %1466 = vmatpush1.bf16.msra.mxu0 %v682
    %1467 = vmatprep.subr.bf16.mxu0 %v687
    %1468 = vmatpush1.bf16.msra.mxu0 %v686
    %1469 = vmatprep.subr.bf16.mxu0 %v691
    %1470 = vmatpush1.bf16.msra.mxu0 %v690
    %1471 = vmatprep.subr.bf16.mxu0 %v695
    %1472 = vmatpush1.bf16.msra.mxu0 %v694
    %1473 = vmatprep.subr.bf16.mxu0 %v699
    %1474 = vmatpush1.bf16.msra.mxu0 %v698
    %1475 = vmatprep.subr.bf16.mxu0 %v703
    %1476 = vmatpush1.bf16.msra.mxu0 %v702
    %1477 = vmatprep.subr.bf16.mxu0 %v707
    %1478 = vmatpush1.bf16.msra.mxu0 %v706
    %1479 = vmatprep.subr.bf16.mxu0 %v711
    %1480 = vmatpush1.bf16.msra.mxu0 %v710
    %1481 = vmatprep.subr.bf16.mxu0 %v715
    %1482 = vmatpush1.bf16.msra.mxu0 %v714
    %1483 = vmatprep.mubr.bf16.mxu0 %v1450
    %1484 = vmatmul.mubr.bf16.gmra.mrb[0].mxu0 %v1449
    %v1485 = vpop.f32.mrb[0].mxu0
    %v1486 = vadd.f32 %v170, %v1485
    %v1487 = vpop.f32.mrb[0].mxu0
    %v1488 = vadd.f32 %v174, %v1487
    %v1489 = vpop.f32.mrb[0].mxu0
    %v1490 = vpop.f32.mrb[0].mxu0
    %1491 = vdwg.mxu0
    %1492 = vmatprep.subr.bf16.mxu0 %v657
    %1493 = vmatpush1.bf16.msra.mxu0 %v656
    %1494 = vmatprep.subr.bf16.mxu0 %v661
    %1495 = vmatpush1.bf16.msra.mxu0 %v660
    %1496 = vmatprep.subr.bf16.mxu0 %v665
    %1497 = vmatpush1.bf16.msra.mxu0 %v664
    %1498 = vmatprep.subr.bf16.mxu0 %v669
    %1499 = vmatpush1.bf16.msra.mxu0 %v668
    %1500 = vmatprep.subr.bf16.mxu0 %v673
    %1501 = vmatpush1.bf16.msra.mxu0 %v672
    %1502 = vmatprep.subr.bf16.mxu0 %v677
    %1503 = vmatpush1.bf16.msra.mxu0 %v676
    %1504 = vmatprep.subr.bf16.mxu0 %v681
    %1505 = vmatpush1.bf16.msra.mxu0 %v680
    %1506 = vmatprep.subr.bf16.mxu0 %v685
    %1507 = vmatpush1.bf16.msra.mxu0 %v684
    %1508 = vmatprep.subr.bf16.mxu0 %v689
    %1509 = vmatpush1.bf16.msra.mxu0 %v688
    %1510 = vmatprep.subr.bf16.mxu0 %v693
    %1511 = vmatpush1.bf16.msra.mxu0 %v692
    %1512 = vmatprep.subr.bf16.mxu0 %v697
    %1513 = vmatpush1.bf16.msra.mxu0 %v696
    %1514 = vmatprep.subr.bf16.mxu0 %v701
    %1515 = vmatpush1.bf16.msra.mxu0 %v700
    %1516 = vmatprep.subr.bf16.mxu0 %v705
    %1517 = vmatpush1.bf16.msra.mxu0 %v704
    %1518 = vmatprep.subr.bf16.mxu0 %v709
    %1519 = vmatpush1.bf16.msra.mxu0 %v708
    %1520 = vmatprep.subr.bf16.mxu0 %v713
    %1521 = vmatpush1.bf16.msra.mxu0 %v712
    %1522 = vmatprep.subr.bf16.mxu0 %v717
    %1523 = vmatpush1.bf16.msra.mxu0 %v716
    %1524 = vmatprep.mubr.bf16.mxu0 %v1450
    %1525 = vmatmul.mubr.bf16.gmra.mrb[0].mxu0 %v1449
    %v1526 = vpop.f32.mrb[0].mxu0
    %v1527 = vadd.f32 %v178, %v1526
    %v1528 = vpop.f32.mrb[0].mxu0
    %v1529 = vadd.f32 %v182, %v1528
    %v1530 = vpop.f32.mrb[0].mxu0
    %v1531 = vpop.f32.mrb[0].mxu0
    %1532 = vdwg.mxu0
    %v1533 = vxor.u32 %v1486, 2147483648
    %v1534 = vxor.u32 %v1488, 2147483648
    %v1535 = vxor.u32 %v1527, 2147483648
    %v1536 = vmul.f32 %v1533, 1.442695
    %v1537 = vpow.pop %v1536
    %v1538 = vmul.f32 %v1534, 1.442695
    %v1539 = vpow.pop %v1538
    %v1540 = vmul.f32 %v1535, 1.442695
    %v1541 = vpow.pop %v1540
    %v1542 = vadd.f32 %v1537, 1.0
    %v1543 = vadd.f32 %v1539, 1.0
    %v1544 = vadd.f32 %v1541, 1.0
    %v1545 = vrcp.pop %v1542
    %v1546 = vmul.f32 1.0, %v1545
    %v1547 = vrcp.pop %v1543
    %v1548 = vmul.f32 1.0, %v1547
    %v1549 = vrcp.pop %v1544
    %v1550 = vmul.f32 1.0, %v1549
    %v1551 = vtanh.pop %v1529
    %v1552 = vmul.f32 %v1548, %v1331
    %v1553 = vmul.f32 %v1546, %v1551
    %v1554 = vadd.f32 %v1552, %v1553
    %v1555 = vtanh.pop %v1554
    %v1556 = vmul.f32 %v1550, %v1555
    %s1557 = scalar_lea.vmem %s0, 128
    %v1558 = vld [vmem:[%s1557] sm:$0xff]
    %v1559 = vld [vmem:[%s1557 + $0x8] sm:$0xff]
    %v1560 = vld [vmem:[%s1557 + $0x10] sm:$0xff]
    %v1561 = vld [vmem:[%s1557 + $0x18] sm:$0xff]
    %1562 = vmatprep.subr.bf16.mxu0 %v288
    %1563 = vmatpush1.bf16.msra.mxu0 %v287
    %1564 = vmatprep.subr.bf16.mxu0 %v292
    %1565 = vmatpush1.bf16.msra.mxu0 %v291
    %1566 = vmatprep.subr.bf16.mxu0 %v296
    %1567 = vmatpush1.bf16.msra.mxu0 %v295
    %1568 = vmatprep.subr.bf16.mxu0 %v300
    %1569 = vmatpush1.bf16.msra.mxu0 %v299
    %1570 = vmatprep.subr.bf16.mxu0 %v304
    %1571 = vmatpush1.bf16.msra.mxu0 %v303
    %1572 = vmatprep.subr.bf16.mxu0 %v308
    %1573 = vmatpush1.bf16.msra.mxu0 %v307
    %1574 = vmatprep.subr.bf16.mxu0 %v312
    %1575 = vmatpush1.bf16.msra.mxu0 %v311
    %1576 = vmatprep.subr.bf16.mxu0 %v316
    %1577 = vmatpush1.bf16.msra.mxu0 %v315
    %1578 = vmatprep.subr.bf16.mxu0 0
    %1579 = vmatpush1.bf16.msra.mxu0 0
    %1580 = vmatprep.subr.bf16.mxu0 0
    %1581 = vmatpush1.bf16.msra.mxu0 0
    %1582 = vmatprep.subr.bf16.mxu0 0
    %1583 = vmatpush1.bf16.msra.mxu0 0
    %1584 = vmatprep.subr.bf16.mxu0 0
    %1585 = vmatpush1.bf16.msra.mxu0 0
    %1586 = vmatprep.subr.bf16.mxu0 0
    %1587 = vmatpush1.bf16.msra.mxu0 0
    %1588 = vmatprep.subr.bf16.mxu0 0
    %1589 = vmatpush1.bf16.msra.mxu0 0
    %1590 = vmatprep.subr.bf16.mxu0 0
    %1591 = vmatpush1.bf16.msra.mxu0 0
    %1592 = vmatprep.subr.bf16.mxu0 0
    %1593 = vmatpush1.bf16.msra.mxu0 0
    %1594 = vmatprep.mubr.bf16.mxu0 0
    %1595 = vmatmul.mubr.bf16.gmra.mrb[0].mxu0 %v1449
    %v1596 = vpop.f32.mrb[0].mxu0
    %v1597 = vadd.f32 0.0, %v1596
    %v1598 = vpop.f32.mrb[0].mxu0
    %v1599 = vadd.f32 0.0, %v1598
    %v1600 = vpop.f32.mrb[0].mxu0
    %v1601 = vpop.f32.mrb[0].mxu0
    %1602 = vdwg.mxu0
    %1603 = vmatprep.subr.bf16.mxu0 %v290
    %1604 = vmatpush1.bf16.msra.mxu0 %v289
    %1605 = vmatprep.subr.bf16.mxu0 %v294
    %1606 = vmatpush1.bf16.msra.mxu0 %v293
    %1607 = vmatprep.subr.bf16.mxu0 %v298
    %1608 = vmatpush1.bf16.msra.mxu0 %v297
    %1609 = vmatprep.subr.bf16.mxu0 %v302
    %1610 = vmatpush1.bf16.msra.mxu0 %v301
    %1611 = vmatprep.subr.bf16.mxu0 %v306
    %1612 = vmatpush1.bf16.msra.mxu0 %v305
    %1613 = vmatprep.subr.bf16.mxu0 %v310
    %1614 = vmatpush1.bf16.msra.mxu0 %v309
    %1615 = vmatprep.subr.bf16.mxu0 %v314
    %1616 = vmatpush1.bf16.msra.mxu0 %v313
    %1617 = vmatprep.subr.bf16.mxu0 %v318
    %1618 = vmatpush1.bf16.msra.mxu0 %v317
    %1619 = vmatprep.subr.bf16.mxu0 0
    %1620 = vmatpush1.bf16.msra.mxu0 0
    %1621 = vmatprep.subr.bf16.mxu0 0
    %1622 = vmatpush1.bf16.msra.mxu0 0
    %1623 = vmatprep.subr.bf16.mxu0 0
    %1624 = vmatpush1.bf16.msra.mxu0 0
    %1625 = vmatprep.subr.bf16.mxu0 0
    %1626 = vmatpush1.bf16.msra.mxu0 0
    %1627 = vmatprep.subr.bf16.mxu0 0
    %1628 = vmatpush1.bf16.msra.mxu0 0
    %1629 = vmatprep.subr.bf16.mxu0 0
    %1630 = vmatpush1.bf16.msra.mxu0 0
    %1631 = vmatprep.subr.bf16.mxu0 0
    %1632 = vmatpush1.bf16.msra.mxu0 0
    %1633 = vmatprep.subr.bf16.mxu0 0
    %1634 = vmatpush1.bf16.msra.mxu0 0
    %1635 = vmatprep.mubr.bf16.mxu0 0
    %1636 = vmatmul.mubr.bf16.gmra.mrb[0].mxu0 %v1449
    %v1637 = vpop.f32.mrb[0].mxu0
    %v1638 = vadd.f32 0.0, %v1637
    %v1639 = vpop.f32.mrb[0].mxu0
    %v1640 = vadd.f32 0.0, %v1639
    %v1641 = vpop.f32.mrb[0].mxu0
    %v1642 = vpop.f32.mrb[0].mxu0
    %1643 = vdwg.mxu0
    %v1644 = vadd.f32 %v1558, %v1597
    %v1645 = vadd.f32 %v1559, %v1599
    %v1646 = vadd.f32 %v1560, %v1638
    %v1647 = vadd.f32 %v1561, %v1640
    %v1648 = vxor.u32 %v1644, 2147483648
    %v1649 = vxor.u32 %v1645, 2147483648
    %v1650 = vxor.u32 %v1646, 2147483648
    %v1651 = vmul.f32 %v1648, 1.442695
    %v1652 = vpow.pop %v1651
    %v1653 = vmul.f32 %v1649, 1.442695
    %v1654 = vpow.pop %v1653
    %v1655 = vmul.f32 %v1650, 1.442695
    %v1656 = vpow.pop %v1655
    %v1657 = vadd.f32 %v1652, 1.0
    %v1658 = vadd.f32 %v1654, 1.0
    %v1659 = vadd.f32 %v1656, 1.0
    %v1660 = vrcp.pop %v1657
    %v1661 = vmul.f32 1.0, %v1660
    %v1662 = vrcp.pop %v1658
    %v1663 = vmul.f32 1.0, %v1662
    %v1664 = vrcp.pop %v1659
    %v1665 = vmul.f32 1.0, %v1664
    %v1666 = vtanh.pop %v1647
    %v1667 = vmul.f32 %v1663, %v1446
    %v1668 = vmul.f32 %v1661, %v1666
    %v1669 = vadd.f32 %v1667, %v1668
    %v1670 = vtanh.pop %v1669
    %v1671 = vmul.f32 %v1665, %v1670
    %v1672 = vpack.c.bf16 %v1671, %v1671
    %v1673 = vpack.c.bf16 %v1556, %v1556
    %1674 = vmatprep.subr.bf16.mxu0 %v655
    %1675 = vmatpush1.bf16.msra.mxu0 %v654
    %1676 = vmatprep.subr.bf16.mxu0 %v659
    %1677 = vmatpush1.bf16.msra.mxu0 %v658
    %1678 = vmatprep.subr.bf16.mxu0 %v663
    %1679 = vmatpush1.bf16.msra.mxu0 %v662
    %1680 = vmatprep.subr.bf16.mxu0 %v667
    %1681 = vmatpush1.bf16.msra.mxu0 %v666
    %1682 = vmatprep.subr.bf16.mxu0 %v671
    %1683 = vmatpush1.bf16.msra.mxu0 %v670
    %1684 = vmatprep.subr.bf16.mxu0 %v675
    %1685 = vmatpush1.bf16.msra.mxu0 %v674
    %1686 = vmatprep.subr.bf16.mxu0 %v679
    %1687 = vmatpush1.bf16.msra.mxu0 %v678
    %1688 = vmatprep.subr.bf16.mxu0 %v683
    %1689 = vmatpush1.bf16.msra.mxu0 %v682
    %1690 = vmatprep.subr.bf16.mxu0 %v687
    %1691 = vmatpush1.bf16.msra.mxu0 %v686
    %1692 = vmatprep.subr.bf16.mxu0 %v691
    %1693 = vmatpush1.bf16.msra.mxu0 %v690
    %1694 = vmatprep.subr.bf16.mxu0 %v695
    %1695 = vmatpush1.bf16.msra.mxu0 %v694
    %1696 = vmatprep.subr.bf16.mxu0 %v699
    %1697 = vmatpush1.bf16.msra.mxu0 %v698
    %1698 = vmatprep.subr.bf16.mxu0 %v703
    %1699 = vmatpush1.bf16.msra.mxu0 %v702
    %1700 = vmatprep.subr.bf16.mxu0 %v707
    %1701 = vmatpush1.bf16.msra.mxu0 %v706
    %1702 = vmatprep.subr.bf16.mxu0 %v711
    %1703 = vmatpush1.bf16.msra.mxu0 %v710
    %1704 = vmatprep.subr.bf16.mxu0 %v715
    %1705 = vmatpush1.bf16.msra.mxu0 %v714
    %1706 = vmatprep.mubr.bf16.mxu0 %v1673
    %1707 = vmatmul.mubr.bf16.gmra.mrb[0].mxu0 %v1672
    %v1708 = vpop.f32.mrb[0].mxu0
    %v1709 = vadd.f32 %v170, %v1708
    %v1710 = vpop.f32.mrb[0].mxu0
    %v1711 = vadd.f32 %v174, %v1710
    %v1712 = vpop.f32.mrb[0].mxu0
    %v1713 = vpop.f32.mrb[0].mxu0
    %1714 = vdwg.mxu0
    %1715 = vmatprep.subr.bf16.mxu0 %v657
    %1716 = vmatpush1.bf16.msra.mxu0 %v656
    %1717 = vmatprep.subr.bf16.mxu0 %v661
    %1718 = vmatpush1.bf16.msra.mxu0 %v660
    %1719 = vmatprep.subr.bf16.mxu0 %v665
    %1720 = vmatpush1.bf16.msra.mxu0 %v664
    %1721 = vmatprep.subr.bf16.mxu0 %v669
    %1722 = vmatpush1.bf16.msra.mxu0 %v668
    %1723 = vmatprep.subr.bf16.mxu0 %v673
    %1724 = vmatpush1.bf16.msra.mxu0 %v672
    %1725 = vmatprep.subr.bf16.mxu0 %v677
    %1726 = vmatpush1.bf16.msra.mxu0 %v676
    %1727 = vmatprep.subr.bf16.mxu0 %v681
    %1728 = vmatpush1.bf16.msra.mxu0 %v680
    %1729 = vmatprep.subr.bf16.mxu0 %v685
    %1730 = vmatpush1.bf16.msra.mxu0 %v684
    %1731 = vmatprep.subr.bf16.mxu0 %v689
    %1732 = vmatpush1.bf16.msra.mxu0 %v688
    %1733 = vmatprep.subr.bf16.mxu0 %v693
    %1734 = vmatpush1.bf16.msra.mxu0 %v692
    %1735 = vmatprep.subr.bf16.mxu0 %v697
    %1736 = vmatpush1.bf16.msra.mxu0 %v696
    %1737 = vmatprep.subr.bf16.mxu0 %v701
    %1738 = vmatpush1.bf16.msra.mxu0 %v700
    %1739 = vmatprep.subr.bf16.mxu0 %v705
    %1740 = vmatpush1.bf16.msra.mxu0 %v704
    %1741 = vmatprep.subr.bf16.mxu0 %v709
    %1742 = vmatpush1.bf16.msra.mxu0 %v708
    %1743 = vmatprep.subr.bf16.mxu0 %v713
    %1744 = vmatpush1.bf16.msra.mxu0 %v712
    %1745 = vmatprep.subr.bf16.mxu0 %v717
    %1746 = vmatpush1.bf16.msra.mxu0 %v716
    %1747 = vmatprep.mubr.bf16.mxu0 %v1673
    %1748 = vmatmul.mubr.bf16.gmra.mrb[0].mxu0 %v1672
    %v1749 = vpop.f32.mrb[0].mxu0
    %v1750 = vadd.f32 %v178, %v1749
    %v1751 = vpop.f32.mrb[0].mxu0
    %v1752 = vadd.f32 %v182, %v1751
    %v1753 = vpop.f32.mrb[0].mxu0
    %v1754 = vpop.f32.mrb[0].mxu0
    %1755 = vdwg.mxu0
    %v1756 = vxor.u32 %v1709, 2147483648
    %v1757 = vxor.u32 %v1711, 2147483648
    %v1758 = vxor.u32 %v1750, 2147483648
    %v1759 = vmul.f32 %v1756, 1.442695
    %v1760 = vpow.pop %v1759
    %v1761 = vmul.f32 %v1757, 1.442695
    %v1762 = vpow.pop %v1761
    %v1763 = vmul.f32 %v1758, 1.442695
    %v1764 = vpow.pop %v1763
    %v1765 = vadd.f32 %v1760, 1.0
    %v1766 = vadd.f32 %v1762, 1.0
    %v1767 = vadd.f32 %v1764, 1.0
    %v1768 = vrcp.pop %v1765
    %v1769 = vmul.f32 1.0, %v1768
    %v1770 = vrcp.pop %v1766
    %v1771 = vmul.f32 1.0, %v1770
    %v1772 = vrcp.pop %v1767
    %v1773 = vmul.f32 1.0, %v1772
    %v1774 = vtanh.pop %v1752
    %v1775 = vmul.f32 %v1771, %v1554
    %v1776 = vmul.f32 %v1769, %v1774
    %v1777 = vadd.f32 %v1775, %v1776
    %v1778 = vtanh.pop %v1777
    %v1779 = vmul.f32 %v1773, %v1778
    %s1780 = scalar_lea.vmem %s0, 160
    %v1781 = vld [vmem:[%s1780] sm:$0xff]
    %v1782 = vld [vmem:[%s1780 + $0x8] sm:$0xff]
    %v1783 = vld [vmem:[%s1780 + $0x10] sm:$0xff]
    %v1784 = vld [vmem:[%s1780 + $0x18] sm:$0xff]
    %1785 = vmatprep.subr.bf16.mxu0 %v288
    %1786 = vmatpush1.bf16.msra.mxu0 %v287
    %1787 = vmatprep.subr.bf16.mxu0 %v292
    %1788 = vmatpush1.bf16.msra.mxu0 %v291
    %1789 = vmatprep.subr.bf16.mxu0 %v296
    %1790 = vmatpush1.bf16.msra.mxu0 %v295
    %1791 = vmatprep.subr.bf16.mxu0 %v300
    %1792 = vmatpush1.bf16.msra.mxu0 %v299
    %1793 = vmatprep.subr.bf16.mxu0 %v304
    %1794 = vmatpush1.bf16.msra.mxu0 %v303
    %1795 = vmatprep.subr.bf16.mxu0 %v308
    %1796 = vmatpush1.bf16.msra.mxu0 %v307
    %1797 = vmatprep.subr.bf16.mxu0 %v312
    %1798 = vmatpush1.bf16.msra.mxu0 %v311
    %1799 = vmatprep.subr.bf16.mxu0 %v316
    %1800 = vmatpush1.bf16.msra.mxu0 %v315
    %1801 = vmatprep.subr.bf16.mxu0 0
    %1802 = vmatpush1.bf16.msra.mxu0 0
    %1803 = vmatprep.subr.bf16.mxu0 0
    %1804 = vmatpush1.bf16.msra.mxu0 0
    %1805 = vmatprep.subr.bf16.mxu0 0
    %1806 = vmatpush1.bf16.msra.mxu0 0
    %1807 = vmatprep.subr.bf16.mxu0 0
    %1808 = vmatpush1.bf16.msra.mxu0 0
    %1809 = vmatprep.subr.bf16.mxu0 0
    %1810 = vmatpush1.bf16.msra.mxu0 0
    %1811 = vmatprep.subr.bf16.mxu0 0
    %1812 = vmatpush1.bf16.msra.mxu0 0
    %1813 = vmatprep.subr.bf16.mxu0 0
    %1814 = vmatpush1.bf16.msra.mxu0 0
    %1815 = vmatprep.subr.bf16.mxu0 0
    %1816 = vmatpush1.bf16.msra.mxu0 0
    %1817 = vmatprep.mubr.bf16.mxu0 0
    %1818 = vmatmul.mubr.bf16.gmra.mrb[0].mxu0 %v1672
    %v1819 = vpop.f32.mrb[0].mxu0
    %v1820 = vadd.f32 0.0, %v1819
    %v1821 = vpop.f32.mrb[0].mxu0
    %v1822 = vadd.f32 0.0, %v1821
    %v1823 = vpop.f32.mrb[0].mxu0
    %v1824 = vpop.f32.mrb[0].mxu0
    %1825 = vdwg.mxu0
    %1826 = vmatprep.subr.bf16.mxu0 %v290
    %1827 = vmatpush1.bf16.msra.mxu0 %v289
    %1828 = vmatprep.subr.bf16.mxu0 %v294
    %1829 = vmatpush1.bf16.msra.mxu0 %v293
    %1830 = vmatprep.subr.bf16.mxu0 %v298
    %1831 = vmatpush1.bf16.msra.mxu0 %v297
    %1832 = vmatprep.subr.bf16.mxu0 %v302
    %1833 = vmatpush1.bf16.msra.mxu0 %v301
    %1834 = vmatprep.subr.bf16.mxu0 %v306
    %1835 = vmatpush1.bf16.msra.mxu0 %v305
    %1836 = vmatprep.subr.bf16.mxu0 %v310
    %1837 = vmatpush1.bf16.msra.mxu0 %v309
    %1838 = vmatprep.subr.bf16.mxu0 %v314
    %1839 = vmatpush1.bf16.msra.mxu0 %v313
    %1840 = vmatprep.subr.bf16.mxu0 %v318
    %1841 = vmatpush1.bf16.msra.mxu0 %v317
    %1842 = vmatprep.subr.bf16.mxu0 0
    %1843 = vmatpush1.bf16.msra.mxu0 0
    %1844 = vmatprep.subr.bf16.mxu0 0
    %1845 = vmatpush1.bf16.msra.mxu0 0
    %1846 = vmatprep.subr.bf16.mxu0 0
    %1847 = vmatpush1.bf16.msra.mxu0 0
    %1848 = vmatprep.subr.bf16.mxu0 0
    %1849 = vmatpush1.bf16.msra.mxu0 0
    %1850 = vmatprep.subr.bf16.mxu0 0
    %1851 = vmatpush1.bf16.msra.mxu0 0
    %1852 = vmatprep.subr.bf16.mxu0 0
    %1853 = vmatpush1.bf16.msra.mxu0 0
    %1854 = vmatprep.subr.bf16.mxu0 0
    %1855 = vmatpush1.bf16.msra.mxu0 0
    %1856 = vmatprep.subr.bf16.mxu0 0
    %1857 = vmatpush1.bf16.msra.mxu0 0
    %1858 = vmatprep.mubr.bf16.mxu0 0
    %1859 = vmatmul.mubr.bf16.gmra.mrb[0].mxu0 %v1672
    %v1860 = vpop.f32.mrb[0].mxu0
    %v1861 = vadd.f32 0.0, %v1860
    %v1862 = vpop.f32.mrb[0].mxu0
    %v1863 = vadd.f32 0.0, %v1862
    %v1864 = vpop.f32.mrb[0].mxu0
    %v1865 = vpop.f32.mrb[0].mxu0
    %1866 = vdwg.mxu0
    %v1867 = vadd.f32 %v1781, %v1820
    %v1868 = vadd.f32 %v1782, %v1822
    %v1869 = vadd.f32 %v1783, %v1861
    %v1870 = vadd.f32 %v1784, %v1863
    %v1871 = vxor.u32 %v1867, 2147483648
    %v1872 = vxor.u32 %v1868, 2147483648
    %v1873 = vxor.u32 %v1869, 2147483648
    %v1874 = vmul.f32 %v1871, 1.442695
    %v1875 = vpow.pop %v1874
    %v1876 = vmul.f32 %v1872, 1.442695
    %v1877 = vpow.pop %v1876
    %v1878 = vmul.f32 %v1873, 1.442695
    %v1879 = vpow.pop %v1878
    %v1880 = vadd.f32 %v1875, 1.0
    %v1881 = vadd.f32 %v1877, 1.0
    %v1882 = vadd.f32 %v1879, 1.0
    %v1883 = vrcp.pop %v1880
    %v1884 = vmul.f32 1.0, %v1883
    %v1885 = vrcp.pop %v1881
    %v1886 = vmul.f32 1.0, %v1885
    %v1887 = vrcp.pop %v1882
    %v1888 = vmul.f32 1.0, %v1887
    %v1889 = vtanh.pop %v1870
    %v1890 = vmul.f32 %v1886, %v1669
    %v1891 = vmul.f32 %v1884, %v1889
    %v1892 = vadd.f32 %v1890, %v1891
    %v1893 = vtanh.pop %v1892
    %v1894 = vmul.f32 %v1888, %v1893
    %v1895 = vpack.c.bf16 %v1894, %v1894
    %v1896 = vpack.c.bf16 %v1779, %v1779
    %1897 = vmatprep.subr.bf16.mxu0 %v655
    %1898 = vmatpush1.bf16.msra.mxu0 %v654
    %1899 = vmatprep.subr.bf16.mxu0 %v659
    %1900 = vmatpush1.bf16.msra.mxu0 %v658
    %1901 = vmatprep.subr.bf16.mxu0 %v663
    %1902 = vmatpush1.bf16.msra.mxu0 %v662
    %1903 = vmatprep.subr.bf16.mxu0 %v667
    %1904 = vmatpush1.bf16.msra.mxu0 %v666
    %1905 = vmatprep.subr.bf16.mxu0 %v671
    %1906 = vmatpush1.bf16.msra.mxu0 %v670
    %1907 = vmatprep.subr.bf16.mxu0 %v675
    %1908 = vmatpush1.bf16.msra.mxu0 %v674
    %1909 = vmatprep.subr.bf16.mxu0 %v679
    %1910 = vmatpush1.bf16.msra.mxu0 %v678
    %1911 = vmatprep.subr.bf16.mxu0 %v683
    %1912 = vmatpush1.bf16.msra.mxu0 %v682
    %1913 = vmatprep.subr.bf16.mxu0 %v687
    %1914 = vmatpush1.bf16.msra.mxu0 %v686
    %1915 = vmatprep.subr.bf16.mxu0 %v691
    %1916 = vmatpush1.bf16.msra.mxu0 %v690
    %1917 = vmatprep.subr.bf16.mxu0 %v695
    %1918 = vmatpush1.bf16.msra.mxu0 %v694
    %1919 = vmatprep.subr.bf16.mxu0 %v699
    %1920 = vmatpush1.bf16.msra.mxu0 %v698
    %1921 = vmatprep.subr.bf16.mxu0 %v703
    %1922 = vmatpush1.bf16.msra.mxu0 %v702
    %1923 = vmatprep.subr.bf16.mxu0 %v707
    %1924 = vmatpush1.bf16.msra.mxu0 %v706
    %1925 = vmatprep.subr.bf16.mxu0 %v711
    %1926 = vmatpush1.bf16.msra.mxu0 %v710
    %1927 = vmatprep.subr.bf16.mxu0 %v715
    %1928 = vmatpush1.bf16.msra.mxu0 %v714
    %1929 = vmatprep.mubr.bf16.mxu0 %v1896
    %1930 = vmatmul.mubr.bf16.gmra.mrb[0].mxu0 %v1895
    %v1931 = vpop.f32.mrb[0].mxu0
    %v1932 = vadd.f32 %v170, %v1931
    %v1933 = vpop.f32.mrb[0].mxu0
    %v1934 = vadd.f32 %v174, %v1933
    %v1935 = vpop.f32.mrb[0].mxu0
    %v1936 = vpop.f32.mrb[0].mxu0
    %1937 = vdwg.mxu0
    %1938 = vmatprep.subr.bf16.mxu0 %v657
    %1939 = vmatpush1.bf16.msra.mxu0 %v656
    %1940 = vmatprep.subr.bf16.mxu0 %v661
    %1941 = vmatpush1.bf16.msra.mxu0 %v660
    %1942 = vmatprep.subr.bf16.mxu0 %v665
    %1943 = vmatpush1.bf16.msra.mxu0 %v664
    %1944 = vmatprep.subr.bf16.mxu0 %v669
    %1945 = vmatpush1.bf16.msra.mxu0 %v668
    %1946 = vmatprep.subr.bf16.mxu0 %v673
    %1947 = vmatpush1.bf16.msra.mxu0 %v672
    %1948 = vmatprep.subr.bf16.mxu0 %v677
    %1949 = vmatpush1.bf16.msra.mxu0 %v676
    %1950 = vmatprep.subr.bf16.mxu0 %v681
    %1951 = vmatpush1.bf16.msra.mxu0 %v680
    %1952 = vmatprep.subr.bf16.mxu0 %v685
    %1953 = vmatpush1.bf16.msra.mxu0 %v684
    %1954 = vmatprep.subr.bf16.mxu0 %v689
    %1955 = vmatpush1.bf16.msra.mxu0 %v688
    %1956 = vmatprep.subr.bf16.mxu0 %v693
    %1957 = vmatpush1.bf16.msra.mxu0 %v692
    %1958 = vmatprep.subr.bf16.mxu0 %v697
    %1959 = vmatpush1.bf16.msra.mxu0 %v696
    %1960 = vmatprep.subr.bf16.mxu0 %v701
    %1961 = vmatpush1.bf16.msra.mxu0 %v700
    %1962 = vmatprep.subr.bf16.mxu0 %v705
    %1963 = vmatpush1.bf16.msra.mxu0 %v704
    %1964 = vmatprep.subr.bf16.mxu0 %v709
    %1965 = vmatpush1.bf16.msra.mxu0 %v708
    %1966 = vmatprep.subr.bf16.mxu0 %v713
    %1967 = vmatpush1.bf16.msra.mxu0 %v712
    %1968 = vmatprep.subr.bf16.mxu0 %v717
    %1969 = vmatpush1.bf16.msra.mxu0 %v716
    %1970 = vmatprep.mubr.bf16.mxu0 %v1896
    %1971 = vmatmul.mubr.bf16.gmra.mrb[0].mxu0 %v1895
    %v1972 = vpop.f32.mrb[0].mxu0
    %v1973 = vadd.f32 %v178, %v1972
    %v1974 = vpop.f32.mrb[0].mxu0
    %v1975 = vadd.f32 %v182, %v1974
    %v1976 = vpop.f32.mrb[0].mxu0
    %v1977 = vpop.f32.mrb[0].mxu0
    %1978 = vdwg.mxu0
    %v1979 = vxor.u32 %v1932, 2147483648
    %v1980 = vxor.u32 %v1934, 2147483648
    %v1981 = vxor.u32 %v1973, 2147483648
    %v1982 = vmul.f32 %v1979, 1.442695
    %v1983 = vpow.pop %v1982
    %v1984 = vmul.f32 %v1980, 1.442695
    %v1985 = vpow.pop %v1984
    %v1986 = vmul.f32 %v1981, 1.442695
    %v1987 = vpow.pop %v1986
    %v1988 = vadd.f32 %v1983, 1.0
    %v1989 = vadd.f32 %v1985, 1.0
    %v1990 = vadd.f32 %v1987, 1.0
    %v1991 = vrcp.pop %v1988
    %v1992 = vmul.f32 1.0, %v1991
    %v1993 = vrcp.pop %v1989
    %v1994 = vmul.f32 1.0, %v1993
    %v1995 = vrcp.pop %v1990
    %v1996 = vmul.f32 1.0, %v1995
    %v1997 = vtanh.pop %v1975
    %v1998 = vmul.f32 %v1994, %v1777
    %v1999 = vmul.f32 %v1992, %v1997
    %v2000 = vadd.f32 %v1998, %v1999
    %v2001 = vtanh.pop %v2000
    %v2002 = vmul.f32 %v1996, %v2001
    %s2003 = scalar_lea.vmem %s0, 192
    %v2004 = vld [vmem:[%s2003] sm:$0xff]
    %v2005 = vld [vmem:[%s2003 + $0x8] sm:$0xff]
    %v2006 = vld [vmem:[%s2003 + $0x10] sm:$0xff]
    %v2007 = vld [vmem:[%s2003 + $0x18] sm:$0xff]
    %2008 = vmatprep.subr.bf16.mxu0 %v288
    %2009 = vmatpush1.bf16.msra.mxu0 %v287
    %2010 = vmatprep.subr.bf16.mxu0 %v292
    %2011 = vmatpush1.bf16.msra.mxu0 %v291
    %2012 = vmatprep.subr.bf16.mxu0 %v296
    %2013 = vmatpush1.bf16.msra.mxu0 %v295
    %2014 = vmatprep.subr.bf16.mxu0 %v300
    %2015 = vmatpush1.bf16.msra.mxu0 %v299
    %2016 = vmatprep.subr.bf16.mxu0 %v304
    %2017 = vmatpush1.bf16.msra.mxu0 %v303
    %2018 = vmatprep.subr.bf16.mxu0 %v308
    %2019 = vmatpush1.bf16.msra.mxu0 %v307
    %2020 = vmatprep.subr.bf16.mxu0 %v312
    %2021 = vmatpush1.bf16.msra.mxu0 %v311
    %2022 = vmatprep.subr.bf16.mxu0 %v316
    %2023 = vmatpush1.bf16.msra.mxu0 %v315
    %2024 = vmatprep.subr.bf16.mxu0 0
    %2025 = vmatpush1.bf16.msra.mxu0 0
    %2026 = vmatprep.subr.bf16.mxu0 0
    %2027 = vmatpush1.bf16.msra.mxu0 0
    %2028 = vmatprep.subr.bf16.mxu0 0
    %2029 = vmatpush1.bf16.msra.mxu0 0
    %2030 = vmatprep.subr.bf16.mxu0 0
    %2031 = vmatpush1.bf16.msra.mxu0 0
    %2032 = vmatprep.subr.bf16.mxu0 0
    %2033 = vmatpush1.bf16.msra.mxu0 0
    %2034 = vmatprep.subr.bf16.mxu0 0
    %2035 = vmatpush1.bf16.msra.mxu0 0
    %2036 = vmatprep.subr.bf16.mxu0 0
    %2037 = vmatpush1.bf16.msra.mxu0 0
    %2038 = vmatprep.subr.bf16.mxu0 0
    %2039 = vmatpush1.bf16.msra.mxu0 0
    %2040 = vmatprep.mubr.bf16.mxu0 0
    %2041 = vmatmul.mubr.bf16.gmra.mrb[0].mxu0 %v1895
    %v2042 = vpop.f32.mrb[0].mxu0
    %v2043 = vadd.f32 0.0, %v2042
    %v2044 = vpop.f32.mrb[0].mxu0
    %v2045 = vadd.f32 0.0, %v2044
    %v2046 = vpop.f32.mrb[0].mxu0
    %v2047 = vpop.f32.mrb[0].mxu0
    %2048 = vdwg.mxu0
    %2049 = vmatprep.subr.bf16.mxu0 %v290
    %2050 = vmatpush1.bf16.msra.mxu0 %v289
    %2051 = vmatprep.subr.bf16.mxu0 %v294
    %2052 = vmatpush1.bf16.msra.mxu0 %v293
    %2053 = vmatprep.subr.bf16.mxu0 %v298
    %2054 = vmatpush1.bf16.msra.mxu0 %v297
    %2055 = vmatprep.subr.bf16.mxu0 %v302
    %2056 = vmatpush1.bf16.msra.mxu0 %v301
    %2057 = vmatprep.subr.bf16.mxu0 %v306
    %2058 = vmatpush1.bf16.msra.mxu0 %v305
    %2059 = vmatprep.subr.bf16.mxu0 %v310
    %2060 = vmatpush1.bf16.msra.mxu0 %v309
    %2061 = vmatprep.subr.bf16.mxu0 %v314
    %2062 = vmatpush1.bf16.msra.mxu0 %v313
    %2063 = vmatprep.subr.bf16.mxu0 %v318
    %2064 = vmatpush1.bf16.msra.mxu0 %v317
    %2065 = vmatprep.subr.bf16.mxu0 0
    %2066 = vmatpush1.bf16.msra.mxu0 0
    %2067 = vmatprep.subr.bf16.mxu0 0
    %2068 = vmatpush1.bf16.msra.mxu0 0
    %2069 = vmatprep.subr.bf16.mxu0 0
    %2070 = vmatpush1.bf16.msra.mxu0 0
    %2071 = vmatprep.subr.bf16.mxu0 0
    %2072 = vmatpush1.bf16.msra.mxu0 0
    %2073 = vmatprep.subr.bf16.mxu0 0
    %2074 = vmatpush1.bf16.msra.mxu0 0
    %2075 = vmatprep.subr.bf16.mxu0 0
    %2076 = vmatpush1.bf16.msra.mxu0 0
    %2077 = vmatprep.subr.bf16.mxu0 0
    %2078 = vmatpush1.bf16.msra.mxu0 0
    %2079 = vmatprep.subr.bf16.mxu0 0
    %2080 = vmatpush1.bf16.msra.mxu0 0
    %2081 = vmatprep.mubr.bf16.mxu0 0
    %2082 = vmatmul.mubr.bf16.gmra.mrb[0].mxu0 %v1895
    %v2083 = vpop.f32.mrb[0].mxu0
    %v2084 = vadd.f32 0.0, %v2083
    %v2085 = vpop.f32.mrb[0].mxu0
    %v2086 = vadd.f32 0.0, %v2085
    %v2087 = vpop.f32.mrb[0].mxu0
    %v2088 = vpop.f32.mrb[0].mxu0
    %2089 = vdwg.mxu0
    %v2090 = vadd.f32 %v2004, %v2043
    %v2091 = vadd.f32 %v2005, %v2045
    %v2092 = vadd.f32 %v2006, %v2084
    %v2093 = vadd.f32 %v2007, %v2086
    %v2094 = vxor.u32 %v2090, 2147483648
    %v2095 = vxor.u32 %v2091, 2147483648
    %v2096 = vxor.u32 %v2092, 2147483648
    %v2097 = vmul.f32 %v2094, 1.442695
    %v2098 = vpow.pop %v2097
    %v2099 = vmul.f32 %v2095, 1.442695
    %v2100 = vpow.pop %v2099
    %v2101 = vmul.f32 %v2096, 1.442695
    %v2102 = vpow.pop %v2101
    %v2103 = vadd.f32 %v2098, 1.0
    %v2104 = vadd.f32 %v2100, 1.0
    %v2105 = vadd.f32 %v2102, 1.0
    %v2106 = vrcp.pop %v2103
    %v2107 = vmul.f32 1.0, %v2106
    %v2108 = vrcp.pop %v2104
    %v2109 = vmul.f32 1.0, %v2108
    %v2110 = vrcp.pop %v2105
    %v2111 = vmul.f32 1.0, %v2110
    %v2112 = vtanh.pop %v2093
    %v2113 = vmul.f32 %v2109, %v1892
    %v2114 = vmul.f32 %v2107, %v2112
    %v2115 = vadd.f32 %v2113, %v2114
    %v2116 = vtanh.pop %v2115
    %v2117 = vmul.f32 %v2111, %v2116
    %v2118 = vpack.c.bf16 %v2117, %v2117
    %v2119 = vpack.c.bf16 %v2002, %v2002
    %2120 = vmatprep.subr.bf16.mxu0 %v655
    %2121 = vmatpush1.bf16.msra.mxu0 %v654
    %2122 = vmatprep.subr.bf16.mxu0 %v659
    %2123 = vmatpush1.bf16.msra.mxu0 %v658
    %2124 = vmatprep.subr.bf16.mxu0 %v663
    %2125 = vmatpush1.bf16.msra.mxu0 %v662
    %2126 = vmatprep.subr.bf16.mxu0 %v667
    %2127 = vmatpush1.bf16.msra.mxu0 %v666
    %2128 = vmatprep.subr.bf16.mxu0 %v671
    %2129 = vmatpush1.bf16.msra.mxu0 %v670
    %2130 = vmatprep.subr.bf16.mxu0 %v675
    %2131 = vmatpush1.bf16.msra.mxu0 %v674
    %2132 = vmatprep.subr.bf16.mxu0 %v679
    %2133 = vmatpush1.bf16.msra.mxu0 %v678
    %2134 = vmatprep.subr.bf16.mxu0 %v683
    %2135 = vmatpush1.bf16.msra.mxu0 %v682
    %2136 = vmatprep.subr.bf16.mxu0 %v687
    %2137 = vmatpush1.bf16.msra.mxu0 %v686
    %2138 = vmatprep.subr.bf16.mxu0 %v691
    %2139 = vmatpush1.bf16.msra.mxu0 %v690
    %2140 = vmatprep.subr.bf16.mxu0 %v695
    %2141 = vmatpush1.bf16.msra.mxu0 %v694
    %2142 = vmatprep.subr.bf16.mxu0 %v699
    %2143 = vmatpush1.bf16.msra.mxu0 %v698
    %2144 = vmatprep.subr.bf16.mxu0 %v703
    %2145 = vmatpush1.bf16.msra.mxu0 %v702
    %2146 = vmatprep.subr.bf16.mxu0 %v707
    %2147 = vmatpush1.bf16.msra.mxu0 %v706
    %2148 = vmatprep.subr.bf16.mxu0 %v711
    %2149 = vmatpush1.bf16.msra.mxu0 %v710
    %2150 = vmatprep.subr.bf16.mxu0 %v715
    %2151 = vmatpush1.bf16.msra.mxu0 %v714
    %2152 = vmatprep.mubr.bf16.mxu0 %v2119
    %2153 = vmatmul.mubr.bf16.gmra.mrb[0].mxu0 %v2118
    %v2154 = vpop.f32.mrb[0].mxu0
    %v2155 = vadd.f32 %v170, %v2154
    %v2156 = vpop.f32.mrb[0].mxu0
    %v2157 = vadd.f32 %v174, %v2156
    %v2158 = vpop.f32.mrb[0].mxu0
    %v2159 = vpop.f32.mrb[0].mxu0
    %2160 = vdwg.mxu0
    %2161 = vmatprep.subr.bf16.mxu0 %v657
    %2162 = vmatpush1.bf16.msra.mxu0 %v656
    %2163 = vmatprep.subr.bf16.mxu0 %v661
    %2164 = vmatpush1.bf16.msra.mxu0 %v660
    %2165 = vmatprep.subr.bf16.mxu0 %v665
    %2166 = vmatpush1.bf16.msra.mxu0 %v664
    %2167 = vmatprep.subr.bf16.mxu0 %v669
    %2168 = vmatpush1.bf16.msra.mxu0 %v668
    %2169 = vmatprep.subr.bf16.mxu0 %v673
    %2170 = vmatpush1.bf16.msra.mxu0 %v672
    %2171 = vmatprep.subr.bf16.mxu0 %v677
    %2172 = vmatpush1.bf16.msra.mxu0 %v676
    %2173 = vmatprep.subr.bf16.mxu0 %v681
    %2174 = vmatpush1.bf16.msra.mxu0 %v680
    %2175 = vmatprep.subr.bf16.mxu0 %v685
    %2176 = vmatpush1.bf16.msra.mxu0 %v684
    %2177 = vmatprep.subr.bf16.mxu0 %v689
    %2178 = vmatpush1.bf16.msra.mxu0 %v688
    %2179 = vmatprep.subr.bf16.mxu0 %v693
    %2180 = vmatpush1.bf16.msra.mxu0 %v692
    %2181 = vmatprep.subr.bf16.mxu0 %v697
    %2182 = vmatpush1.bf16.msra.mxu0 %v696
    %2183 = vmatprep.subr.bf16.mxu0 %v701
    %2184 = vmatpush1.bf16.msra.mxu0 %v700
    %2185 = vmatprep.subr.bf16.mxu0 %v705
    %2186 = vmatpush1.bf16.msra.mxu0 %v704
    %2187 = vmatprep.subr.bf16.mxu0 %v709
    %2188 = vmatpush1.bf16.msra.mxu0 %v708
    %2189 = vmatprep.subr.bf16.mxu0 %v713
    %2190 = vmatpush1.bf16.msra.mxu0 %v712
    %2191 = vmatprep.subr.bf16.mxu0 %v717
    %2192 = vmatpush1.bf16.msra.mxu0 %v716
    %2193 = vmatprep.mubr.bf16.mxu0 %v2119
    %2194 = vmatmul.mubr.bf16.gmra.mrb[0].mxu0 %v2118
    %v2195 = vpop.f32.mrb[0].mxu0
    %v2196 = vadd.f32 %v178, %v2195
    %v2197 = vpop.f32.mrb[0].mxu0
    %v2198 = vadd.f32 %v182, %v2197
    %v2199 = vpop.f32.mrb[0].mxu0
    %v2200 = vpop.f32.mrb[0].mxu0
    %2201 = vdwg.mxu0
    %v2202 = vxor.u32 %v2155, 2147483648
    %v2203 = vxor.u32 %v2157, 2147483648
    %v2204 = vxor.u32 %v2196, 2147483648
    %v2205 = vmul.f32 %v2202, 1.442695
    %v2206 = vpow.pop %v2205
    %v2207 = vmul.f32 %v2203, 1.442695
    %v2208 = vpow.pop %v2207
    %v2209 = vmul.f32 %v2204, 1.442695
    %v2210 = vpow.pop %v2209
    %v2211 = vadd.f32 %v2206, 1.0
    %v2212 = vadd.f32 %v2208, 1.0
    %v2213 = vadd.f32 %v2210, 1.0
    %v2214 = vrcp.pop %v2211
    %v2215 = vmul.f32 1.0, %v2214
    %v2216 = vrcp.pop %v2212
    %v2217 = vmul.f32 1.0, %v2216
    %v2218 = vrcp.pop %v2213
    %v2219 = vmul.f32 1.0, %v2218
    %v2220 = vtanh.pop %v2198
    %v2221 = vmul.f32 %v2217, %v2000
    %v2222 = vmul.f32 %v2215, %v2220
    %v2223 = vadd.f32 %v2221, %v2222
    %v2224 = vtanh.pop %v2223
    %v2225 = vmul.f32 %v2219, %v2224
    %s2226 = scalar_lea.vmem %s0, 224
    %v2227 = vld [vmem:[%s2226] sm:$0xff]
    %v2228 = vld [vmem:[%s2226 + $0x8] sm:$0xff]
    %v2229 = vld [vmem:[%s2226 + $0x10] sm:$0xff]
    %v2230 = vld [vmem:[%s2226 + $0x18] sm:$0xff]
    %2231 = vmatprep.subr.bf16.mxu0 %v288
    %2232 = vmatpush1.bf16.msra.mxu0 %v287
    %2233 = vmatprep.subr.bf16.mxu0 %v292
    %2234 = vmatpush1.bf16.msra.mxu0 %v291
    %2235 = vmatprep.subr.bf16.mxu0 %v296
    %2236 = vmatpush1.bf16.msra.mxu0 %v295
    %2237 = vmatprep.subr.bf16.mxu0 %v300
    %2238 = vmatpush1.bf16.msra.mxu0 %v299
    %2239 = vmatprep.subr.bf16.mxu0 %v304
    %2240 = vmatpush1.bf16.msra.mxu0 %v303
    %2241 = vmatprep.subr.bf16.mxu0 %v308
    %2242 = vmatpush1.bf16.msra.mxu0 %v307
    %2243 = vmatprep.subr.bf16.mxu0 %v312
    %2244 = vmatpush1.bf16.msra.mxu0 %v311
    %2245 = vmatprep.subr.bf16.mxu0 %v316
    %2246 = vmatpush1.bf16.msra.mxu0 %v315
    %2247 = vmatprep.subr.bf16.mxu0 0
    %2248 = vmatpush1.bf16.msra.mxu0 0
    %2249 = vmatprep.subr.bf16.mxu0 0
    %2250 = vmatpush1.bf16.msra.mxu0 0
    %2251 = vmatprep.subr.bf16.mxu0 0
    %2252 = vmatpush1.bf16.msra.mxu0 0
    %2253 = vmatprep.subr.bf16.mxu0 0
    %2254 = vmatpush1.bf16.msra.mxu0 0
    %2255 = vmatprep.subr.bf16.mxu0 0
    %2256 = vmatpush1.bf16.msra.mxu0 0
    %2257 = vmatprep.subr.bf16.mxu0 0
    %2258 = vmatpush1.bf16.msra.mxu0 0
    %2259 = vmatprep.subr.bf16.mxu0 0
    %2260 = vmatpush1.bf16.msra.mxu0 0
    %2261 = vmatprep.subr.bf16.mxu0 0
    %2262 = vmatpush1.bf16.msra.mxu0 0
    %2263 = vmatprep.mubr.bf16.mxu0 0
    %2264 = vmatmul.mubr.bf16.gmra.mrb[0].mxu0 %v2118
    %v2265 = vpop.f32.mrb[0].mxu0
    %v2266 = vadd.f32 0.0, %v2265
    %v2267 = vpop.f32.mrb[0].mxu0
    %v2268 = vadd.f32 0.0, %v2267
    %v2269 = vpop.f32.mrb[0].mxu0
    %v2270 = vpop.f32.mrb[0].mxu0
    %2271 = vdwg.mxu0
    %2272 = vmatprep.subr.bf16.mxu0 %v290
    %2273 = vmatpush1.bf16.msra.mxu0 %v289
    %2274 = vmatprep.subr.bf16.mxu0 %v294
    %2275 = vmatpush1.bf16.msra.mxu0 %v293
    %2276 = vmatprep.subr.bf16.mxu0 %v298
    %2277 = vmatpush1.bf16.msra.mxu0 %v297
    %2278 = vmatprep.subr.bf16.mxu0 %v302
    %2279 = vmatpush1.bf16.msra.mxu0 %v301
    %2280 = vmatprep.subr.bf16.mxu0 %v306
    %2281 = vmatpush1.bf16.msra.mxu0 %v305
    %2282 = vmatprep.subr.bf16.mxu0 %v310
    %2283 = vmatpush1.bf16.msra.mxu0 %v309
    %2284 = vmatprep.subr.bf16.mxu0 %v314
    %2285 = vmatpush1.bf16.msra.mxu0 %v313
    %2286 = vmatprep.subr.bf16.mxu0 %v318
    %2287 = vmatpush1.bf16.msra.mxu0 %v317
    %2288 = vmatprep.subr.bf16.mxu0 0
    %2289 = vmatpush1.bf16.msra.mxu0 0
    %2290 = vmatprep.subr.bf16.mxu0 0
    %2291 = vmatpush1.bf16.msra.mxu0 0
    %2292 = vmatprep.subr.bf16.mxu0 0
    %2293 = vmatpush1.bf16.msra.mxu0 0
    %2294 = vmatprep.subr.bf16.mxu0 0
    %2295 = vmatpush1.bf16.msra.mxu0 0
    %2296 = vmatprep.subr.bf16.mxu0 0
    %2297 = vmatpush1.bf16.msra.mxu0 0
    %2298 = vmatprep.subr.bf16.mxu0 0
    %2299 = vmatpush1.bf16.msra.mxu0 0
    %2300 = vmatprep.subr.bf16.mxu0 0
    %2301 = vmatpush1.bf16.msra.mxu0 0
    %2302 = vmatprep.subr.bf16.mxu0 0
    %2303 = vmatpush1.bf16.msra.mxu0 0
    %2304 = vmatprep.mubr.bf16.mxu0 0
    %2305 = vmatmul.mubr.bf16.gmra.mrb[0].mxu0 %v2118
    %v2306 = vpop.f32.mrb[0].mxu0
    %v2307 = vadd.f32 0.0, %v2306
    %v2308 = vpop.f32.mrb[0].mxu0
    %v2309 = vadd.f32 0.0, %v2308
    %v2310 = vpop.f32.mrb[0].mxu0
    %v2311 = vpop.f32.mrb[0].mxu0
    %2312 = vdwg.mxu0
    %v2313 = vadd.f32 %v2227, %v2266
    %v2314 = vadd.f32 %v2228, %v2268
    %v2315 = vadd.f32 %v2229, %v2307
    %v2316 = vadd.f32 %v2230, %v2309
    %v2317 = vxor.u32 %v2313, 2147483648
    %v2318 = vxor.u32 %v2314, 2147483648
    %v2319 = vxor.u32 %v2315, 2147483648
    %v2320 = vmul.f32 %v2317, 1.442695
    %v2321 = vpow.pop %v2320
    %v2322 = vmul.f32 %v2318, 1.442695
    %v2323 = vpow.pop %v2322
    %v2324 = vmul.f32 %v2319, 1.442695
    %v2325 = vpow.pop %v2324
    %v2326 = vadd.f32 %v2321, 1.0
    %v2327 = vadd.f32 %v2323, 1.0
    %v2328 = vadd.f32 %v2325, 1.0
    %v2329 = vrcp.pop %v2326
    %v2330 = vmul.f32 1.0, %v2329
    %v2331 = vrcp.pop %v2327
    %v2332 = vmul.f32 1.0, %v2331
    %v2333 = vrcp.pop %v2328
    %v2334 = vmul.f32 1.0, %v2333
    %v2335 = vtanh.pop %v2316
    %v2336 = vmul.f32 %v2332, %v2115
    %v2337 = vmul.f32 %v2330, %v2335
    %v2338 = vadd.f32 %v2336, %v2337
    %v2339 = vtanh.pop %v2338
    %v2340 = vmul.f32 %v2334, %v2339
    %v2341 = vpack.c.bf16 %v2340, %v2340
    %v2342 = vpack.c.bf16 %v2225, %v2225
    %2343 = vmatprep.subr.bf16.mxu0 %v655
    %2344 = vmatpush1.bf16.msra.mxu0 %v654
    %2345 = vmatprep.subr.bf16.mxu0 %v659
    %2346 = vmatpush1.bf16.msra.mxu0 %v658
    %2347 = vmatprep.subr.bf16.mxu0 %v663
    %2348 = vmatpush1.bf16.msra.mxu0 %v662
    %2349 = vmatprep.subr.bf16.mxu0 %v667
    %2350 = vmatpush1.bf16.msra.mxu0 %v666
    %2351 = vmatprep.subr.bf16.mxu0 %v671
    %2352 = vmatpush1.bf16.msra.mxu0 %v670
    %2353 = vmatprep.subr.bf16.mxu0 %v675
    %2354 = vmatpush1.bf16.msra.mxu0 %v674
    %2355 = vmatprep.subr.bf16.mxu0 %v679
    %2356 = vmatpush1.bf16.msra.mxu0 %v678
    %2357 = vmatprep.subr.bf16.mxu0 %v683
    %2358 = vmatpush1.bf16.msra.mxu0 %v682
    %2359 = vmatprep.subr.bf16.mxu0 %v687
    %2360 = vmatpush1.bf16.msra.mxu0 %v686
    %2361 = vmatprep.subr.bf16.mxu0 %v691
    %2362 = vmatpush1.bf16.msra.mxu0 %v690
    %2363 = vmatprep.subr.bf16.mxu0 %v695
    %2364 = vmatpush1.bf16.msra.mxu0 %v694
    %2365 = vmatprep.subr.bf16.mxu0 %v699
    %2366 = vmatpush1.bf16.msra.mxu0 %v698
    %2367 = vmatprep.subr.bf16.mxu0 %v703
    %2368 = vmatpush1.bf16.msra.mxu0 %v702
    %2369 = vmatprep.subr.bf16.mxu0 %v707
    %2370 = vmatpush1.bf16.msra.mxu0 %v706
    %2371 = vmatprep.subr.bf16.mxu0 %v711
    %2372 = vmatpush1.bf16.msra.mxu0 %v710
    %2373 = vmatprep.subr.bf16.mxu0 %v715
    %2374 = vmatpush1.bf16.msra.mxu0 %v714
    %2375 = vmatprep.mubr.bf16.mxu0 %v2342
    %2376 = vmatmul.mubr.bf16.gmra.mrb[0].mxu0 %v2341
    %v2377 = vpop.f32.mrb[0].mxu0
    %v2378 = vadd.f32 %v170, %v2377
    %v2379 = vpop.f32.mrb[0].mxu0
    %v2380 = vadd.f32 %v174, %v2379
    %v2381 = vpop.f32.mrb[0].mxu0
    %v2382 = vpop.f32.mrb[0].mxu0
    %2383 = vdwg.mxu0
    %2384 = vmatprep.subr.bf16.mxu0 %v657
    %2385 = vmatpush1.bf16.msra.mxu0 %v656
    %2386 = vmatprep.subr.bf16.mxu0 %v661
    %2387 = vmatpush1.bf16.msra.mxu0 %v660
    %2388 = vmatprep.subr.bf16.mxu0 %v665
    %2389 = vmatpush1.bf16.msra.mxu0 %v664
    %2390 = vmatprep.subr.bf16.mxu0 %v669
    %2391 = vmatpush1.bf16.msra.mxu0 %v668
    %2392 = vmatprep.subr.bf16.mxu0 %v673
    %2393 = vmatpush1.bf16.msra.mxu0 %v672
    %2394 = vmatprep.subr.bf16.mxu0 %v677
    %2395 = vmatpush1.bf16.msra.mxu0 %v676
    %2396 = vmatprep.subr.bf16.mxu0 %v681
    %2397 = vmatpush1.bf16.msra.mxu0 %v680
    %2398 = vmatprep.subr.bf16.mxu0 %v685
    %2399 = vmatpush1.bf16.msra.mxu0 %v684
    %2400 = vmatprep.subr.bf16.mxu0 %v689
    %2401 = vmatpush1.bf16.msra.mxu0 %v688
    %2402 = vmatprep.subr.bf16.mxu0 %v693
    %2403 = vmatpush1.bf16.msra.mxu0 %v692
    %2404 = vmatprep.subr.bf16.mxu0 %v697
    %2405 = vmatpush1.bf16.msra.mxu0 %v696
    %2406 = vmatprep.subr.bf16.mxu0 %v701
    %2407 = vmatpush1.bf16.msra.mxu0 %v700
    %2408 = vmatprep.subr.bf16.mxu0 %v705
    %2409 = vmatpush1.bf16.msra.mxu0 %v704
    %2410 = vmatprep.subr.bf16.mxu0 %v709
    %2411 = vmatpush1.bf16.msra.mxu0 %v708
    %2412 = vmatprep.subr.bf16.mxu0 %v713
    %2413 = vmatpush1.bf16.msra.mxu0 %v712
    %2414 = vmatprep.subr.bf16.mxu0 %v717
    %2415 = vmatpush1.bf16.msra.mxu0 %v716
    %2416 = vmatprep.mubr.bf16.mxu0 %v2342
    %2417 = vmatmul.mubr.bf16.gmra.mrb[0].mxu0 %v2341
    %v2418 = vpop.f32.mrb[0].mxu0
    %v2419 = vadd.f32 %v178, %v2418
    %v2420 = vpop.f32.mrb[0].mxu0
    %v2421 = vadd.f32 %v182, %v2420
    %v2422 = vpop.f32.mrb[0].mxu0
    %v2423 = vpop.f32.mrb[0].mxu0
    %2424 = vdwg.mxu0
    %v2425 = vxor.u32 %v2378, 2147483648
    %v2426 = vxor.u32 %v2380, 2147483648
    %v2427 = vxor.u32 %v2419, 2147483648
    %v2428 = vmul.f32 %v2425, 1.442695
    %v2429 = vpow.pop %v2428
    %v2430 = vmul.f32 %v2426, 1.442695
    %v2431 = vpow.pop %v2430
    %v2432 = vmul.f32 %v2427, 1.442695
    %v2433 = vpow.pop %v2432
    %v2434 = vadd.f32 %v2429, 1.0
    %v2435 = vadd.f32 %v2431, 1.0
    %v2436 = vadd.f32 %v2433, 1.0
    %v2437 = vrcp.pop %v2434
    %v2438 = vmul.f32 1.0, %v2437
    %v2439 = vrcp.pop %v2435
    %v2440 = vmul.f32 1.0, %v2439
    %v2441 = vrcp.pop %v2436
    %v2442 = vmul.f32 1.0, %v2441
    %v2443 = vtanh.pop %v2421
    %v2444 = vmul.f32 %v2440, %v2223
    %v2445 = vmul.f32 %v2438, %v2443
    %v2446 = vadd.f32 %v2444, %v2445
    %v2447 = vtanh.pop %v2446
    %v2448 = vmul.f32 %v2442, %v2447
    %s2449 = scalar_lea.vmem %s0, 256
    %v2450 = vld [vmem:[%s2449] sm:$0xff]
    %v2451 = vld [vmem:[%s2449 + $0x8] sm:$0xff]
    %v2452 = vld [vmem:[%s2449 + $0x10] sm:$0xff]
    %v2453 = vld [vmem:[%s2449 + $0x18] sm:$0xff]
    %2454 = vmatprep.subr.bf16.mxu0 %v288
    %2455 = vmatpush1.bf16.msra.mxu0 %v287
    %2456 = vmatprep.subr.bf16.mxu0 %v292
    %2457 = vmatpush1.bf16.msra.mxu0 %v291
    %2458 = vmatprep.subr.bf16.mxu0 %v296
    %2459 = vmatpush1.bf16.msra.mxu0 %v295
    %2460 = vmatprep.subr.bf16.mxu0 %v300
    %2461 = vmatpush1.bf16.msra.mxu0 %v299
    %2462 = vmatprep.subr.bf16.mxu0 %v304
    %2463 = vmatpush1.bf16.msra.mxu0 %v303
    %2464 = vmatprep.subr.bf16.mxu0 %v308
    %2465 = vmatpush1.bf16.msra.mxu0 %v307
    %2466 = vmatprep.subr.bf16.mxu0 %v312
    %2467 = vmatpush1.bf16.msra.mxu0 %v311
    %2468 = vmatprep.subr.bf16.mxu0 %v316
    %2469 = vmatpush1.bf16.msra.mxu0 %v315
    %2470 = vmatprep.subr.bf16.mxu0 0
    %2471 = vmatpush1.bf16.msra.mxu0 0
    %2472 = vmatprep.subr.bf16.mxu0 0
    %2473 = vmatpush1.bf16.msra.mxu0 0
    %2474 = vmatprep.subr.bf16.mxu0 0
    %2475 = vmatpush1.bf16.msra.mxu0 0
    %2476 = vmatprep.subr.bf16.mxu0 0
    %2477 = vmatpush1.bf16.msra.mxu0 0
    %2478 = vmatprep.subr.bf16.mxu0 0
    %2479 = vmatpush1.bf16.msra.mxu0 0
    %2480 = vmatprep.subr.bf16.mxu0 0
    %2481 = vmatpush1.bf16.msra.mxu0 0
    %2482 = vmatprep.subr.bf16.mxu0 0
    %2483 = vmatpush1.bf16.msra.mxu0 0
    %2484 = vmatprep.subr.bf16.mxu0 0
    %2485 = vmatpush1.bf16.msra.mxu0 0
    %2486 = vmatprep.mubr.bf16.mxu0 0
    %2487 = vmatmul.mubr.bf16.gmra.mrb[0].mxu0 %v2341
    %v2488 = vpop.f32.mrb[0].mxu0
    %v2489 = vadd.f32 0.0, %v2488
    %v2490 = vpop.f32.mrb[0].mxu0
    %v2491 = vadd.f32 0.0, %v2490
    %v2492 = vpop.f32.mrb[0].mxu0
    %v2493 = vpop.f32.mrb[0].mxu0
    %2494 = vdwg.mxu0
    %2495 = vmatprep.subr.bf16.mxu0 %v290
    %2496 = vmatpush1.bf16.msra.mxu0 %v289
    %2497 = vmatprep.subr.bf16.mxu0 %v294
    %2498 = vmatpush1.bf16.msra.mxu0 %v293
    %2499 = vmatprep.subr.bf16.mxu0 %v298
    %2500 = vmatpush1.bf16.msra.mxu0 %v297
    %2501 = vmatprep.subr.bf16.mxu0 %v302
    %2502 = vmatpush1.bf16.msra.mxu0 %v301
    %2503 = vmatprep.subr.bf16.mxu0 %v306
    %2504 = vmatpush1.bf16.msra.mxu0 %v305
    %2505 = vmatprep.subr.bf16.mxu0 %v310
    %2506 = vmatpush1.bf16.msra.mxu0 %v309
    %2507 = vmatprep.subr.bf16.mxu0 %v314
    %2508 = vmatpush1.bf16.msra.mxu0 %v313
    %2509 = vmatprep.subr.bf16.mxu0 %v318
    %2510 = vmatpush1.bf16.msra.mxu0 %v317
    %2511 = vmatprep.subr.bf16.mxu0 0
    %2512 = vmatpush1.bf16.msra.mxu0 0
    %2513 = vmatprep.subr.bf16.mxu0 0
    %2514 = vmatpush1.bf16.msra.mxu0 0
    %2515 = vmatprep.subr.bf16.mxu0 0
    %2516 = vmatpush1.bf16.msra.mxu0 0
    %2517 = vmatprep.subr.bf16.mxu0 0
    %2518 = vmatpush1.bf16.msra.mxu0 0
    %2519 = vmatprep.subr.bf16.mxu0 0
    %2520 = vmatpush1.bf16.msra.mxu0 0
    %2521 = vmatprep.subr.bf16.mxu0 0
    %2522 = vmatpush1.bf16.msra.mxu0 0
    %2523 = vmatprep.subr.bf16.mxu0 0
    %2524 = vmatpush1.bf16.msra.mxu0 0
    %2525 = vmatprep.subr.bf16.mxu0 0
    %2526 = vmatpush1.bf16.msra.mxu0 0
    %2527 = vmatprep.mubr.bf16.mxu0 0
    %2528 = vmatmul.mubr.bf16.gmra.mrb[0].mxu0 %v2341
    %v2529 = vpop.f32.mrb[0].mxu0
    %v2530 = vadd.f32 0.0, %v2529
    %v2531 = vpop.f32.mrb[0].mxu0
    %v2532 = vadd.f32 0.0, %v2531
    %v2533 = vpop.f32.mrb[0].mxu0
    %v2534 = vpop.f32.mrb[0].mxu0
    %2535 = vdwg.mxu0
    %v2536 = vadd.f32 %v2450, %v2489
    %v2537 = vadd.f32 %v2451, %v2491
    %v2538 = vadd.f32 %v2452, %v2530
    %v2539 = vadd.f32 %v2453, %v2532
    %v2540 = vxor.u32 %v2536, 2147483648
    %v2541 = vxor.u32 %v2537, 2147483648
    %v2542 = vxor.u32 %v2538, 2147483648
    %v2543 = vmul.f32 %v2540, 1.442695
    %v2544 = vpow.pop %v2543
    %v2545 = vmul.f32 %v2541, 1.442695
    %v2546 = vpow.pop %v2545
    %v2547 = vmul.f32 %v2542, 1.442695
    %v2548 = vpow.pop %v2547
    %v2549 = vadd.f32 %v2544, 1.0
    %v2550 = vadd.f32 %v2546, 1.0
    %v2551 = vadd.f32 %v2548, 1.0
    %v2552 = vrcp.pop %v2549
    %v2553 = vmul.f32 1.0, %v2552
    %v2554 = vrcp.pop %v2550
    %v2555 = vmul.f32 1.0, %v2554
    %v2556 = vrcp.pop %v2551
    %v2557 = vmul.f32 1.0, %v2556
    %v2558 = vtanh.pop %v2539
    %v2559 = vmul.f32 %v2555, %v2338
    %v2560 = vmul.f32 %v2553, %v2558
    %v2561 = vadd.f32 %v2559, %v2560
    %v2562 = vtanh.pop %v2561
    %v2563 = vmul.f32 %v2557, %v2562
    %v2564 = vpack.c.bf16 %v2563, %v2563
    %v2565 = vpack.c.bf16 %v2448, %v2448
    %2566 = vmatprep.subr.bf16.mxu0 %v655
    %2567 = vmatpush1.bf16.msra.mxu0 %v654
    %2568 = vmatprep.subr.bf16.mxu0 %v659
    %2569 = vmatpush1.bf16.msra.mxu0 %v658
    %2570 = vmatprep.subr.bf16.mxu0 %v663
    %2571 = vmatpush1.bf16.msra.mxu0 %v662
    %2572 = vmatprep.subr.bf16.mxu0 %v667
    %2573 = vmatpush1.bf16.msra.mxu0 %v666
    %2574 = vmatprep.subr.bf16.mxu0 %v671
    %2575 = vmatpush1.bf16.msra.mxu0 %v670
    %2576 = vmatprep.subr.bf16.mxu0 %v675
    %2577 = vmatpush1.bf16.msra.mxu0 %v674
    %2578 = vmatprep.subr.bf16.mxu0 %v679
    %2579 = vmatpush1.bf16.msra.mxu0 %v678
    %2580 = vmatprep.subr.bf16.mxu0 %v683
    %2581 = vmatpush1.bf16.msra.mxu0 %v682
    %2582 = vmatprep.subr.bf16.mxu0 %v687
    %2583 = vmatpush1.bf16.msra.mxu0 %v686
    %2584 = vmatprep.subr.bf16.mxu0 %v691
    %2585 = vmatpush1.bf16.msra.mxu0 %v690
    %2586 = vmatprep.subr.bf16.mxu0 %v695
    %2587 = vmatpush1.bf16.msra.mxu0 %v694
    %2588 = vmatprep.subr.bf16.mxu0 %v699
    %2589 = vmatpush1.bf16.msra.mxu0 %v698
    %2590 = vmatprep.subr.bf16.mxu0 %v703
    %2591 = vmatpush1.bf16.msra.mxu0 %v702
    %2592 = vmatprep.subr.bf16.mxu0 %v707
    %2593 = vmatpush1.bf16.msra.mxu0 %v706
    %2594 = vmatprep.subr.bf16.mxu0 %v711
    %2595 = vmatpush1.bf16.msra.mxu0 %v710
    %2596 = vmatprep.subr.bf16.mxu0 %v715
    %2597 = vmatpush1.bf16.msra.mxu0 %v714
    %2598 = vmatprep.mubr.bf16.mxu0 %v2565
    %2599 = vmatmul.mubr.bf16.gmra.mrb[0].mxu0 %v2564
    %v2600 = vpop.f32.mrb[0].mxu0
    %v2601 = vadd.f32 %v170, %v2600
    %v2602 = vpop.f32.mrb[0].mxu0
    %v2603 = vadd.f32 %v174, %v2602
    %v2604 = vpop.f32.mrb[0].mxu0
    %v2605 = vpop.f32.mrb[0].mxu0
    %2606 = vdwg.mxu0
    %2607 = vmatprep.subr.bf16.mxu0 %v657
    %2608 = vmatpush1.bf16.msra.mxu0 %v656
    %2609 = vmatprep.subr.bf16.mxu0 %v661
    %2610 = vmatpush1.bf16.msra.mxu0 %v660
    %2611 = vmatprep.subr.bf16.mxu0 %v665
    %2612 = vmatpush1.bf16.msra.mxu0 %v664
    %2613 = vmatprep.subr.bf16.mxu0 %v669
    %2614 = vmatpush1.bf16.msra.mxu0 %v668
    %2615 = vmatprep.subr.bf16.mxu0 %v673
    %2616 = vmatpush1.bf16.msra.mxu0 %v672
    %2617 = vmatprep.subr.bf16.mxu0 %v677
    %2618 = vmatpush1.bf16.msra.mxu0 %v676
    %2619 = vmatprep.subr.bf16.mxu0 %v681
    %2620 = vmatpush1.bf16.msra.mxu0 %v680
    %2621 = vmatprep.subr.bf16.mxu0 %v685
    %2622 = vmatpush1.bf16.msra.mxu0 %v684
    %2623 = vmatprep.subr.bf16.mxu0 %v689
    %2624 = vmatpush1.bf16.msra.mxu0 %v688
    %2625 = vmatprep.subr.bf16.mxu0 %v693
    %2626 = vmatpush1.bf16.msra.mxu0 %v692
    %2627 = vmatprep.subr.bf16.mxu0 %v697
    %2628 = vmatpush1.bf16.msra.mxu0 %v696
    %2629 = vmatprep.subr.bf16.mxu0 %v701
    %2630 = vmatpush1.bf16.msra.mxu0 %v700
    %2631 = vmatprep.subr.bf16.mxu0 %v705
    %2632 = vmatpush1.bf16.msra.mxu0 %v704
    %2633 = vmatprep.subr.bf16.mxu0 %v709
    %2634 = vmatpush1.bf16.msra.mxu0 %v708
    %2635 = vmatprep.subr.bf16.mxu0 %v713
    %2636 = vmatpush1.bf16.msra.mxu0 %v712
    %2637 = vmatprep.subr.bf16.mxu0 %v717
    %2638 = vmatpush1.bf16.msra.mxu0 %v716
    %2639 = vmatprep.mubr.bf16.mxu0 %v2565
    %2640 = vmatmul.mubr.bf16.gmra.mrb[0].mxu0 %v2564
    %v2641 = vpop.f32.mrb[0].mxu0
    %v2642 = vadd.f32 %v178, %v2641
    %v2643 = vpop.f32.mrb[0].mxu0
    %v2644 = vadd.f32 %v182, %v2643
    %v2645 = vpop.f32.mrb[0].mxu0
    %v2646 = vpop.f32.mrb[0].mxu0
    %2647 = vdwg.mxu0
    %v2648 = vxor.u32 %v2601, 2147483648
    %v2649 = vxor.u32 %v2603, 2147483648
    %v2650 = vxor.u32 %v2642, 2147483648
    %v2651 = vmul.f32 %v2648, 1.442695
    %v2652 = vpow.pop %v2651
    %v2653 = vmul.f32 %v2649, 1.442695
    %v2654 = vpow.pop %v2653
    %v2655 = vmul.f32 %v2650, 1.442695
    %v2656 = vpow.pop %v2655
    %v2657 = vadd.f32 %v2652, 1.0
    %v2658 = vadd.f32 %v2654, 1.0
    %v2659 = vadd.f32 %v2656, 1.0
    %v2660 = vrcp.pop %v2657
    %v2661 = vmul.f32 1.0, %v2660
    %v2662 = vrcp.pop %v2658
    %v2663 = vmul.f32 1.0, %v2662
    %v2664 = vrcp.pop %v2659
    %v2665 = vmul.f32 1.0, %v2664
    %v2666 = vtanh.pop %v2644
    %v2667 = vmul.f32 %v2663, %v2446
    %v2668 = vmul.f32 %v2661, %v2666
    %v2669 = vadd.f32 %v2667, %v2668
    %v2670 = vtanh.pop %v2669
    %v2671 = vmul.f32 %v2665, %v2670
    %s2672 = scalar_lea.vmem %s0, 288
    %v2673 = vld [vmem:[%s2672] sm:$0xff]
    %v2674 = vld [vmem:[%s2672 + $0x8] sm:$0xff]
    %v2675 = vld [vmem:[%s2672 + $0x10] sm:$0xff]
    %v2676 = vld [vmem:[%s2672 + $0x18] sm:$0xff]
    %2677 = vmatprep.subr.bf16.mxu0 %v288
    %2678 = vmatpush1.bf16.msra.mxu0 %v287
    %2679 = vmatprep.subr.bf16.mxu0 %v292
    %2680 = vmatpush1.bf16.msra.mxu0 %v291
    %2681 = vmatprep.subr.bf16.mxu0 %v296
    %2682 = vmatpush1.bf16.msra.mxu0 %v295
    %2683 = vmatprep.subr.bf16.mxu0 %v300
    %2684 = vmatpush1.bf16.msra.mxu0 %v299
    %2685 = vmatprep.subr.bf16.mxu0 %v304
    %2686 = vmatpush1.bf16.msra.mxu0 %v303
    %2687 = vmatprep.subr.bf16.mxu0 %v308
    %2688 = vmatpush1.bf16.msra.mxu0 %v307
    %2689 = vmatprep.subr.bf16.mxu0 %v312
    %2690 = vmatpush1.bf16.msra.mxu0 %v311
    %2691 = vmatprep.subr.bf16.mxu0 %v316
    %2692 = vmatpush1.bf16.msra.mxu0 %v315
    %2693 = vmatprep.subr.bf16.mxu0 0
    %2694 = vmatpush1.bf16.msra.mxu0 0
    %2695 = vmatprep.subr.bf16.mxu0 0
    %2696 = vmatpush1.bf16.msra.mxu0 0
    %2697 = vmatprep.subr.bf16.mxu0 0
    %2698 = vmatpush1.bf16.msra.mxu0 0
    %2699 = vmatprep.subr.bf16.mxu0 0
    %2700 = vmatpush1.bf16.msra.mxu0 0
    %2701 = vmatprep.subr.bf16.mxu0 0
    %2702 = vmatpush1.bf16.msra.mxu0 0
    %2703 = vmatprep.subr.bf16.mxu0 0
    %2704 = vmatpush1.bf16.msra.mxu0 0
    %2705 = vmatprep.subr.bf16.mxu0 0
    %2706 = vmatpush1.bf16.msra.mxu0 0
    %2707 = vmatprep.subr.bf16.mxu0 0
    %2708 = vmatpush1.bf16.msra.mxu0 0
    %2709 = vmatprep.mubr.bf16.mxu0 0
    %2710 = vmatmul.mubr.bf16.gmra.mrb[0].mxu0 %v2564
    %v2711 = vpop.f32.mrb[0].mxu0
    %v2712 = vadd.f32 0.0, %v2711
    %v2713 = vpop.f32.mrb[0].mxu0
    %v2714 = vadd.f32 0.0, %v2713
    %v2715 = vpop.f32.mrb[0].mxu0
    %v2716 = vpop.f32.mrb[0].mxu0
    %2717 = vdwg.mxu0
    %2718 = vmatprep.subr.bf16.mxu0 %v290
    %2719 = vmatpush1.bf16.msra.mxu0 %v289
    %2720 = vmatprep.subr.bf16.mxu0 %v294
    %2721 = vmatpush1.bf16.msra.mxu0 %v293
    %2722 = vmatprep.subr.bf16.mxu0 %v298
    %2723 = vmatpush1.bf16.msra.mxu0 %v297
    %2724 = vmatprep.subr.bf16.mxu0 %v302
    %2725 = vmatpush1.bf16.msra.mxu0 %v301
    %2726 = vmatprep.subr.bf16.mxu0 %v306
    %2727 = vmatpush1.bf16.msra.mxu0 %v305
    %2728 = vmatprep.subr.bf16.mxu0 %v310
    %2729 = vmatpush1.bf16.msra.mxu0 %v309
    %2730 = vmatprep.subr.bf16.mxu0 %v314
    %2731 = vmatpush1.bf16.msra.mxu0 %v313
    %2732 = vmatprep.subr.bf16.mxu0 %v318
    %2733 = vmatpush1.bf16.msra.mxu0 %v317
    %2734 = vmatprep.subr.bf16.mxu0 0
    %2735 = vmatpush1.bf16.msra.mxu0 0
    %2736 = vmatprep.subr.bf16.mxu0 0
    %2737 = vmatpush1.bf16.msra.mxu0 0
    %2738 = vmatprep.subr.bf16.mxu0 0
    %2739 = vmatpush1.bf16.msra.mxu0 0
    %2740 = vmatprep.subr.bf16.mxu0 0
    %2741 = vmatpush1.bf16.msra.mxu0 0
    %2742 = vmatprep.subr.bf16.mxu0 0
    %2743 = vmatpush1.bf16.msra.mxu0 0
    %2744 = vmatprep.subr.bf16.mxu0 0
    %2745 = vmatpush1.bf16.msra.mxu0 0
    %2746 = vmatprep.subr.bf16.mxu0 0
    %2747 = vmatpush1.bf16.msra.mxu0 0
    %2748 = vmatprep.subr.bf16.mxu0 0
    %2749 = vmatpush1.bf16.msra.mxu0 0
    %2750 = vmatprep.mubr.bf16.mxu0 0
    %2751 = vmatmul.mubr.bf16.gmra.mrb[0].mxu0 %v2564
    %v2752 = vpop.f32.mrb[0].mxu0
    %v2753 = vadd.f32 0.0, %v2752
    %v2754 = vpop.f32.mrb[0].mxu0
    %v2755 = vadd.f32 0.0, %v2754
    %v2756 = vpop.f32.mrb[0].mxu0
    %v2757 = vpop.f32.mrb[0].mxu0
    %2758 = vdwg.mxu0
    %v2759 = vadd.f32 %v2673, %v2712
    %v2760 = vadd.f32 %v2674, %v2714
    %v2761 = vadd.f32 %v2675, %v2753
    %v2762 = vadd.f32 %v2676, %v2755
    %v2763 = vxor.u32 %v2759, 2147483648
    %v2764 = vxor.u32 %v2760, 2147483648
    %v2765 = vxor.u32 %v2761, 2147483648
    %v2766 = vmul.f32 %v2763, 1.442695
    %v2767 = vpow.pop %v2766
    %v2768 = vmul.f32 %v2764, 1.442695
    %v2769 = vpow.pop %v2768
    %v2770 = vmul.f32 %v2765, 1.442695
    %v2771 = vpow.pop %v2770
    %v2772 = vadd.f32 %v2767, 1.0
    %v2773 = vadd.f32 %v2769, 1.0
    %v2774 = vadd.f32 %v2771, 1.0
    %v2775 = vrcp.pop %v2772
    %v2776 = vmul.f32 1.0, %v2775
    %v2777 = vrcp.pop %v2773
    %v2778 = vmul.f32 1.0, %v2777
    %v2779 = vrcp.pop %v2774
    %v2780 = vmul.f32 1.0, %v2779
    %v2781 = vtanh.pop %v2762
    %v2782 = vmul.f32 %v2778, %v2561
    %v2783 = vmul.f32 %v2776, %v2781
    %v2784 = vadd.f32 %v2782, %v2783
    %v2785 = vtanh.pop %v2784
    %v2786 = vmul.f32 %v2780, %v2785
    %v2787 = vpack.c.bf16 %v2786, %v2786
    %v2788 = vpack.c.bf16 %v2671, %v2671
    %2789 = vmatprep.subr.bf16.mxu0 %v655
    %2790 = vmatpush1.bf16.msra.mxu0 %v654
    %2791 = vmatprep.subr.bf16.mxu0 %v659
    %2792 = vmatpush1.bf16.msra.mxu0 %v658
    %2793 = vmatprep.subr.bf16.mxu0 %v663
    %2794 = vmatpush1.bf16.msra.mxu0 %v662
    %2795 = vmatprep.subr.bf16.mxu0 %v667
    %2796 = vmatpush1.bf16.msra.mxu0 %v666
    %2797 = vmatprep.subr.bf16.mxu0 %v671
    %2798 = vmatpush1.bf16.msra.mxu0 %v670
    %2799 = vmatprep.subr.bf16.mxu0 %v675
    %2800 = vmatpush1.bf16.msra.mxu0 %v674
    %2801 = vmatprep.subr.bf16.mxu0 %v679
    %2802 = vmatpush1.bf16.msra.mxu0 %v678
    %2803 = vmatprep.subr.bf16.mxu0 %v683
    %2804 = vmatpush1.bf16.msra.mxu0 %v682
    %2805 = vmatprep.subr.bf16.mxu0 %v687
    %2806 = vmatpush1.bf16.msra.mxu0 %v686
    %2807 = vmatprep.subr.bf16.mxu0 %v691
    %2808 = vmatpush1.bf16.msra.mxu0 %v690
    %2809 = vmatprep.subr.bf16.mxu0 %v695
    %2810 = vmatpush1.bf16.msra.mxu0 %v694
    %2811 = vmatprep.subr.bf16.mxu0 %v699
    %2812 = vmatpush1.bf16.msra.mxu0 %v698
    %2813 = vmatprep.subr.bf16.mxu0 %v703
    %2814 = vmatpush1.bf16.msra.mxu0 %v702
    %2815 = vmatprep.subr.bf16.mxu0 %v707
    %2816 = vmatpush1.bf16.msra.mxu0 %v706
    %2817 = vmatprep.subr.bf16.mxu0 %v711
    %2818 = vmatpush1.bf16.msra.mxu0 %v710
    %2819 = vmatprep.subr.bf16.mxu0 %v715
    %2820 = vmatpush1.bf16.msra.mxu0 %v714
    %2821 = vmatprep.mubr.bf16.mxu0 %v2788
    %2822 = vmatmul.mubr.bf16.gmra.mrb[0].mxu0 %v2787
    %v2823 = vpop.f32.mrb[0].mxu0
    %v2824 = vadd.f32 %v170, %v2823
    %v2825 = vpop.f32.mrb[0].mxu0
    %v2826 = vadd.f32 %v174, %v2825
    %v2827 = vpop.f32.mrb[0].mxu0
    %v2828 = vpop.f32.mrb[0].mxu0
    %2829 = vdwg.mxu0
    %2830 = vmatprep.subr.bf16.mxu0 %v657
    %2831 = vmatpush1.bf16.msra.mxu0 %v656
    %2832 = vmatprep.subr.bf16.mxu0 %v661
    %2833 = vmatpush1.bf16.msra.mxu0 %v660
    %2834 = vmatprep.subr.bf16.mxu0 %v665
    %2835 = vmatpush1.bf16.msra.mxu0 %v664
    %2836 = vmatprep.subr.bf16.mxu0 %v669
    %2837 = vmatpush1.bf16.msra.mxu0 %v668
    %2838 = vmatprep.subr.bf16.mxu0 %v673
    %2839 = vmatpush1.bf16.msra.mxu0 %v672
    %2840 = vmatprep.subr.bf16.mxu0 %v677
    %2841 = vmatpush1.bf16.msra.mxu0 %v676
    %2842 = vmatprep.subr.bf16.mxu0 %v681
    %2843 = vmatpush1.bf16.msra.mxu0 %v680
    %2844 = vmatprep.subr.bf16.mxu0 %v685
    %2845 = vmatpush1.bf16.msra.mxu0 %v684
    %2846 = vmatprep.subr.bf16.mxu0 %v689
    %2847 = vmatpush1.bf16.msra.mxu0 %v688
    %2848 = vmatprep.subr.bf16.mxu0 %v693
    %2849 = vmatpush1.bf16.msra.mxu0 %v692
    %2850 = vmatprep.subr.bf16.mxu0 %v697
    %2851 = vmatpush1.bf16.msra.mxu0 %v696
    %2852 = vmatprep.subr.bf16.mxu0 %v701
    %2853 = vmatpush1.bf16.msra.mxu0 %v700
    %2854 = vmatprep.subr.bf16.mxu0 %v705
    %2855 = vmatpush1.bf16.msra.mxu0 %v704
    %2856 = vmatprep.subr.bf16.mxu0 %v709
    %2857 = vmatpush1.bf16.msra.mxu0 %v708
    %2858 = vmatprep.subr.bf16.mxu0 %v713
    %2859 = vmatpush1.bf16.msra.mxu0 %v712
    %2860 = vmatprep.subr.bf16.mxu0 %v717
    %2861 = vmatpush1.bf16.msra.mxu0 %v716
    %2862 = vmatprep.mubr.bf16.mxu0 %v2788
    %2863 = vmatmul.mubr.bf16.gmra.mrb[0].mxu0 %v2787
    %v2864 = vpop.f32.mrb[0].mxu0
    %v2865 = vadd.f32 %v178, %v2864
    %v2866 = vpop.f32.mrb[0].mxu0
    %v2867 = vadd.f32 %v182, %v2866
    %v2868 = vpop.f32.mrb[0].mxu0
    %v2869 = vpop.f32.mrb[0].mxu0
    %2870 = vdwg.mxu0
    %v2871 = vxor.u32 %v2824, 2147483648
    %v2872 = vxor.u32 %v2826, 2147483648
    %v2873 = vxor.u32 %v2865, 2147483648
    %v2874 = vmul.f32 %v2871, 1.442695
    %v2875 = vpow.pop %v2874
    %v2876 = vmul.f32 %v2872, 1.442695
    %v2877 = vpow.pop %v2876
    %v2878 = vmul.f32 %v2873, 1.442695
    %v2879 = vpow.pop %v2878
    %v2880 = vadd.f32 %v2875, 1.0
    %v2881 = vadd.f32 %v2877, 1.0
    %v2882 = vadd.f32 %v2879, 1.0
    %v2883 = vrcp.pop %v2880
    %v2884 = vmul.f32 1.0, %v2883
    %v2885 = vrcp.pop %v2881
    %v2886 = vmul.f32 1.0, %v2885
    %v2887 = vrcp.pop %v2882
    %v2888 = vmul.f32 1.0, %v2887
    %v2889 = vtanh.pop %v2867
    %v2890 = vmul.f32 %v2886, %v2669
    %v2891 = vmul.f32 %v2884, %v2889
    %v2892 = vadd.f32 %v2890, %v2891
    %v2893 = vtanh.pop %v2892
    %v2894 = vmul.f32 %v2888, %v2893
    %s2895 = scalar_lea.vmem %s0, 320
    %v2896 = vld [vmem:[%s2895] sm:$0xff]
    %v2897 = vld [vmem:[%s2895 + $0x8] sm:$0xff]
    %v2898 = vld [vmem:[%s2895 + $0x10] sm:$0xff]
    %v2899 = vld [vmem:[%s2895 + $0x18] sm:$0xff]
    %2900 = vmatprep.subr.bf16.mxu0 %v288
    %2901 = vmatpush1.bf16.msra.mxu0 %v287
    %2902 = vmatprep.subr.bf16.mxu0 %v292
    %2903 = vmatpush1.bf16.msra.mxu0 %v291
    %2904 = vmatprep.subr.bf16.mxu0 %v296
    %2905 = vmatpush1.bf16.msra.mxu0 %v295
    %2906 = vmatprep.subr.bf16.mxu0 %v300
    %2907 = vmatpush1.bf16.msra.mxu0 %v299
    %2908 = vmatprep.subr.bf16.mxu0 %v304
    %2909 = vmatpush1.bf16.msra.mxu0 %v303
    %2910 = vmatprep.subr.bf16.mxu0 %v308
    %2911 = vmatpush1.bf16.msra.mxu0 %v307
    %2912 = vmatprep.subr.bf16.mxu0 %v312
    %2913 = vmatpush1.bf16.msra.mxu0 %v311
    %2914 = vmatprep.subr.bf16.mxu0 %v316
    %2915 = vmatpush1.bf16.msra.mxu0 %v315
    %2916 = vmatprep.subr.bf16.mxu0 0
    %2917 = vmatpush1.bf16.msra.mxu0 0
    %2918 = vmatprep.subr.bf16.mxu0 0
    %2919 = vmatpush1.bf16.msra.mxu0 0
    %2920 = vmatprep.subr.bf16.mxu0 0
    %2921 = vmatpush1.bf16.msra.mxu0 0
    %2922 = vmatprep.subr.bf16.mxu0 0
    %2923 = vmatpush1.bf16.msra.mxu0 0
    %2924 = vmatprep.subr.bf16.mxu0 0
    %2925 = vmatpush1.bf16.msra.mxu0 0
    %2926 = vmatprep.subr.bf16.mxu0 0
    %2927 = vmatpush1.bf16.msra.mxu0 0
    %2928 = vmatprep.subr.bf16.mxu0 0
    %2929 = vmatpush1.bf16.msra.mxu0 0
    %2930 = vmatprep.subr.bf16.mxu0 0
    %2931 = vmatpush1.bf16.msra.mxu0 0
    %2932 = vmatprep.mubr.bf16.mxu0 0
    %2933 = vmatmul.mubr.bf16.gmra.mrb[0].mxu0 %v2787
    %v2934 = vpop.f32.mrb[0].mxu0
    %v2935 = vadd.f32 0.0, %v2934
    %v2936 = vpop.f32.mrb[0].mxu0
    %v2937 = vadd.f32 0.0, %v2936
    %v2938 = vpop.f32.mrb[0].mxu0
    %v2939 = vpop.f32.mrb[0].mxu0
    %2940 = vdwg.mxu0
    %2941 = vmatprep.subr.bf16.mxu0 %v290
    %2942 = vmatpush1.bf16.msra.mxu0 %v289
    %2943 = vmatprep.subr.bf16.mxu0 %v294
    %2944 = vmatpush1.bf16.msra.mxu0 %v293
    %2945 = vmatprep.subr.bf16.mxu0 %v298
    %2946 = vmatpush1.bf16.msra.mxu0 %v297
    %2947 = vmatprep.subr.bf16.mxu0 %v302
    %2948 = vmatpush1.bf16.msra.mxu0 %v301
    %2949 = vmatprep.subr.bf16.mxu0 %v306
    %2950 = vmatpush1.bf16.msra.mxu0 %v305
    %2951 = vmatprep.subr.bf16.mxu0 %v310
    %2952 = vmatpush1.bf16.msra.mxu0 %v309
    %2953 = vmatprep.subr.bf16.mxu0 %v314
    %2954 = vmatpush1.bf16.msra.mxu0 %v313
    %2955 = vmatprep.subr.bf16.mxu0 %v318
    %2956 = vmatpush1.bf16.msra.mxu0 %v317
    %2957 = vmatprep.subr.bf16.mxu0 0
    %2958 = vmatpush1.bf16.msra.mxu0 0
    %2959 = vmatprep.subr.bf16.mxu0 0
    %2960 = vmatpush1.bf16.msra.mxu0 0
    %2961 = vmatprep.subr.bf16.mxu0 0
    %2962 = vmatpush1.bf16.msra.mxu0 0
    %2963 = vmatprep.subr.bf16.mxu0 0
    %2964 = vmatpush1.bf16.msra.mxu0 0
    %2965 = vmatprep.subr.bf16.mxu0 0
    %2966 = vmatpush1.bf16.msra.mxu0 0
    %2967 = vmatprep.subr.bf16.mxu0 0
    %2968 = vmatpush1.bf16.msra.mxu0 0
    %2969 = vmatprep.subr.bf16.mxu0 0
    %2970 = vmatpush1.bf16.msra.mxu0 0
    %2971 = vmatprep.subr.bf16.mxu0 0
    %2972 = vmatpush1.bf16.msra.mxu0 0
    %2973 = vmatprep.mubr.bf16.mxu0 0
    %2974 = vmatmul.mubr.bf16.gmra.mrb[0].mxu0 %v2787
    %v2975 = vpop.f32.mrb[0].mxu0
    %v2976 = vadd.f32 0.0, %v2975
    %v2977 = vpop.f32.mrb[0].mxu0
    %v2978 = vadd.f32 0.0, %v2977
    %v2979 = vpop.f32.mrb[0].mxu0
    %v2980 = vpop.f32.mrb[0].mxu0
    %2981 = vdwg.mxu0
    %v2982 = vadd.f32 %v2896, %v2935
    %v2983 = vadd.f32 %v2897, %v2937
    %v2984 = vadd.f32 %v2898, %v2976
    %v2985 = vadd.f32 %v2899, %v2978
    %v2986 = vxor.u32 %v2982, 2147483648
    %v2987 = vxor.u32 %v2983, 2147483648
    %v2988 = vxor.u32 %v2984, 2147483648
    %v2989 = vmul.f32 %v2986, 1.442695
    %v2990 = vpow.pop %v2989
    %v2991 = vmul.f32 %v2987, 1.442695
    %v2992 = vpow.pop %v2991
    %v2993 = vmul.f32 %v2988, 1.442695
    %v2994 = vpow.pop %v2993
    %v2995 = vadd.f32 %v2990, 1.0
    %v2996 = vadd.f32 %v2992, 1.0
    %v2997 = vadd.f32 %v2994, 1.0
    %v2998 = vrcp.pop %v2995
    %v2999 = vmul.f32 1.0, %v2998
    %v3000 = vrcp.pop %v2996
    %v3001 = vmul.f32 1.0, %v3000
    %v3002 = vrcp.pop %v2997
    %v3003 = vmul.f32 1.0, %v3002
    %v3004 = vtanh.pop %v2985
    %v3005 = vmul.f32 %v3001, %v2784
    %v3006 = vmul.f32 %v2999, %v3004
    %v3007 = vadd.f32 %v3005, %v3006
    %v3008 = vtanh.pop %v3007
    %v3009 = vmul.f32 %v3003, %v3008
    %v3010 = vpack.c.bf16 %v3009, %v3009
    %v3011 = vpack.c.bf16 %v2894, %v2894
    %3012 = vmatprep.subr.bf16.mxu0 %v655
    %3013 = vmatpush1.bf16.msra.mxu0 %v654
    %3014 = vmatprep.subr.bf16.mxu0 %v659
    %3015 = vmatpush1.bf16.msra.mxu0 %v658
    %3016 = vmatprep.subr.bf16.mxu0 %v663
    %3017 = vmatpush1.bf16.msra.mxu0 %v662
    %3018 = vmatprep.subr.bf16.mxu0 %v667
    %3019 = vmatpush1.bf16.msra.mxu0 %v666
    %3020 = vmatprep.subr.bf16.mxu0 %v671
    %3021 = vmatpush1.bf16.msra.mxu0 %v670
    %3022 = vmatprep.subr.bf16.mxu0 %v675
    %3023 = vmatpush1.bf16.msra.mxu0 %v674
    %3024 = vmatprep.subr.bf16.mxu0 %v679
    %3025 = vmatpush1.bf16.msra.mxu0 %v678
    %3026 = vmatprep.subr.bf16.mxu0 %v683
    %3027 = vmatpush1.bf16.msra.mxu0 %v682
    %3028 = vmatprep.subr.bf16.mxu0 %v687
    %3029 = vmatpush1.bf16.msra.mxu0 %v686
    %3030 = vmatprep.subr.bf16.mxu0 %v691
    %3031 = vmatpush1.bf16.msra.mxu0 %v690
    %3032 = vmatprep.subr.bf16.mxu0 %v695
    %3033 = vmatpush1.bf16.msra.mxu0 %v694
    %3034 = vmatprep.subr.bf16.mxu0 %v699
    %3035 = vmatpush1.bf16.msra.mxu0 %v698
    %3036 = vmatprep.subr.bf16.mxu0 %v703
    %3037 = vmatpush1.bf16.msra.mxu0 %v702
    %3038 = vmatprep.subr.bf16.mxu0 %v707
    %3039 = vmatpush1.bf16.msra.mxu0 %v706
    %3040 = vmatprep.subr.bf16.mxu0 %v711
    %3041 = vmatpush1.bf16.msra.mxu0 %v710
    %3042 = vmatprep.subr.bf16.mxu0 %v715
    %3043 = vmatpush1.bf16.msra.mxu0 %v714
    %3044 = vmatprep.mubr.bf16.mxu0 %v3011
    %3045 = vmatmul.mubr.bf16.gmra.mrb[0].mxu0 %v3010
    %v3046 = vpop.f32.mrb[0].mxu0
    %v3047 = vadd.f32 %v170, %v3046
    %v3048 = vpop.f32.mrb[0].mxu0
    %v3049 = vadd.f32 %v174, %v3048
    %v3050 = vpop.f32.mrb[0].mxu0
    %v3051 = vpop.f32.mrb[0].mxu0
    %3052 = vdwg.mxu0
    %3053 = vmatprep.subr.bf16.mxu0 %v657
    %3054 = vmatpush1.bf16.msra.mxu0 %v656
    %3055 = vmatprep.subr.bf16.mxu0 %v661
    %3056 = vmatpush1.bf16.msra.mxu0 %v660
    %3057 = vmatprep.subr.bf16.mxu0 %v665
    %3058 = vmatpush1.bf16.msra.mxu0 %v664
    %3059 = vmatprep.subr.bf16.mxu0 %v669
    %3060 = vmatpush1.bf16.msra.mxu0 %v668
    %3061 = vmatprep.subr.bf16.mxu0 %v673
    %3062 = vmatpush1.bf16.msra.mxu0 %v672
    %3063 = vmatprep.subr.bf16.mxu0 %v677
    %3064 = vmatpush1.bf16.msra.mxu0 %v676
    %3065 = vmatprep.subr.bf16.mxu0 %v681
    %3066 = vmatpush1.bf16.msra.mxu0 %v680
    %3067 = vmatprep.subr.bf16.mxu0 %v685
    %3068 = vmatpush1.bf16.msra.mxu0 %v684
    %3069 = vmatprep.subr.bf16.mxu0 %v689
    %3070 = vmatpush1.bf16.msra.mxu0 %v688
    %3071 = vmatprep.subr.bf16.mxu0 %v693
    %3072 = vmatpush1.bf16.msra.mxu0 %v692
    %3073 = vmatprep.subr.bf16.mxu0 %v697
    %3074 = vmatpush1.bf16.msra.mxu0 %v696
    %3075 = vmatprep.subr.bf16.mxu0 %v701
    %3076 = vmatpush1.bf16.msra.mxu0 %v700
    %3077 = vmatprep.subr.bf16.mxu0 %v705
    %3078 = vmatpush1.bf16.msra.mxu0 %v704
    %3079 = vmatprep.subr.bf16.mxu0 %v709
    %3080 = vmatpush1.bf16.msra.mxu0 %v708
    %3081 = vmatprep.subr.bf16.mxu0 %v713
    %3082 = vmatpush1.bf16.msra.mxu0 %v712
    %3083 = vmatprep.subr.bf16.mxu0 %v717
    %3084 = vmatpush1.bf16.msra.mxu0 %v716
    %3085 = vmatprep.mubr.bf16.mxu0 %v3011
    %3086 = vmatmul.mubr.bf16.gmra.mrb[0].mxu0 %v3010
    %v3087 = vpop.f32.mrb[0].mxu0
    %v3088 = vadd.f32 %v178, %v3087
    %v3089 = vpop.f32.mrb[0].mxu0
    %v3090 = vadd.f32 %v182, %v3089
    %v3091 = vpop.f32.mrb[0].mxu0
    %v3092 = vpop.f32.mrb[0].mxu0
    %3093 = vdwg.mxu0
    %v3094 = vxor.u32 %v3047, 2147483648
    %v3095 = vxor.u32 %v3049, 2147483648
    %v3096 = vxor.u32 %v3088, 2147483648
    %v3097 = vmul.f32 %v3094, 1.442695
    %v3098 = vpow.pop %v3097
    %v3099 = vmul.f32 %v3095, 1.442695
    %v3100 = vpow.pop %v3099
    %v3101 = vmul.f32 %v3096, 1.442695
    %v3102 = vpow.pop %v3101
    %v3103 = vadd.f32 %v3098, 1.0
    %v3104 = vadd.f32 %v3100, 1.0
    %v3105 = vadd.f32 %v3102, 1.0
    %v3106 = vrcp.pop %v3103
    %v3107 = vmul.f32 1.0, %v3106
    %v3108 = vrcp.pop %v3104
    %v3109 = vmul.f32 1.0, %v3108
    %v3110 = vrcp.pop %v3105
    %v3111 = vmul.f32 1.0, %v3110
    %v3112 = vtanh.pop %v3090
    %v3113 = vmul.f32 %v3109, %v2892
    %v3114 = vmul.f32 %v3107, %v3112
    %v3115 = vadd.f32 %v3113, %v3114
    %v3116 = vtanh.pop %v3115
    %v3117 = vmul.f32 %v3111, %v3116
    %s3118 = scalar_lea.vmem %s0, 352
    %v3119 = vld [vmem:[%s3118] sm:$0xff]
    %v3120 = vld [vmem:[%s3118 + $0x8] sm:$0xff]
    %v3121 = vld [vmem:[%s3118 + $0x10] sm:$0xff]
    %v3122 = vld [vmem:[%s3118 + $0x18] sm:$0xff]
    %3123 = vmatprep.subr.bf16.mxu0 %v288
    %3124 = vmatpush1.bf16.msra.mxu0 %v287
    %3125 = vmatprep.subr.bf16.mxu0 %v292
    %3126 = vmatpush1.bf16.msra.mxu0 %v291
    %3127 = vmatprep.subr.bf16.mxu0 %v296
    %3128 = vmatpush1.bf16.msra.mxu0 %v295
    %3129 = vmatprep.subr.bf16.mxu0 %v300
    %3130 = vmatpush1.bf16.msra.mxu0 %v299
    %3131 = vmatprep.subr.bf16.mxu0 %v304
    %3132 = vmatpush1.bf16.msra.mxu0 %v303
    %3133 = vmatprep.subr.bf16.mxu0 %v308
    %3134 = vmatpush1.bf16.msra.mxu0 %v307
    %3135 = vmatprep.subr.bf16.mxu0 %v312
    %3136 = vmatpush1.bf16.msra.mxu0 %v311
    %3137 = vmatprep.subr.bf16.mxu0 %v316
    %3138 = vmatpush1.bf16.msra.mxu0 %v315
    %3139 = vmatprep.subr.bf16.mxu0 0
    %3140 = vmatpush1.bf16.msra.mxu0 0
    %3141 = vmatprep.subr.bf16.mxu0 0
    %3142 = vmatpush1.bf16.msra.mxu0 0
    %3143 = vmatprep.subr.bf16.mxu0 0
    %3144 = vmatpush1.bf16.msra.mxu0 0
    %3145 = vmatprep.subr.bf16.mxu0 0
    %3146 = vmatpush1.bf16.msra.mxu0 0
    %3147 = vmatprep.subr.bf16.mxu0 0
    %3148 = vmatpush1.bf16.msra.mxu0 0
    %3149 = vmatprep.subr.bf16.mxu0 0
    %3150 = vmatpush1.bf16.msra.mxu0 0
    %3151 = vmatprep.subr.bf16.mxu0 0
    %3152 = vmatpush1.bf16.msra.mxu0 0
    %3153 = vmatprep.subr.bf16.mxu0 0
    %3154 = vmatpush1.bf16.msra.mxu0 0
    %3155 = vmatprep.mubr.bf16.mxu0 0
    %3156 = vmatmul.mubr.bf16.gmra.mrb[0].mxu0 %v3010
    %v3157 = vpop.f32.mrb[0].mxu0
    %v3158 = vadd.f32 0.0, %v3157
    %v3159 = vpop.f32.mrb[0].mxu0
    %v3160 = vadd.f32 0.0, %v3159
    %v3161 = vpop.f32.mrb[0].mxu0
    %v3162 = vpop.f32.mrb[0].mxu0
    %3163 = vdwg.mxu0
    %3164 = vmatprep.subr.bf16.mxu0 %v290
    %3165 = vmatpush1.bf16.msra.mxu0 %v289
    %3166 = vmatprep.subr.bf16.mxu0 %v294
    %3167 = vmatpush1.bf16.msra.mxu0 %v293
    %3168 = vmatprep.subr.bf16.mxu0 %v298
    %3169 = vmatpush1.bf16.msra.mxu0 %v297
    %3170 = vmatprep.subr.bf16.mxu0 %v302
    %3171 = vmatpush1.bf16.msra.mxu0 %v301
    %3172 = vmatprep.subr.bf16.mxu0 %v306
    %3173 = vmatpush1.bf16.msra.mxu0 %v305
    %3174 = vmatprep.subr.bf16.mxu0 %v310
    %3175 = vmatpush1.bf16.msra.mxu0 %v309
    %3176 = vmatprep.subr.bf16.mxu0 %v314
    %3177 = vmatpush1.bf16.msra.mxu0 %v313
    %3178 = vmatprep.subr.bf16.mxu0 %v318
    %3179 = vmatpush1.bf16.msra.mxu0 %v317
    %3180 = vmatprep.subr.bf16.mxu0 0
    %3181 = vmatpush1.bf16.msra.mxu0 0
    %3182 = vmatprep.subr.bf16.mxu0 0
    %3183 = vmatpush1.bf16.msra.mxu0 0
    %3184 = vmatprep.subr.bf16.mxu0 0
    %3185 = vmatpush1.bf16.msra.mxu0 0
    %3186 = vmatprep.subr.bf16.mxu0 0
    %3187 = vmatpush1.bf16.msra.mxu0 0
    %3188 = vmatprep.subr.bf16.mxu0 0
    %3189 = vmatpush1.bf16.msra.mxu0 0
    %3190 = vmatprep.subr.bf16.mxu0 0
    %3191 = vmatpush1.bf16.msra.mxu0 0
    %3192 = vmatprep.subr.bf16.mxu0 0
    %3193 = vmatpush1.bf16.msra.mxu0 0
    %3194 = vmatprep.subr.bf16.mxu0 0
    %3195 = vmatpush1.bf16.msra.mxu0 0
    %3196 = vmatprep.mubr.bf16.mxu0 0
    %3197 = vmatmul.mubr.bf16.gmra.mrb[0].mxu0 %v3010
    %v3198 = vpop.f32.mrb[0].mxu0
    %v3199 = vadd.f32 0.0, %v3198
    %v3200 = vpop.f32.mrb[0].mxu0
    %v3201 = vadd.f32 0.0, %v3200
    %v3202 = vpop.f32.mrb[0].mxu0
    %v3203 = vpop.f32.mrb[0].mxu0
    %3204 = vdwg.mxu0
    %v3205 = vadd.f32 %v3119, %v3158
    %v3206 = vadd.f32 %v3120, %v3160
    %v3207 = vadd.f32 %v3121, %v3199
    %v3208 = vadd.f32 %v3122, %v3201
    %v3209 = vxor.u32 %v3205, 2147483648
    %v3210 = vxor.u32 %v3206, 2147483648
    %v3211 = vxor.u32 %v3207, 2147483648
    %v3212 = vmul.f32 %v3209, 1.442695
    %v3213 = vpow.pop %v3212
    %v3214 = vmul.f32 %v3210, 1.442695
    %v3215 = vpow.pop %v3214
    %v3216 = vmul.f32 %v3211, 1.442695
    %v3217 = vpow.pop %v3216
    %v3218 = vadd.f32 %v3213, 1.0
    %v3219 = vadd.f32 %v3215, 1.0
    %v3220 = vadd.f32 %v3217, 1.0
    %v3221 = vrcp.pop %v3218
    %v3222 = vmul.f32 1.0, %v3221
    %v3223 = vrcp.pop %v3219
    %v3224 = vmul.f32 1.0, %v3223
    %v3225 = vrcp.pop %v3220
    %v3226 = vmul.f32 1.0, %v3225
    %v3227 = vtanh.pop %v3208
    %v3228 = vmul.f32 %v3224, %v3007
    %v3229 = vmul.f32 %v3222, %v3227
    %v3230 = vadd.f32 %v3228, %v3229
    %v3231 = vtanh.pop %v3230
    %v3232 = vmul.f32 %v3226, %v3231
    %v3233 = vpack.c.bf16 %v3232, %v3232
    %v3234 = vpack.c.bf16 %v3117, %v3117
    %3235 = vmatprep.subr.bf16.mxu0 %v655
    %3236 = vmatpush1.bf16.msra.mxu0 %v654
    %3237 = vmatprep.subr.bf16.mxu0 %v659
    %3238 = vmatpush1.bf16.msra.mxu0 %v658
    %3239 = vmatprep.subr.bf16.mxu0 %v663
    %3240 = vmatpush1.bf16.msra.mxu0 %v662
    %3241 = vmatprep.subr.bf16.mxu0 %v667
    %3242 = vmatpush1.bf16.msra.mxu0 %v666
    %3243 = vmatprep.subr.bf16.mxu0 %v671
    %3244 = vmatpush1.bf16.msra.mxu0 %v670
    %3245 = vmatprep.subr.bf16.mxu0 %v675
    %3246 = vmatpush1.bf16.msra.mxu0 %v674
    %3247 = vmatprep.subr.bf16.mxu0 %v679
    %3248 = vmatpush1.bf16.msra.mxu0 %v678
    %3249 = vmatprep.subr.bf16.mxu0 %v683
    %3250 = vmatpush1.bf16.msra.mxu0 %v682
    %3251 = vmatprep.subr.bf16.mxu0 %v687
    %3252 = vmatpush1.bf16.msra.mxu0 %v686
    %3253 = vmatprep.subr.bf16.mxu0 %v691
    %3254 = vmatpush1.bf16.msra.mxu0 %v690
    %3255 = vmatprep.subr.bf16.mxu0 %v695
    %3256 = vmatpush1.bf16.msra.mxu0 %v694
    %3257 = vmatprep.subr.bf16.mxu0 %v699
    %3258 = vmatpush1.bf16.msra.mxu0 %v698
    %3259 = vmatprep.subr.bf16.mxu0 %v703
    %3260 = vmatpush1.bf16.msra.mxu0 %v702
    %3261 = vmatprep.subr.bf16.mxu0 %v707
    %3262 = vmatpush1.bf16.msra.mxu0 %v706
    %3263 = vmatprep.subr.bf16.mxu0 %v711
    %3264 = vmatpush1.bf16.msra.mxu0 %v710
    %3265 = vmatprep.subr.bf16.mxu0 %v715
    %3266 = vmatpush1.bf16.msra.mxu0 %v714
    %3267 = vmatprep.mubr.bf16.mxu0 %v3234
    %3268 = vmatmul.mubr.bf16.gmra.mrb[0].mxu0 %v3233
    %v3269 = vpop.f32.mrb[0].mxu0
    %v3270 = vadd.f32 %v170, %v3269
    %v3271 = vpop.f32.mrb[0].mxu0
    %v3272 = vadd.f32 %v174, %v3271
    %v3273 = vpop.f32.mrb[0].mxu0
    %v3274 = vpop.f32.mrb[0].mxu0
    %3275 = vdwg.mxu0
    %3276 = vmatprep.subr.bf16.mxu0 %v657
    %3277 = vmatpush1.bf16.msra.mxu0 %v656
    %3278 = vmatprep.subr.bf16.mxu0 %v661
    %3279 = vmatpush1.bf16.msra.mxu0 %v660
    %3280 = vmatprep.subr.bf16.mxu0 %v665
    %3281 = vmatpush1.bf16.msra.mxu0 %v664
    %3282 = vmatprep.subr.bf16.mxu0 %v669
    %3283 = vmatpush1.bf16.msra.mxu0 %v668
    %3284 = vmatprep.subr.bf16.mxu0 %v673
    %3285 = vmatpush1.bf16.msra.mxu0 %v672
    %3286 = vmatprep.subr.bf16.mxu0 %v677
    %3287 = vmatpush1.bf16.msra.mxu0 %v676
    %3288 = vmatprep.subr.bf16.mxu0 %v681
    %3289 = vmatpush1.bf16.msra.mxu0 %v680
    %3290 = vmatprep.subr.bf16.mxu0 %v685
    %3291 = vmatpush1.bf16.msra.mxu0 %v684
    %3292 = vmatprep.subr.bf16.mxu0 %v689
    %3293 = vmatpush1.bf16.msra.mxu0 %v688
    %3294 = vmatprep.subr.bf16.mxu0 %v693
    %3295 = vmatpush1.bf16.msra.mxu0 %v692
    %3296 = vmatprep.subr.bf16.mxu0 %v697
    %3297 = vmatpush1.bf16.msra.mxu0 %v696
    %3298 = vmatprep.subr.bf16.mxu0 %v701
    %3299 = vmatpush1.bf16.msra.mxu0 %v700
    %3300 = vmatprep.subr.bf16.mxu0 %v705
    %3301 = vmatpush1.bf16.msra.mxu0 %v704
    %3302 = vmatprep.subr.bf16.mxu0 %v709
    %3303 = vmatpush1.bf16.msra.mxu0 %v708
    %3304 = vmatprep.subr.bf16.mxu0 %v713
    %3305 = vmatpush1.bf16.msra.mxu0 %v712
    %3306 = vmatprep.subr.bf16.mxu0 %v717
    %3307 = vmatpush1.bf16.msra.mxu0 %v716
    %3308 = vmatprep.mubr.bf16.mxu0 %v3234
    %3309 = vmatmul.mubr.bf16.gmra.mrb[0].mxu0 %v3233
    %v3310 = vpop.f32.mrb[0].mxu0
    %v3311 = vadd.f32 %v178, %v3310
    %v3312 = vpop.f32.mrb[0].mxu0
    %v3313 = vadd.f32 %v182, %v3312
    %v3314 = vpop.f32.mrb[0].mxu0
    %v3315 = vpop.f32.mrb[0].mxu0
    %3316 = vdwg.mxu0
    %v3317 = vxor.u32 %v3270, 2147483648
    %v3318 = vxor.u32 %v3272, 2147483648
    %v3319 = vxor.u32 %v3311, 2147483648
    %v3320 = vmul.f32 %v3317, 1.442695
    %v3321 = vpow.pop %v3320
    %v3322 = vmul.f32 %v3318, 1.442695
    %v3323 = vpow.pop %v3322
    %v3324 = vmul.f32 %v3319, 1.442695
    %v3325 = vpow.pop %v3324
    %v3326 = vadd.f32 %v3321, 1.0
    %v3327 = vadd.f32 %v3323, 1.0
    %v3328 = vadd.f32 %v3325, 1.0
    %v3329 = vrcp.pop %v3326
    %v3330 = vmul.f32 1.0, %v3329
    %v3331 = vrcp.pop %v3327
    %v3332 = vmul.f32 1.0, %v3331
    %v3333 = vrcp.pop %v3328
    %v3334 = vmul.f32 1.0, %v3333
    %v3335 = vtanh.pop %v3313
    %v3336 = vmul.f32 %v3332, %v3115
    %v3337 = vmul.f32 %v3330, %v3335
    %v3338 = vadd.f32 %v3336, %v3337
    %v3339 = vtanh.pop %v3338
    %v3340 = vmul.f32 %v3334, %v3339
    %v3341 = vpack.c.bf16 %v3340, %v3340
    %v3342 = vld [vmem:[%s5] sm:$0x1]
    %v3344 = vlaneseq
    %v3345 = vshrl.u32 %v3344, 7
    %v3346 = vsub.s32 0, %v3345
    %v3347 = vrot.slane %v3342, %v3346
    %v3365 = vunpack.c.l.b16 %v149
    %v3366 = vunpack.c.l.b16 %v150
    %v3367 = vunpack.c.l.b16 %v151
    %v3368 = vunpack.c.l.b16 %v152
    %v3369 = vunpack.c.l.b16 %v153
    %v3370 = vunpack.c.l.b16 %v154
    %v3371 = vunpack.c.l.b16 %v155
    %v3372 = vunpack.c.l.b16 %v156
    %v3373 = vunpack.c.l.b16 %v157
    %v3374 = vunpack.c.l.b16 %v158
    %v3375 = vunpack.c.l.b16 %v159
    %v3376 = vunpack.c.l.b16 %v160
    %v3377 = vunpack.c.l.b16 %v161
    %v3378 = vunpack.c.l.b16 %v162
    %v3379 = vunpack.c.l.b16 %v163
    %v3380 = vunpack.c.l.b16 %v164
    %v3381 = vpack.c.b16 %v3366, %v3365
    %v3382 = vpack.c.b16 %v3368, %v3367
    %v3383 = vpack.c.b16 %v3370, %v3369
    %v3384 = vpack.c.b16 %v3372, %v3371
    %v3385 = vpack.c.b16 %v3374, %v3373
    %v3386 = vpack.c.b16 %v3376, %v3375
    %v3387 = vpack.c.b16 %v3378, %v3377
    %v3388 = vpack.c.b16 %v3380, %v3379
    %3397 = vmatprep.subr.bf16.mxu0 0
    %3398 = vmatpush1.bf16.msra.mxu0 %v3381
    %3399 = vmatprep.subr.bf16.mxu0 0
    %3400 = vmatpush1.bf16.msra.mxu0 %v3382
    %3401 = vmatprep.subr.bf16.mxu0 0
    %3402 = vmatpush1.bf16.msra.mxu0 %v3383
    %3403 = vmatprep.subr.bf16.mxu0 0
    %3404 = vmatpush1.bf16.msra.mxu0 %v3384
    %3405 = vmatprep.subr.bf16.mxu0 0
    %3406 = vmatpush1.bf16.msra.mxu0 %v3385
    %3407 = vmatprep.subr.bf16.mxu0 0
    %3408 = vmatpush1.bf16.msra.mxu0 %v3386
    %3409 = vmatprep.subr.bf16.mxu0 0
    %3410 = vmatpush1.bf16.msra.mxu0 %v3387
    %3411 = vmatprep.subr.bf16.mxu0 0
    %3412 = vmatpush1.bf16.msra.mxu0 %v3388
    %3413 = vmatprep.subr.bf16.mxu0 0
    %3414 = vmatpush1.bf16.msra.mxu0 0
    %3415 = vmatprep.subr.bf16.mxu0 0
    %3416 = vmatpush1.bf16.msra.mxu0 0
    %3417 = vmatprep.subr.bf16.mxu0 0
    %3418 = vmatpush1.bf16.msra.mxu0 0
    %3419 = vmatprep.subr.bf16.mxu0 0
    %3420 = vmatpush1.bf16.msra.mxu0 0
    %3421 = vmatprep.subr.bf16.mxu0 0
    %3422 = vmatpush1.bf16.msra.mxu0 0
    %3423 = vmatprep.subr.bf16.mxu0 0
    %3424 = vmatpush1.bf16.msra.mxu0 0
    %3425 = vmatprep.subr.bf16.mxu0 0
    %3426 = vmatpush1.bf16.msra.mxu0 0
    %3427 = vmatprep.subr.bf16.mxu0 0
    %3428 = vmatpush1.bf16.msra.mxu0 0
    %3429 = vmatprep.mubr.bf16.mxu0 0
    %3430 = vmatmul.mubr.bf16.gmra.mrb[0].mxu0 %v3341
    %v3431 = vpop.f32.mrb[0].mxu0
    %v3432 = vadd.f32 %v3347, %v3431
    %v3433 = vpop.f32.mrb[0].mxu0
    %v3434 = vpop.f32.mrb[0].mxu0
    %v3435 = vpop.f32.mrb[0].mxu0
    %3436 = vdwg.mxu0
    %3437 = vst [vmem:[#allocation7] sm:$0xff] %v3432
    // Predicated region
    $region34: #{lstm_model_forward.1} parent=1 // pred_check
      _
    $region35: #{lstm_model_forward.1} parent=1 // pred_check_branch
      %3439 = sbr.rel (0) target = $region37
    $region36: #{lstm_model_forward.1} parent=1 // pred_region
      %s3441 = ssub.s32 128, 128
      %3442 = vsyncadd [#allocation4], %s3441
      %s3444 = sshll.u32 [#allocation7], 4
      %s3445 = int_to_ptr.vmem [resolvable:$true] %s3444
      %3447 = dma.vmem_to_hbm [thread:$0]  %s3445, 128, %s6, [#allocation4]
    $region37: #{lstm_model_forward.1} parent=1 // pred_fallthru
      _
    // Predicated region
    $region38: #{lstm_model_forward.1} parent=1 // pred_check
      _
    $region39: #{lstm_model_forward.1} parent=1 // pred_check_branch
      %3449 = sbr.rel (0) target = $region41
    $region40: #{lstm_model_forward.1} parent=1 // pred_region
      %3450 = dma.done [#allocation4], 128
    $region41: #{lstm_model_forward.1} parent=1 // pred_fallthru
      _
    %3451 = vsyncpa [#allocation3], 1
    %3452 = vsyncpa [#allocation6], 1
    %3453 = vsyncpa [#allocation4], 1

</llo_original>
